<compile_context>
chip_gen: v7x
topology: tpu7x:2x2x1
jax: 0.10.0
libtpu: 0.0.40
codegen_flags: <defaults>
</compile_context>

<pallas_src>
import functools

import jax
import jax.numpy as jnp
import numpy as np
from jax.experimental import pallas as pl
from jax.experimental.pallas import tpu as pltpu

DIM_PN = 1024   # matches STN3d default (bn3 is hard-wired to 1024 channels)
EPS = 1e-5      # nn.BatchNorm1d default eps


def _round_up(x, m):
    return ((x + m - 1) // m) * m


# ---------------------------------------------------------------------------
# Fused kernel: point MLP + running max over points + FC head epilogue
# ---------------------------------------------------------------------------
def _stn3d_kernel(x_ref, w1_ref, b1_ref, w2_ref, b2_ref, w3_ref, b3_ref,
                  w4_ref, b4_ref, w5_ref, b5_ref, w6_ref, b6_ref,
                  out_ref, gmax_ref, *, n_valid, tile_n, needs_mask):
    nt = pl.program_id(1)

    # ---- conv1 (Cin=3) on the VPU: 3 broadcast FMAs, f32 ----
    x = x_ref[...]                                   # (tile_n, 3) f32
    w1 = w1_ref[...]                                 # (3, 64)    f32
    h = (x[:, 0:1] * w1[0:1, :] +
         x[:, 1:2] * w1[1:2, :] +
         x[:, 2:3] * w1[2:3, :] + b1_ref[...])
    h = jnp.maximum(h, 0.0)                          # relu(bn1(conv1))

    # ---- conv2 / conv3 on the MXU: bf16 operands, f32 accumulate ----
    h = jnp.dot(h.astype(jnp.bfloat16), w2_ref[...],
                preferred_element_type=jnp.float32)
    h = jnp.maximum(h + b2_ref[...], 0.0)            # relu(bn2(conv2))
    h = jnp.dot(h.astype(jnp.bfloat16), w3_ref[...],
                preferred_element_type=jnp.float32)
    h = jnp.maximum(h + b3_ref[...], 0.0)            # relu(bn3(conv3)) (tile_n, dp)

    if needs_mask:
        # Zero out padded rows; post-ReLU features are >= 0, so 0 is neutral
        # for the running max.
        row = jax.lax.broadcasted_iota(jnp.int32, (tile_n, 1), 0)
        h = jnp.where(nt * tile_n + row < n_valid, h, 0.0)

    tile_max = jnp.max(h, axis=0, keepdims=True)     # (1, dim_pn)

    @pl.when(nt == 0)
    def _():
        gmax_ref[...] = jnp.zeros_like(gmax_ref)

    gmax_ref[...] = jnp.maximum(gmax_ref[...], tile_max)

    # ---- fused FC head (fc1/fc2/fc3 + identity already folded into b6) ----
    @pl.when(nt == pl.num_programs(1) - 1)
    def _():
        g = gmax_ref[...]                            # (1, dim_pn) f32
        t = jnp.dot(g.astype(jnp.bfloat16), w4_ref[...],
                    preferred_element_type=jnp.float32)
        t = jnp.maximum(t + b4_ref[...], 0.0)        # relu(bn4(fc1))
        t = jnp.dot(t.astype(jnp.bfloat16), w5_ref[...],
                    preferred_element_type=jnp.float32)
        t = jnp.maximum(t + b5_ref[...], 0.0)        # relu(bn5(fc2))
        t = jnp.dot(t.astype(jnp.bfloat16), w6_ref[...],
                    preferred_element_type=jnp.float32)
        out_ref[...] = t + b6_ref[...]               # fc3 bias + identity


def stn3d_forward(x_ncl, params, *, tile_n=512):
    """x_ncl: (B, 3, N) float32 (PyTorch NCL layout).  Returns (B, 3, 3)."""
    (w1, b1), (w2, b2), (w3, b3), (w4, b4), (w5, b5), (w6, b6) = params
    B, C, N = x_ncl.shape
    assert C == 3
    dp = w3.shape[1]

    # channels-last so every 1x1 conv is a (tile_n, Cin) @ (Cin, Cout) matmul
    x_bnc = jnp.transpose(x_ncl, (0, 2, 1)).astype(jnp.float32)   # (B, N, 3)

    tile_n = min(tile_n, _round_up(N, 8))
    n_pad = _round_up(N, tile_n)
    if n_pad != N:
        x_bnc = jnp.pad(x_bnc, ((0, 0), (0, n_pad - N), (0, 0)))

    # bf16 weights for the MXU (f32 accumulate in-kernel); biases stay f32.
    w2b, w3b = w2.astype(jnp.bfloat16), w3.astype(jnp.bfloat16)
    w4b, w5b, w6b = (w4.astype(jnp.bfloat16), w5.astype(jnp.bfloat16),
                     w6.astype(jnp.bfloat16))
    iden = jnp.asarray([1., 0., 0., 0., 1., 0., 0., 0., 1.],
                       dtype=jnp.float32).reshape(1, 9)
    b6_eff = b6 + iden                                            # fold identity

    kernel = functools.partial(_stn3d_kernel, n_valid=N, tile_n=tile_n,
                               needs_mask=(n_pad != N))
    const = lambda b, n: (0, 0)   # resident weight/bias blocks (DMA'd once)

    out = pl.pallas_call(
        kernel,
        out_shape=jax.ShapeDtypeStruct((B, 1, 9), jnp.float32),
        grid_spec=pltpu.PrefetchScalarGridSpec(
            num_scalar_prefetch=0,
            grid=(B, n_pad // tile_n),
            in_specs=[
                pl.BlockSpec((None, tile_n, 3), lambda b, n: (b, n, 0)),
                pl.BlockSpec((3, 64), const),     # w1 (f32, VPU path)
                pl.BlockSpec((1, 64), const),     # b1
                pl.BlockSpec((64, 128), const),   # w2 (bf16)
                pl.BlockSpec((1, 128), const),    # b2
                pl.BlockSpec((128, dp), const),   # w3 (bf16)
                pl.BlockSpec((1, dp), const),     # b3
                pl.BlockSpec((dp, 512), const),   # w4 (bf16)
                pl.BlockSpec((1, 512), const),    # b4
                pl.BlockSpec((512, 256), const),  # w5 (bf16)
                pl.BlockSpec((1, 256), const),    # b5
                pl.BlockSpec((256, 9), const),    # w6 (bf16)
                pl.BlockSpec((1, 9), const),      # b6 + identity
            ],
            out_specs=pl.BlockSpec((None, 1, 9), lambda b, n: (b, 0, 0)),
            scratch_shapes=[pltpu.VMEM((1, dp), jnp.float32)],    # running max
        ),
        compiler_params=pltpu.CompilerParams(
            dimension_semantics=("parallel", "arbitrary"),
            vmem_limit_bytes=32 * 1024 * 1024),
    )(x_bnc, w1, b1, w2b, b2, w3b, b3, w4b, b4, w5b, b5, w6b, b6_eff)

    return out.reshape(B, 3, 3)


# ---------------------------------------------------------------------------
# Parameter setup (deterministic, synthetic) + BN folding (plain-JAX glue)
# ---------------------------------------------------------------------------
def _fold_bn(w_t, b, gamma, beta, mean, var):
    """Fold eval-mode BatchNorm1d into (in, out) weight + (1, out) bias."""
    scale = gamma / jnp.sqrt(var + EPS)
    return w_t * scale[None, :], ((b - mean) * scale + beta)[None, :]


def init_params(key, dim_pn=DIM_PN):
    dims = [(3, 64), (64, 128), (128, dim_pn),       # conv1..3 (1x1)
            (dim_pn, 512), (512, 256), (256, 9)]     # fc1..3
    keys = jax.random.split(key, 4 * len(dims))
    folded = []
    for i, (cin, cout) in enumerate(dims):
        kw, kb, kg, km = keys[4 * i:4 * i + 4]
        w = jax.random.normal(kw, (cin, cout), jnp.float32) / np.sqrt(cin)
        b = 0.1 * jax.random.normal(kb, (cout,), jnp.float32)
        if i < 5:  # layers followed by a BatchNorm (bn1..bn5)
            gamma = 1.0 + 0.1 * jax.random.normal(kg, (cout,), jnp.float32)
            beta = 0.1 * jax.random.normal(km, (cout,), jnp.float32)
            mean = 0.1 * jax.random.normal(km, (cout,), jnp.float32)
            var = 0.5 + jax.random.uniform(kg, (cout,), jnp.float32)
            w, b = _fold_bn(w, b, gamma, beta, mean, var)
        else:
            b = b[None, :]
        folded.append((w, b))
    return folded


# ---------------------------------------------------------------------------
# Pure-JAX f32 reference (matches STN3d.forward semantics with BN folded)
# ---------------------------------------------------------------------------
def reference_forward(x_ncl, params):
    (w1, b1), (w2, b2), (w3, b3), (w4, b4), (w5, b5), (w6, b6) = params
    x = jnp.transpose(x_ncl, (0, 2, 1))                          # (B, N, 3)
    h = jax.nn.relu(x @ w1 + b1)
    h = jax.nn.relu(h @ w2 + b2)
    h = jax.nn.relu(h @ w3 + b3)
    g = jnp.max(h, axis=1)                                       # (B, dim_pn)
    h = jax.nn.relu(g @ w4 + b4)
    h = jax.nn.relu(h @ w5 + b5)
    out = h @ w6 + b6
    iden = jnp.asarray([1., 0., 0., 0., 1., 0., 0., 0., 1.], jnp.float32)
    return (out + iden[None, :]).reshape(-1, 3, 3)


if __name__ == "__main__":
    B, N = 2, 256
    key = jax.random.PRNGKey(0)
    k_x, k_p = jax.random.split(key)

    # Input in the PyTorch Conv1d layout (B, C=3, N).
    x_ncl = jax.random.normal(k_x, (B, 3, N), dtype=jnp.float32)
    params = init_params(k_p, DIM_PN)

    out = jax.block_until_ready(stn3d_forward(x_ncl, params))
    ref = jax.block_until_ready(reference_forward(x_ncl, params))

    assert out.shape == (B, 3, 3), out.shape
    # Kernel runs the MXU matmuls with bf16 operands / f32 accumulation;
    # reference is full f32 -> modest tolerance.
    np.testing.assert_allclose(np.asarray(out), np.asarray(ref),
                               rtol=5e-2, atol=5e-2)
    print("KERNEL_OK")
</pallas_src>

<mosaic_0001>
module attributes {stable_mosaic.version = 11 : i64} {
  func.func @_stn3d_kernel(%arg0: i32, %arg1: i32, %arg2: memref<1x256x3xf32, #tpu.memory_space<vmem>>, %arg3: memref<3x64xf32, #tpu.memory_space<vmem>>, %arg4: memref<1x64xf32, #tpu.memory_space<vmem>>, %arg5: memref<64x128xbf16, #tpu.memory_space<vmem>>, %arg6: memref<1x128xf32, #tpu.memory_space<vmem>>, %arg7: memref<128x1024xbf16, #tpu.memory_space<vmem>>, %arg8: memref<1x1024xf32, #tpu.memory_space<vmem>>, %arg9: memref<1024x512xbf16, #tpu.memory_space<vmem>>, %arg10: memref<1x512xf32, #tpu.memory_space<vmem>>, %arg11: memref<512x256xbf16, #tpu.memory_space<vmem>>, %arg12: memref<1x256xf32, #tpu.memory_space<vmem>>, %arg13: memref<256x9xbf16, #tpu.memory_space<vmem>>, %arg14: memref<1x9xf32, #tpu.memory_space<vmem>>, %arg15: memref<1x1x9xf32, #tpu.memory_space<vmem>>, %arg16: memref<1x1024xf32, #tpu.memory_space<vmem>>) attributes {dimension_semantics = [#tpu.dimension_semantics<parallel>, #tpu.dimension_semantics<arbitrary>], iteration_bounds = array<i64: 2, 1>, scalar_prefetch = 0 : i64, scratch_operands = 1 : i64, tpu.core_type = #tpu.core_type<tc>, window_params = [{transform_indices = @transform_0, window_bounds = array<i64: 1, 256, 3>}, {pipeline_mode = #tpu.pipeline_mode<synchronous>, transform_indices = @transform_1, window_bounds = array<i64: 3, 64>}, {pipeline_mode = #tpu.pipeline_mode<synchronous>, transform_indices = @transform_2, window_bounds = array<i64: 1, 64>}, {pipeline_mode = #tpu.pipeline_mode<synchronous>, transform_indices = @transform_3, window_bounds = array<i64: 64, 128>}, {pipeline_mode = #tpu.pipeline_mode<synchronous>, transform_indices = @transform_4, window_bounds = array<i64: 1, 128>}, {pipeline_mode = #tpu.pipeline_mode<synchronous>, transform_indices = @transform_5, window_bounds = array<i64: 128, 1024>}, {pipeline_mode = #tpu.pipeline_mode<synchronous>, transform_indices = @transform_6, window_bounds = array<i64: 1, 1024>}, {pipeline_mode = #tpu.pipeline_mode<synchronous>, transform_indices = @transform_7, window_bounds = array<i64: 1024, 512>}, {pipeline_mode = #tpu.pipeline_mode<synchronous>, transform_indices = @transform_8, window_bounds = array<i64: 1, 512>}, {pipeline_mode = #tpu.pipeline_mode<synchronous>, transform_indices = @transform_9, window_bounds = array<i64: 512, 256>}, {pipeline_mode = #tpu.pipeline_mode<synchronous>, transform_indices = @transform_10, window_bounds = array<i64: 1, 256>}, {pipeline_mode = #tpu.pipeline_mode<synchronous>, transform_indices = @transform_11, window_bounds = array<i64: 256, 9>}, {pipeline_mode = #tpu.pipeline_mode<synchronous>, transform_indices = @transform_12, window_bounds = array<i64: 1, 9>}, {transform_indices = @transform_13, window_bounds = array<i64: 1, 1, 9>}]} {
    %c0 = arith.constant 0 : index
    %c0_0 = arith.constant 0 : index
    %c0_1 = arith.constant 0 : index
    %0 = vector.load %arg2[%c0, %c0_0, %c0_1] : memref<1x256x3xf32, #tpu.memory_space<vmem>>, vector<1x256x3xf32>
    %1 = vector.shape_cast %0 : vector<1x256x3xf32> to vector<256x3xf32>
    %c0_2 = arith.constant 0 : index
    %c0_3 = arith.constant 0 : index
    %2 = vector.load %arg3[%c0_2, %c0_3] : memref<3x64xf32, #tpu.memory_space<vmem>>, vector<3x64xf32>
    %3 = vector.extract_strided_slice %1 {offsets = [0, 0], sizes = [256, 1], strides = [1, 1]} : vector<256x3xf32> to vector<256x1xf32>
    %4 = vector.extract_strided_slice %2 {offsets = [0, 0], sizes = [1, 64], strides = [1, 1]} : vector<3x64xf32> to vector<1x64xf32>
    %5 = vector.broadcast %3 : vector<256x1xf32> to vector<256x64xf32>
    %6 = vector.broadcast %4 : vector<1x64xf32> to vector<256x64xf32>
    %7 = arith.mulf %5, %6 : vector<256x64xf32>
    %8 = vector.extract_strided_slice %1 {offsets = [0, 1], sizes = [256, 1], strides = [1, 1]} : vector<256x3xf32> to vector<256x1xf32>
    %9 = vector.extract_strided_slice %2 {offsets = [1, 0], sizes = [1, 64], strides = [1, 1]} : vector<3x64xf32> to vector<1x64xf32>
    %10 = vector.broadcast %8 : vector<256x1xf32> to vector<256x64xf32>
    %11 = vector.broadcast %9 : vector<1x64xf32> to vector<256x64xf32>
    %12 = arith.mulf %10, %11 : vector<256x64xf32>
    %13 = arith.addf %7, %12 : vector<256x64xf32>
    %14 = vector.extract_strided_slice %1 {offsets = [0, 2], sizes = [256, 1], strides = [1, 1]} : vector<256x3xf32> to vector<256x1xf32>
    %15 = vector.extract_strided_slice %2 {offsets = [2, 0], sizes = [1, 64], strides = [1, 1]} : vector<3x64xf32> to vector<1x64xf32>
    %16 = vector.broadcast %14 : vector<256x1xf32> to vector<256x64xf32>
    %17 = vector.broadcast %15 : vector<1x64xf32> to vector<256x64xf32>
    %18 = arith.mulf %16, %17 : vector<256x64xf32>
    %19 = arith.addf %13, %18 : vector<256x64xf32>
    %c0_4 = arith.constant 0 : index
    %c0_5 = arith.constant 0 : index
    %20 = vector.load %arg4[%c0_4, %c0_5] : memref<1x64xf32, #tpu.memory_space<vmem>>, vector<1x64xf32>
    %21 = vector.broadcast %20 : vector<1x64xf32> to vector<256x64xf32>
    %22 = arith.addf %19, %21 : vector<256x64xf32>
    %cst = arith.constant 0.000000e+00 : f32
    %23 = vector.broadcast %cst : f32 to vector<256x64xf32>
    %24 = arith.maximumf %22, %23 : vector<256x64xf32>
    %25 = arith.truncf %24 : vector<256x64xf32> to vector<256x64xbf16>
    %c0_6 = arith.constant 0 : index
    %c0_7 = arith.constant 0 : index
    %26 = vector.load %arg5[%c0_6, %c0_7] : memref<64x128xbf16, #tpu.memory_space<vmem>>, vector<64x128xbf16>
    %cst_8 = arith.constant dense<0.000000e+00> : vector<256x128xf32>
    %27 = tpu.matmul %25, %26, %cst_8 {dimension_numbers = #tpu.dot_dimension_numbers<[1], [0], [0], [1], [0, 0, 1, 1], [], []>} : vector<256x64xbf16>, vector<64x128xbf16>, vector<256x128xf32> -> vector<256x128xf32>
    %c0_9 = arith.constant 0 : index
    %c0_10 = arith.constant 0 : index
    %28 = vector.load %arg6[%c0_9, %c0_10] : memref<1x128xf32, #tpu.memory_space<vmem>>, vector<1x128xf32>
    %29 = vector.broadcast %28 : vector<1x128xf32> to vector<256x128xf32>
    %30 = arith.addf %27, %29 : vector<256x128xf32>
    %cst_11 = arith.constant 0.000000e+00 : f32
    %31 = vector.broadcast %cst_11 : f32 to vector<256x128xf32>
    %32 = arith.maximumf %30, %31 : vector<256x128xf32>
    %33 = arith.truncf %32 : vector<256x128xf32> to vector<256x128xbf16>
    %c0_12 = arith.constant 0 : index
    %c0_13 = arith.constant 0 : index
    %34 = vector.load %arg7[%c0_12, %c0_13] : memref<128x1024xbf16, #tpu.memory_space<vmem>>, vector<128x1024xbf16>
    %cst_14 = arith.constant dense<0.000000e+00> : vector<256x1024xf32>
    %35 = tpu.matmul %33, %34, %cst_14 {dimension_numbers = #tpu.dot_dimension_numbers<[1], [0], [0], [1], [0, 0, 1, 1], [], []>} : vector<256x128xbf16>, vector<128x1024xbf16>, vector<256x1024xf32> -> vector<256x1024xf32>
    %c0_15 = arith.constant 0 : index
    %c0_16 = arith.constant 0 : index
    %36 = vector.load %arg8[%c0_15, %c0_16] : memref<1x1024xf32, #tpu.memory_space<vmem>>, vector<1x1024xf32>
    %37 = vector.broadcast %36 : vector<1x1024xf32> to vector<256x1024xf32>
    %38 = arith.addf %35, %37 : vector<256x1024xf32>
    %cst_17 = arith.constant 0.000000e+00 : f32
    %39 = vector.broadcast %cst_17 : f32 to vector<256x1024xf32>
    %40 = arith.maximumf %38, %39 : vector<256x1024xf32>
    %cst_18 = arith.constant dense<0xFF800000> : vector<1024xf32>
    %41 = vector.multi_reduction <maximumf>, %40, %cst_18 [0] : vector<256x1024xf32> to vector<1024xf32>
    %42 = vector.shape_cast %41 : vector<1024xf32> to vector<1x1024xf32>
    %c0_i32 = arith.constant 0 : i32
    %43 = arith.cmpi eq, %arg1, %c0_i32 : i32
    %44 = arith.extui %43 : i1 to i32
    %c0_i32_19 = arith.constant 0 : i32
    %45 = arith.cmpi ne, %44, %c0_i32_19 : i32
    scf.if %45 {
      %cst_26 = arith.constant 0.000000e+00 : f32
      %52 = vector.broadcast %cst_26 : f32 to vector<1x1024xf32>
      %c0_27 = arith.constant 0 : index
      %c0_28 = arith.constant 0 : index
      %53 = vector.load %arg16[%c0_27, %c0_28] : memref<1x1024xf32, #tpu.memory_space<vmem>>, vector<1x1024xf32>
      tpu.vector_store %arg16[%c0_27, %c0_28], %52 {strides = array<i32>} : memref<1x1024xf32, #tpu.memory_space<vmem>>, vector<1x1024xf32>,
    } else {
    }
    %c0_20 = arith.constant 0 : index
    %c0_21 = arith.constant 0 : index
    %46 = vector.load %arg16[%c0_20, %c0_21] : memref<1x1024xf32, #tpu.memory_space<vmem>>, vector<1x1024xf32>
    %47 = arith.maximumf %46, %42 : vector<1x1024xf32>
    %c0_22 = arith.constant 0 : index
    %c0_23 = arith.constant 0 : index
    %48 = vector.load %arg16[%c0_22, %c0_23] : memref<1x1024xf32, #tpu.memory_space<vmem>>, vector<1x1024xf32>
    tpu.vector_store %arg16[%c0_22, %c0_23], %47 {strides = array<i32>} : memref<1x1024xf32, #tpu.memory_space<vmem>>, vector<1x1024xf32>,
    %c0_i32_24 = arith.constant 0 : i32
    %49 = arith.cmpi eq, %arg1, %c0_i32_24 : i32
    %50 = arith.extui %49 : i1 to i32
    %c0_i32_25 = arith.constant 0 : i32
    %51 = arith.cmpi ne, %50, %c0_i32_25 : i32
    scf.if %51 {
      %c0_26 = arith.constant 0 : index
      %c0_27 = arith.constant 0 : index
      %52 = vector.load %arg16[%c0_26, %c0_27] : memref<1x1024xf32, #tpu.memory_space<vmem>>, vector<1x1024xf32>
      %53 = arith.truncf %52 : vector<1x1024xf32> to vector<1x1024xbf16>
      %c0_28 = arith.constant 0 : index
      %c0_29 = arith.constant 0 : index
      %54 = vector.load %arg9[%c0_28, %c0_29] : memref<1024x512xbf16, #tpu.memory_space<vmem>>, vector<1024x512xbf16>
      %cst_30 = arith.constant dense<0.000000e+00> : vector<1x512xf32>
      %55 = tpu.matmul %53, %54, %cst_30 {dimension_numbers = #tpu.dot_dimension_numbers<[1], [0], [0], [1], [0, 0, 1, 1], [], []>} : vector<1x1024xbf16>, vector<1024x512xbf16>, vector<1x512xf32> -> vector<1x512xf32>
      %c0_31 = arith.constant 0 : index
      %c0_32 = arith.constant 0 : index
      %56 = vector.load %arg10[%c0_31, %c0_32] : memref<1x512xf32, #tpu.memory_space<vmem>>, vector<1x512xf32>
      %57 = arith.addf %55, %56 : vector<1x512xf32>
      %cst_33 = arith.constant 0.000000e+00 : f32
      %58 = vector.broadcast %cst_33 : f32 to vector<1x512xf32>
      %59 = arith.maximumf %57, %58 : vector<1x512xf32>
      %60 = arith.truncf %59 : vector<1x512xf32> to vector<1x512xbf16>
      %c0_34 = arith.constant 0 : index
      %c0_35 = arith.constant 0 : index
      %61 = vector.load %arg11[%c0_34, %c0_35] : memref<512x256xbf16, #tpu.memory_space<vmem>>, vector<512x256xbf16>
      %cst_36 = arith.constant dense<0.000000e+00> : vector<1x256xf32>
      %62 = tpu.matmul %60, %61, %cst_36 {dimension_numbers = #tpu.dot_dimension_numbers<[1], [0], [0], [1], [0, 0, 1, 1], [], []>} : vector<1x512xbf16>, vector<512x256xbf16>, vector<1x256xf32> -> vector<1x256xf32>
      %c0_37 = arith.constant 0 : index
      %c0_38 = arith.constant 0 : index
      %63 = vector.load %arg12[%c0_37, %c0_38] : memref<1x256xf32, #tpu.memory_space<vmem>>, vector<1x256xf32>
      %64 = arith.addf %62, %63 : vector<1x256xf32>
      %cst_39 = arith.constant 0.000000e+00 : f32
      %65 = vector.broadcast %cst_39 : f32 to vector<1x256xf32>
      %66 = arith.maximumf %64, %65 : vector<1x256xf32>
      %67 = arith.truncf %66 : vector<1x256xf32> to vector<1x256xbf16>
      %c0_40 = arith.constant 0 : index
      %c0_41 = arith.constant 0 : index
      %68 = vector.load %arg13[%c0_40, %c0_41] : memref<256x9xbf16, #tpu.memory_space<vmem>>, vector<256x9xbf16>
      %cst_42 = arith.constant dense<0.000000e+00> : vector<1x9xf32>
      %69 = tpu.matmul %67, %68, %cst_42 {dimension_numbers = #tpu.dot_dimension_numbers<[1], [0], [0], [1], [0, 0, 1, 1], [], []>} : vector<1x256xbf16>, vector<256x9xbf16>, vector<1x9xf32> -> vector<1x9xf32>
      %c0_43 = arith.constant 0 : index
      %c0_44 = arith.constant 0 : index
      %70 = vector.load %arg14[%c0_43, %c0_44] : memref<1x9xf32, #tpu.memory_space<vmem>>, vector<1x9xf32>
      %71 = arith.addf %69, %70 : vector<1x9xf32>
      %c0_45 = arith.constant 0 : index
      %c0_46 = arith.constant 0 : index
      %c0_47 = arith.constant 0 : index
      %72 = vector.load %arg15[%c0_45, %c0_46, %c0_47] : memref<1x1x9xf32, #tpu.memory_space<vmem>>, vector<1x1x9xf32>
      %73 = vector.shape_cast %72 : vector<1x1x9xf32> to vector<1x9xf32>
      %74 = vector.shape_cast %71 : vector<1x9xf32> to vector<1x1x9xf32>
      tpu.vector_store %arg15[%c0_45, %c0_46, %c0_47], %74 {strides = array<i32>} : memref<1x1x9xf32, #tpu.memory_space<vmem>>, vector<1x1x9xf32>,
    } else {
    }
    return
  }
  func.func @transform_0(%arg0: i32, %arg1: i32) -> (i32, i32, i32) {
    %c0_i32 = arith.constant 0 : i32
    %c0_i32_0 = arith.constant 0 : i32
    return %arg0, %arg1, %c0_i32 : i32, i32, i32
  }
  func.func @transform_1(%arg0: i32, %arg1: i32) -> (i32, i32) {
    %c0_i32 = arith.constant 0 : i32
    %c0_i32_0 = arith.constant 0 : i32
    %c0_i32_1 = arith.constant 0 : i32
    return %c0_i32, %c0_i32_0 : i32, i32
  }
  func.func @transform_2(%arg0: i32, %arg1: i32) -> (i32, i32) {
    %c0_i32 = arith.constant 0 : i32
    %c0_i32_0 = arith.constant 0 : i32
    %c0_i32_1 = arith.constant 0 : i32
    return %c0_i32, %c0_i32_0 : i32, i32
  }
  func.func @transform_3(%arg0: i32, %arg1: i32) -> (i32, i32) {
    %c0_i32 = arith.constant 0 : i32
    %c0_i32_0 = arith.constant 0 : i32
    %c0_i32_1 = arith.constant 0 : i32
    return %c0_i32, %c0_i32_0 : i32, i32
  }
  func.func @transform_4(%arg0: i32, %arg1: i32) -> (i32, i32) {
    %c0_i32 = arith.constant 0 : i32
    %c0_i32_0 = arith.constant 0 : i32
    %c0_i32_1 = arith.constant 0 : i32
    return %c0_i32, %c0_i32_0 : i32, i32
  }
  func.func @transform_5(%arg0: i32, %arg1: i32) -> (i32, i32) {
    %c0_i32 = arith.constant 0 : i32
    %c0_i32_0 = arith.constant 0 : i32
    %c0_i32_1 = arith.constant 0 : i32
    return %c0_i32, %c0_i32_0 : i32, i32
  }
  func.func @transform_6(%arg0: i32, %arg1: i32) -> (i32, i32) {
    %c0_i32 = arith.constant 0 : i32
    %c0_i32_0 = arith.constant 0 : i32
    %c0_i32_1 = arith.constant 0 : i32
    return %c0_i32, %c0_i32_0 : i32, i32
  }
  func.func @transform_7(%arg0: i32, %arg1: i32) -> (i32, i32) {
    %c0_i32 = arith.constant 0 : i32
    %c0_i32_0 = arith.constant 0 : i32
    %c0_i32_1 = arith.constant 0 : i32
    return %c0_i32, %c0_i32_0 : i32, i32
  }
  func.func @transform_8(%arg0: i32, %arg1: i32) -> (i32, i32) {
    %c0_i32 = arith.constant 0 : i32
    %c0_i32_0 = arith.constant 0 : i32
    %c0_i32_1 = arith.constant 0 : i32
    return %c0_i32, %c0_i32_0 : i32, i32
  }
  func.func @transform_9(%arg0: i32, %arg1: i32) -> (i32, i32) {
    %c0_i32 = arith.constant 0 : i32
    %c0_i32_0 = arith.constant 0 : i32
    %c0_i32_1 = arith.constant 0 : i32
    return %c0_i32, %c0_i32_0 : i32, i32
  }
  func.func @transform_10(%arg0: i32, %arg1: i32) -> (i32, i32) {
    %c0_i32 = arith.constant 0 : i32
    %c0_i32_0 = arith.constant 0 : i32
    %c0_i32_1 = arith.constant 0 : i32
    return %c0_i32, %c0_i32_0 : i32, i32
  }
  func.func @transform_11(%arg0: i32, %arg1: i32) -> (i32, i32) {
    %c0_i32 = arith.constant 0 : i32
    %c0_i32_0 = arith.constant 0 : i32
    %c0_i32_1 = arith.constant 0 : i32
    return %c0_i32, %c0_i32_0 : i32, i32
  }
  func.func @transform_12(%arg0: i32, %arg1: i32) -> (i32, i32) {
    %c0_i32 = arith.constant 0 : i32
    %c0_i32_0 = arith.constant 0 : i32
    %c0_i32_1 = arith.constant 0 : i32
    return %c0_i32, %c0_i32_0 : i32, i32
  }
  func.func @transform_13(%arg0: i32, %arg1: i32) -> (i32, i32, i32) {
    %c0_i32 = arith.constant 0 : i32
    %c0_i32_0 = arith.constant 0 : i32
    %c0_i32_1 = arith.constant 0 : i32
    return %arg0, %c0_i32, %c0_i32_0 : i32, i32, i32
  }
}

</mosaic_0001>

<llo_original>
// kernel: tpu_custom_call.1
$region0: #{tpu_custom_call.1}
  #allocation0 [shape = 'u32[]', space=smem, size = 0x4, offset = 0x4, fixed_abs, tag = 'smem constant byte address 0x4 - core index']
  #allocation1 [shape = 'u32[144,128]{1,0:T(1,128)}', space=vmem, size = 0x12000, scoped, tag = 'internal scratch']
  #allocation2 [shape = 'f32[1,1024]{1,0:T(1,128)}', space=vmem, size = 0x1000, scoped, tag = 'scratch operand']
  %s0 = inlined_call_operand.vmem [shape: f32[2,256,3], index: 0, kind: input, shape index: {}]
  %s1 = inlined_call_operand.vmem [shape: f32[3,64], index: 1, kind: input, shape index: {}]
  %s2 = inlined_call_operand.vmem [shape: f32[1,64], index: 2, kind: input, shape index: {}]
  %s3 = inlined_call_operand.vmem [shape: bf16[64,128], index: 3, kind: input, shape index: {}]
  %s4 = inlined_call_operand.vmem [shape: f32[1,128], index: 4, kind: input, shape index: {}]
  %s5 = inlined_call_operand.vmem [shape: bf16[128,1024], index: 5, kind: input, shape index: {}]
  %s6 = inlined_call_operand.vmem [shape: f32[1,1024], index: 6, kind: input, shape index: {}]
  %s7 = inlined_call_operand.hbm [shape: bf16[1024,512], index: 7, kind: input, shape index: {}]
  %s8 = inlined_call_operand.vmem [shape: f32[1,512], index: 8, kind: input, shape index: {}]
  %s9 = inlined_call_operand.hbm [shape: bf16[512,256], index: 9, kind: input, shape index: {}]
  %s10 = inlined_call_operand.vmem [shape: f32[1,256], index: 10, kind: input, shape index: {}]
  %s11 = inlined_call_operand.vmem [shape: bf16[256,9], index: 11, kind: input, shape index: {}]
  %s12 = inlined_call_operand.vmem [shape: f32[1,9], index: 12, kind: input, shape index: {}]
  %s13 = inlined_call_operand.hbm [shape: f32[2,1,9], index: 13, kind: output, shape index: {}]
  %s14 = sld [smem:[#allocation0]]
  $region101: #{tpu_custom_call.1} parent=0
    _
  %s16 = ssub.s32 1, %s14
  %s17 = scalar_select 0, %s16, %s14
  $region1: #{tpu_custom_call.1} parent=0
    #allocation3 [shape = 'u8[1048576]{0}', space=vmem, size = 0x100000, scoped, tag = 'input window, operand 7, single buffered']
    #allocation4 [shape = 's32[2]{0}', space=sflag, size = 0x8, scoped, tag = 'scoped memory for tpu_custom_call.1']
    #allocation5 [shape = 's32[2]{0}', space=sflag, size = 0x8, scoped, tag = 'scoped memory for tpu_custom_call.1']
    #allocation6 [shape = 'u8[262144]{0}', space=vmem, size = 0x40000, scoped, tag = 'input window, operand 9, single buffered']
    #allocation7 [shape = 's32[1]{0}', space=sflag, size = 0x4, scoped, tag = 'scoped memory for tpu_custom_call.1']
    #allocation8 [shape = 'u8[1024]{0}', space=vmem, size = 0x400, scoped, tag = 'output window, operand 0']
    %18 = vsyncpa [#allocation4], 0
    %19 = vsyncpa [#allocation7], 0
    %20 = vsyncpa [#allocation5], 0
    %s21 = scalar_lea.sflag [#allocation5], 1
    %22 = vsyncpa %s21, 0
    loop: start=0, step=1, limit=4
    $region2: #{tpu_custom_call.1} parent=1 // loop_pre_header
      _
    $region3: #{tpu_custom_call.1} parent=1 // loop_header
      %s24 = sphi 0, %s28
      %p25 = scmp.ge.s32.totalorder %s24, 4
      %s31 = sphi 0, %s43
      %s32 = sphi 0, %s39
      %s33 = sphi 0, %s31
      %s34 = sphi 0, %s32
      %s35 = sphi 0, %s33
      %s36 = sphi 0, %s34
      %s48 = sphi 0, %s50
      %s51 = sphi 0, %s48
      %s52 = sphi 0, %s51
      %s68 = sphi 0, %s52
      %s72 = sphi 0, %s72
      %s74 = sphi 0, %s72
      %s75 = sphi 0, %s74
      %s89 = sphi 0, %s75
      %s93 = sphi 0, %s93
      %s95 = sphi 0, %s93
      %s96 = sphi 0, %s95
      %s110 = sphi 0, %s96
      %s114 = sphi 0, %s114
      %s116 = sphi 0, %s114
      %s117 = sphi 0, %s116
      %s131 = sphi 0, %s117
      %s135 = sphi 0, %s135
      %s137 = sphi 0, %s135
      %s138 = sphi 0, %s137
      %s152 = sphi 0, %s138
      %s156 = sphi 0, %s156
      %s158 = sphi 0, %s156
      %s159 = sphi 0, %s158
      %s173 = sphi 0, %s159
      %s177 = sphi 0, %s177
      %s179 = sphi 0, %s177
      %s180 = sphi 0, %s179
      %s194 = sphi 0, %s180
      %s198 = sphi 0, %s198
      %s200 = sphi 0, %s198
      %s201 = sphi 0, %s200
      %s215 = sphi 0, %s201
      %s219 = sphi 0, %s219
      %s221 = sphi 0, %s219
      %s222 = sphi 0, %s221
      %s236 = sphi 0, %s222
      %s240 = sphi 0, %s240
      %s242 = sphi 0, %s240
      %s243 = sphi 0, %s242
      %s257 = sphi 0, %s243
      %s261 = sphi 0, %s261
      %s263 = sphi 0, %s261
      %s264 = sphi 0, %s263
      %s278 = sphi 0, %s264
      %s282 = sphi 0, %s282
      %s284 = sphi 0, %s282
      %s285 = sphi 0, %s284
      %s299 = sphi 0, %s285
      %s303 = sphi 0, %s303
      %s305 = sphi 0, %s303
      %s306 = sphi 0, %s305
      %s320 = sphi 0, %s306
      %s326 = sphi 0, %s328
      %s329 = sphi 0, %s326
      %s330 = sphi 0, %s329
      %s346 = sphi 0, %s330
    $region4: #{tpu_custom_call.1} parent=1 // loop_header_branch
      %27 = sbr.rel (%p25) target = $region8
    $region5: #{tpu_custom_call.1} parent=1 // loop_body
      %s29 = ssub.s32 %s24, 1
      %s30 = ssub.s32 %s24, 2
      %s37 = sadd.s32 1, %s32
      %p38 = scmp.ge.s32.totalorder %s37, 1
      %s39 = scalar_select %p38, 0, %s37
      %s40 = sadd.s32 1, %s31
      %s41 = scalar_select %p38, %s40, %s31
      %p42 = scmp.ge.s32.totalorder %s41, 2
      %s43 = scalar_select %p42, 0, %s41
      %s44 = ssub.s32 %s31, %s43
      %s45 = ssub.s32 %s32, %s39
      %s46 = sor.u32 %s44, %s45
      %p47 = scmp.eq.s32.totalorder %s46, 0
      %s49 = sadd.s32 %s48, 1
      %s50 = scalar_select %p47, %s48, %s49
      %p53 = pneg %p47
      %p54 = scmp.eq.s32.totalorder %s24, 1
      %p55 = por %p53, %p54
      %p56 = scmp.ne.s32.totalorder %s48, %s51
      %p57 = scmp.eq.s32.totalorder %s24, 0
      %p58 = por %p56, %p57
      %p59 = scmp.ne.s32.totalorder %s48, %s51
      %p60 = scmp.eq.s32.totalorder %s29, 1
      %p61 = por %p59, %p60
      %p62 = scmp.ne.s32.totalorder %s51, %s52
      %p63 = scmp.eq.s32.totalorder %s29, 0
      %p64 = por %p62, %p63
      %p65 = scmp.ne.s32.totalorder %s51, %s52
      %p66 = scmp.eq.s32.totalorder %s30, 1
      %p67 = por %p65, %p66
      %p69 = scmp.ne.s32.totalorder %s52, %s68
      %p70 = scmp.eq.s32.totalorder %s30, 0
      %p71 = por %p69, %p70
      %s73 = sadd.s32 %s72, 1
      %p76 = scmp.eq.s32.totalorder %s24, 1
      %p77 = scmp.ne.s32.totalorder %s72, %s74
      %p78 = scmp.eq.s32.totalorder %s24, 0
      %p79 = por %p77, %p78
      %p80 = scmp.ne.s32.totalorder %s72, %s74
      %p81 = scmp.eq.s32.totalorder %s29, 1
      %p82 = por %p80, %p81
      %p83 = scmp.ne.s32.totalorder %s74, %s75
      %p84 = scmp.eq.s32.totalorder %s29, 0
      %p85 = por %p83, %p84
      %p86 = scmp.ne.s32.totalorder %s74, %s75
      %p87 = scmp.eq.s32.totalorder %s30, 1
      %p88 = por %p86, %p87
      %p90 = scmp.ne.s32.totalorder %s75, %s89
      %p91 = scmp.eq.s32.totalorder %s30, 0
      %p92 = por %p90, %p91
      %s94 = sadd.s32 %s93, 1
      %p97 = scmp.eq.s32.totalorder %s24, 1
      %p98 = scmp.ne.s32.totalorder %s93, %s95
      %p99 = scmp.eq.s32.totalorder %s24, 0
      %p100 = por %p98, %p99
      %p101 = scmp.ne.s32.totalorder %s93, %s95
      %p102 = scmp.eq.s32.totalorder %s29, 1
      %p103 = por %p101, %p102
      %p104 = scmp.ne.s32.totalorder %s95, %s96
      %p105 = scmp.eq.s32.totalorder %s29, 0
      %p106 = por %p104, %p105
      %p107 = scmp.ne.s32.totalorder %s95, %s96
      %p108 = scmp.eq.s32.totalorder %s30, 1
      %p109 = por %p107, %p108
      %p111 = scmp.ne.s32.totalorder %s96, %s110
      %p112 = scmp.eq.s32.totalorder %s30, 0
      %p113 = por %p111, %p112
      %s115 = sadd.s32 %s114, 1
      %p118 = scmp.eq.s32.totalorder %s24, 1
      %p119 = scmp.ne.s32.totalorder %s114, %s116
      %p120 = scmp.eq.s32.totalorder %s24, 0
      %p121 = por %p119, %p120
      %p122 = scmp.ne.s32.totalorder %s114, %s116
      %p123 = scmp.eq.s32.totalorder %s29, 1
      %p124 = por %p122, %p123
      %p125 = scmp.ne.s32.totalorder %s116, %s117
      %p126 = scmp.eq.s32.totalorder %s29, 0
      %p127 = por %p125, %p126
      %p128 = scmp.ne.s32.totalorder %s116, %s117
      %p129 = scmp.eq.s32.totalorder %s30, 1
      %p130 = por %p128, %p129
      %p132 = scmp.ne.s32.totalorder %s117, %s131
      %p133 = scmp.eq.s32.totalorder %s30, 0
      %p134 = por %p132, %p133
      %s136 = sadd.s32 %s135, 1
      %p139 = scmp.eq.s32.totalorder %s24, 1
      %p140 = scmp.ne.s32.totalorder %s135, %s137
      %p141 = scmp.eq.s32.totalorder %s24, 0
      %p142 = por %p140, %p141
      %p143 = scmp.ne.s32.totalorder %s135, %s137
      %p144 = scmp.eq.s32.totalorder %s29, 1
      %p145 = por %p143, %p144
      %p146 = scmp.ne.s32.totalorder %s137, %s138
      %p147 = scmp.eq.s32.totalorder %s29, 0
      %p148 = por %p146, %p147
      %p149 = scmp.ne.s32.totalorder %s137, %s138
      %p150 = scmp.eq.s32.totalorder %s30, 1
      %p151 = por %p149, %p150
      %p153 = scmp.ne.s32.totalorder %s138, %s152
      %p154 = scmp.eq.s32.totalorder %s30, 0
      %p155 = por %p153, %p154
      %s157 = sadd.s32 %s156, 1
      %p160 = scmp.eq.s32.totalorder %s24, 1
      %p161 = scmp.ne.s32.totalorder %s156, %s158
      %p162 = scmp.eq.s32.totalorder %s24, 0
      %p163 = por %p161, %p162
      %p164 = scmp.ne.s32.totalorder %s156, %s158
      %p165 = scmp.eq.s32.totalorder %s29, 1
      %p166 = por %p164, %p165
      %p167 = scmp.ne.s32.totalorder %s158, %s159
      %p168 = scmp.eq.s32.totalorder %s29, 0
      %p169 = por %p167, %p168
      %p170 = scmp.ne.s32.totalorder %s158, %s159
      %p171 = scmp.eq.s32.totalorder %s30, 1
      %p172 = por %p170, %p171
      %p174 = scmp.ne.s32.totalorder %s159, %s173
      %p175 = scmp.eq.s32.totalorder %s30, 0
      %p176 = por %p174, %p175
      %s178 = sadd.s32 %s177, 1
      %p181 = scmp.eq.s32.totalorder %s24, 1
      %p182 = scmp.ne.s32.totalorder %s177, %s179
      %p183 = scmp.eq.s32.totalorder %s24, 0
      %p184 = por %p182, %p183
      %p185 = scmp.ne.s32.totalorder %s177, %s179
      %p186 = scmp.eq.s32.totalorder %s29, 1
      %p187 = por %p185, %p186
      %p188 = scmp.ne.s32.totalorder %s179, %s180
      %p189 = scmp.eq.s32.totalorder %s29, 0
      %p190 = por %p188, %p189
      %p191 = scmp.ne.s32.totalorder %s179, %s180
      %p192 = scmp.eq.s32.totalorder %s30, 1
      %p193 = por %p191, %p192
      %p195 = scmp.ne.s32.totalorder %s180, %s194
      %p196 = scmp.eq.s32.totalorder %s30, 0
      %p197 = por %p195, %p196
      %s199 = sadd.s32 %s198, 1
      %p202 = scmp.eq.s32.totalorder %s24, 1
      %p203 = scmp.ne.s32.totalorder %s198, %s200
      %p204 = scmp.eq.s32.totalorder %s24, 0
      %p205 = por %p203, %p204
      %p206 = scmp.ne.s32.totalorder %s198, %s200
      %p207 = scmp.eq.s32.totalorder %s29, 1
      %p208 = por %p206, %p207
      %p209 = scmp.ne.s32.totalorder %s200, %s201
      %p210 = scmp.eq.s32.totalorder %s29, 0
      %p211 = por %p209, %p210
      %p212 = scmp.ne.s32.totalorder %s200, %s201
      %p213 = scmp.eq.s32.totalorder %s30, 1
      %p214 = por %p212, %p213
      %p216 = scmp.ne.s32.totalorder %s201, %s215
      %p217 = scmp.eq.s32.totalorder %s30, 0
      %p218 = por %p216, %p217
      %s220 = sadd.s32 %s219, 1
      %p223 = scmp.eq.s32.totalorder %s24, 1
      %p224 = scmp.ne.s32.totalorder %s219, %s221
      %p225 = scmp.eq.s32.totalorder %s24, 0
      %p226 = por %p224, %p225
      %p227 = scmp.ne.s32.totalorder %s219, %s221
      %p228 = scmp.eq.s32.totalorder %s29, 1
      %p229 = por %p227, %p228
      %p230 = scmp.ne.s32.totalorder %s221, %s222
      %p231 = scmp.eq.s32.totalorder %s29, 0
      %p232 = por %p230, %p231
      %p233 = scmp.ne.s32.totalorder %s221, %s222
      %p234 = scmp.eq.s32.totalorder %s30, 1
      %p235 = por %p233, %p234
      %p237 = scmp.ne.s32.totalorder %s222, %s236
      %p238 = scmp.eq.s32.totalorder %s30, 0
      %p239 = por %p237, %p238
      %s241 = sadd.s32 %s240, 1
      %p244 = scmp.eq.s32.totalorder %s24, 1
      %p245 = scmp.ne.s32.totalorder %s240, %s242
      %p246 = scmp.eq.s32.totalorder %s24, 0
      %p247 = por %p245, %p246
      %p248 = scmp.ne.s32.totalorder %s240, %s242
      %p249 = scmp.eq.s32.totalorder %s29, 1
      %p250 = por %p248, %p249
      %p251 = scmp.ne.s32.totalorder %s242, %s243
      %p252 = scmp.eq.s32.totalorder %s29, 0
      %p253 = por %p251, %p252
      %p254 = scmp.ne.s32.totalorder %s242, %s243
      %p255 = scmp.eq.s32.totalorder %s30, 1
      %p256 = por %p254, %p255
      %p258 = scmp.ne.s32.totalorder %s243, %s257
      %p259 = scmp.eq.s32.totalorder %s30, 0
      %p260 = por %p258, %p259
      %s262 = sadd.s32 %s261, 1
      %p265 = scmp.eq.s32.totalorder %s24, 1
      %p266 = scmp.ne.s32.totalorder %s261, %s263
      %p267 = scmp.eq.s32.totalorder %s24, 0
      %p268 = por %p266, %p267
      %p269 = scmp.ne.s32.totalorder %s261, %s263
      %p270 = scmp.eq.s32.totalorder %s29, 1
      %p271 = por %p269, %p270
      %p272 = scmp.ne.s32.totalorder %s263, %s264
      %p273 = scmp.eq.s32.totalorder %s29, 0
      %p274 = por %p272, %p273
      %p275 = scmp.ne.s32.totalorder %s263, %s264
      %p276 = scmp.eq.s32.totalorder %s30, 1
      %p277 = por %p275, %p276
      %p279 = scmp.ne.s32.totalorder %s264, %s278
      %p280 = scmp.eq.s32.totalorder %s30, 0
      %p281 = por %p279, %p280
      %s283 = sadd.s32 %s282, 1
      %p286 = scmp.eq.s32.totalorder %s24, 1
      %p287 = scmp.ne.s32.totalorder %s282, %s284
      %p288 = scmp.eq.s32.totalorder %s24, 0
      %p289 = por %p287, %p288
      %p290 = scmp.ne.s32.totalorder %s282, %s284
      %p291 = scmp.eq.s32.totalorder %s29, 1
      %p292 = por %p290, %p291
      %p293 = scmp.ne.s32.totalorder %s284, %s285
      %p294 = scmp.eq.s32.totalorder %s29, 0
      %p295 = por %p293, %p294
      %p296 = scmp.ne.s32.totalorder %s284, %s285
      %p297 = scmp.eq.s32.totalorder %s30, 1
      %p298 = por %p296, %p297
      %p300 = scmp.ne.s32.totalorder %s285, %s299
      %p301 = scmp.eq.s32.totalorder %s30, 0
      %p302 = por %p300, %p301
      %s304 = sadd.s32 %s303, 1
      %p307 = scmp.eq.s32.totalorder %s24, 1
      %p308 = scmp.ne.s32.totalorder %s303, %s305
      %p309 = scmp.eq.s32.totalorder %s24, 0
      %p310 = por %p308, %p309
      %p311 = scmp.ne.s32.totalorder %s303, %s305
      %p312 = scmp.eq.s32.totalorder %s29, 1
      %p313 = por %p311, %p312
      %p314 = scmp.ne.s32.totalorder %s305, %s306
      %p315 = scmp.eq.s32.totalorder %s29, 0
      %p316 = por %p314, %p315
      %p317 = scmp.ne.s32.totalorder %s305, %s306
      %p318 = scmp.eq.s32.totalorder %s30, 1
      %p319 = por %p317, %p318
      %p321 = scmp.ne.s32.totalorder %s306, %s320
      %p322 = scmp.eq.s32.totalorder %s30, 0
      %p323 = por %p321, %p322
      %s324 = ssub.s32 %s31, %s43
      %p325 = scmp.eq.s32.totalorder %s324, 0
      %s327 = sadd.s32 %s326, 1
      %s328 = scalar_select %p325, %s326, %s327
      %p331 = pneg %p325
      %p332 = scmp.eq.s32.totalorder %s24, 1
      %p333 = por %p331, %p332
      %p334 = scmp.ne.s32.totalorder %s326, %s329
      %p335 = scmp.eq.s32.totalorder %s24, 0
      %p336 = por %p334, %p335
      %p337 = scmp.ne.s32.totalorder %s326, %s329
      %p338 = scmp.eq.s32.totalorder %s29, 1
      %p339 = por %p337, %p338
      %p340 = scmp.ne.s32.totalorder %s329, %s330
      %p341 = scmp.eq.s32.totalorder %s29, 0
      %p342 = por %p340, %p341
      %p343 = scmp.ne.s32.totalorder %s329, %s330
      %p344 = scmp.eq.s32.totalorder %s30, 1
      %p345 = por %p343, %p344
      %p347 = scmp.ne.s32.totalorder %s330, %s346
      %p348 = scmp.eq.s32.totalorder %s30, 0
      %p349 = por %p347, %p348
      %p350 = scmp.le.s32.totalorder 1, %s24
      %p351 = scmp.lt.s32.totalorder %s24, 3
      %p352 = pnand %p350, %p351
      %p353 = pneg %p352
      // Predicated region
      $region9: #{tpu_custom_call.1} parent=5 // pred_check
        _
      $region10: #{tpu_custom_call.1} parent=5 // pred_check_branch
        %355 = sbr.rel (%p352) target = $region12
      $region11: #{tpu_custom_call.1} parent=5 // pred_region
        %s356 = ssub.s32 %s24, 1
        // Predicated region
        $region13: #{tpu_custom_call.1} parent=11 // pred_check
          %p357 = pneg %p85
        $region14: #{tpu_custom_call.1} parent=11 // pred_check_branch
          %359 = sbr.rel (%p357) target = $region16
        $region15: #{tpu_custom_call.1} parent=11 // pred_region
          _
        $region16: #{tpu_custom_call.1} parent=11 // pred_fallthru
          _
        // Predicated region
        $region17: #{tpu_custom_call.1} parent=11 // pred_check
          %p360 = pneg %p106
        $region18: #{tpu_custom_call.1} parent=11 // pred_check_branch
          %362 = sbr.rel (%p360) target = $region20
        $region19: #{tpu_custom_call.1} parent=11 // pred_region
          _
        $region20: #{tpu_custom_call.1} parent=11 // pred_fallthru
          _
        // Predicated region
        $region21: #{tpu_custom_call.1} parent=11 // pred_check
          %p363 = pneg %p127
        $region22: #{tpu_custom_call.1} parent=11 // pred_check_branch
          %365 = sbr.rel (%p363) target = $region24
        $region23: #{tpu_custom_call.1} parent=11 // pred_region
          _
        $region24: #{tpu_custom_call.1} parent=11 // pred_fallthru
          _
        // Predicated region
        $region25: #{tpu_custom_call.1} parent=11 // pred_check
          %p366 = pneg %p148
        $region26: #{tpu_custom_call.1} parent=11 // pred_check_branch
          %368 = sbr.rel (%p366) target = $region28
        $region27: #{tpu_custom_call.1} parent=11 // pred_region
          _
        $region28: #{tpu_custom_call.1} parent=11 // pred_fallthru
          _
        // Predicated region
        $region29: #{tpu_custom_call.1} parent=11 // pred_check
          %p369 = pneg %p169
        $region30: #{tpu_custom_call.1} parent=11 // pred_check_branch
          %371 = sbr.rel (%p369) target = $region32
        $region31: #{tpu_custom_call.1} parent=11 // pred_region
          _
        $region32: #{tpu_custom_call.1} parent=11 // pred_fallthru
          _
        // Predicated region
        $region33: #{tpu_custom_call.1} parent=11 // pred_check
          %p372 = pneg %p190
        $region34: #{tpu_custom_call.1} parent=11 // pred_check_branch
          %374 = sbr.rel (%p372) target = $region36
        $region35: #{tpu_custom_call.1} parent=11 // pred_region
          _
        $region36: #{tpu_custom_call.1} parent=11 // pred_fallthru
          _
        // Predicated region
        $region37: #{tpu_custom_call.1} parent=11 // pred_check
          %p375 = pneg %p211
        $region38: #{tpu_custom_call.1} parent=11 // pred_check_branch
          %377 = sbr.rel (%p375) target = $region40
        $region39: #{tpu_custom_call.1} parent=11 // pred_region
          %s379 = ssub.s32 32768, 32768
          %380 = vsyncadd [#allocation4], %s379
          %s381 = sshll.u32 [#allocation3], 4
          %s382 = int_to_ptr.vmem [resolvable:$true] %s381
          %387 = dma.hbm_to_vmem [thread:$0]  %s7, 32768, %s382, [#allocation4], 256, 256, 16
        $region40: #{tpu_custom_call.1} parent=11 // pred_fallthru
          _
        // Predicated region
        $region41: #{tpu_custom_call.1} parent=11 // pred_check
          %p388 = pneg %p232
        $region42: #{tpu_custom_call.1} parent=11 // pred_check_branch
          %390 = sbr.rel (%p388) target = $region44
        $region43: #{tpu_custom_call.1} parent=11 // pred_region
          _
        $region44: #{tpu_custom_call.1} parent=11 // pred_fallthru
          _
        // Predicated region
        $region45: #{tpu_custom_call.1} parent=11 // pred_check
          %p391 = pneg %p253
        $region46: #{tpu_custom_call.1} parent=11 // pred_check_branch
          %393 = sbr.rel (%p391) target = $region48
        $region47: #{tpu_custom_call.1} parent=11 // pred_region
          %s395 = ssub.s32 8192, 8192
          %396 = vsyncadd [#allocation7], %s395
          %s397 = sshll.u32 [#allocation6], 4
          %s398 = int_to_ptr.vmem [resolvable:$true] %s397
          %403 = dma.hbm_to_vmem [thread:$0]  %s9, 8192, %s398, [#allocation7], 128, 128, 8
        $region48: #{tpu_custom_call.1} parent=11 // pred_fallthru
          _
        // Predicated region
        $region49: #{tpu_custom_call.1} parent=11 // pred_check
          %p404 = pneg %p274
        $region50: #{tpu_custom_call.1} parent=11 // pred_check_branch
          %406 = sbr.rel (%p404) target = $region52
        $region51: #{tpu_custom_call.1} parent=11 // pred_region
          _
        $region52: #{tpu_custom_call.1} parent=11 // pred_fallthru
          _
        // Predicated region
        $region53: #{tpu_custom_call.1} parent=11 // pred_check
          %p407 = pneg %p295
        $region54: #{tpu_custom_call.1} parent=11 // pred_check_branch
          %409 = sbr.rel (%p407) target = $region56
        $region55: #{tpu_custom_call.1} parent=11 // pred_region
          _
        $region56: #{tpu_custom_call.1} parent=11 // pred_fallthru
          _
        // Predicated region
        $region57: #{tpu_custom_call.1} parent=11 // pred_check
          %p410 = pneg %p316
        $region58: #{tpu_custom_call.1} parent=11 // pred_check_branch
          %412 = sbr.rel (%p410) target = $region60
        $region59: #{tpu_custom_call.1} parent=11 // pred_region
          _
        $region60: #{tpu_custom_call.1} parent=11 // pred_fallthru
          _
      $region12: #{tpu_custom_call.1} parent=5 // pred_fallthru
        _
      %p413 = scmp.lt.s32.totalorder %s24, 2
      // Predicated region
      $region61: #{tpu_custom_call.1} parent=5 // pred_check
        %p414 = pneg %p413
      $region62: #{tpu_custom_call.1} parent=5 // pred_check_branch
        %416 = sbr.rel (%p414) target = $region64
      $region63: #{tpu_custom_call.1} parent=5 // pred_region
        // Predicated region
        $region65: #{tpu_custom_call.1} parent=63 // pred_check
          %p417 = pneg %p58
        $region66: #{tpu_custom_call.1} parent=63 // pred_check_branch
          %419 = sbr.rel (%p417) target = $region68
        $region67: #{tpu_custom_call.1} parent=63 // pred_region
          %s420 = smul.u32 32, %s32
          %p421 = scmp.lt.s32.totalorder %s31, 1
          %s422 = scalar_select %p421, %s31, 1
          %p423 = scmp.lt.s32.totalorder %s420, 31
          %s424 = scalar_select %p423, %s420, 31
          %s425 = smul.addr %s422, 32
          %s426 = sadd.s32 %s424, %s425
          %s427 = smul.addr %s426, 8
          %s428 = scalar_lea.vmem %s0, %s427
          %s429 = smul.u32 32, %s32
        $region68: #{tpu_custom_call.1} parent=63 // pred_fallthru
          _
      $region64: #{tpu_custom_call.1} parent=5 // pred_fallthru
        _
      %p430 = scmp.le.s32.totalorder 1, %s24
      %p431 = scmp.lt.s32.totalorder %s24, 3
      %p432 = pnand %p430, %p431
      %p433 = pneg %p432
      // Predicated region
      $region69: #{tpu_custom_call.1} parent=5 // pred_check
        _
      $region70: #{tpu_custom_call.1} parent=5 // pred_check_branch
        %435 = sbr.rel (%p432) target = $region72
      $region71: #{tpu_custom_call.1} parent=5 // pred_region
        %s436 = ssub.s32 %s24, 1
        // Predicated region
        $region73: #{tpu_custom_call.1} parent=71 // pred_check
          %p437 = pneg %p211
        $region74: #{tpu_custom_call.1} parent=71 // pred_check_branch
          %439 = sbr.rel (%p437) target = $region76
        $region75: #{tpu_custom_call.1} parent=71 // pred_region
          %440 = dma.done [#allocation4], 32768
        $region76: #{tpu_custom_call.1} parent=71 // pred_fallthru
          _
        // Predicated region
        $region77: #{tpu_custom_call.1} parent=71 // pred_check
          %p441 = pneg %p253
        $region78: #{tpu_custom_call.1} parent=71 // pred_check_branch
          %443 = sbr.rel (%p441) target = $region80
        $region79: #{tpu_custom_call.1} parent=71 // pred_region
          %444 = dma.done [#allocation7], 8192
        $region80: #{tpu_custom_call.1} parent=71 // pred_fallthru
          _
        %s445 = smul.u32 32, %s34
        %p446 = scmp.lt.s32.totalorder %s33, 1
        %s447 = scalar_select %p446, %s33, 1
        %p448 = scmp.lt.s32.totalorder %s445, 31
        %s449 = scalar_select %p448, %s445, 31
        %s450 = smul.addr %s447, 32
        %s451 = sadd.s32 %s449, %s450
        %s452 = smul.addr %s451, 8
        %s453 = scalar_lea.vmem %s0, %s452
        %p454 = pneg %p64
        %p455 = pneg %p61
        %p456 = pneg %p85
        %p457 = pneg %p82
        %p458 = pneg %p106
        %p459 = pneg %p103
        %p460 = pneg %p127
        %p461 = pneg %p124
        %p462 = pneg %p148
        %p463 = pneg %p145
        %p464 = pneg %p169
        %p465 = pneg %p166
        %p466 = pneg %p190
        %p467 = pneg %p187
        %p468 = pneg %p211
        %p469 = pneg %p208
        %p470 = pneg %p232
        %p471 = pneg %p229
        %p472 = pneg %p253
        %p473 = pneg %p250
        %p474 = pneg %p274
        %p475 = pneg %p271
        %p476 = pneg %p295
        %p477 = pneg %p292
        %p478 = pneg %p316
        %p479 = pneg %p313
        %p480 = pneg %p342
        %p481 = pneg %p339
        %s482 = sand.u32 %s329, 1
        %s483 = scalar_lea.sflag [#allocation5], %s482
        %s484 = sand.u32 %s329, 1
        %s485 = scalar_lea.vmem [#allocation8], %s484
        %s486 = smul.u32 32, %s34
        %p487 = scmp.lt.s32.totalorder %s33, 1
        %s488 = scalar_select %p487, %s33, 1
        %p489 = scmp.lt.s32.totalorder %s486, 31
        %s490 = scalar_select %p489, %s486, 31
        %s491 = smul.addr %s488, 32
        %s492 = sadd.s32 %s490, %s491
        %s493 = smul.addr %s492, 8
        %s494 = scalar_lea.vmem %s0, %s493
        %s495 = smul.u32 32, %s34
        %v497 = vld [vmem:[%s494] sm:$0xff]
        %v498 = vld [vmem:[%s494 + $0x8] sm:$0xff]
        %v499 = vld [vmem:[%s494 + $0x10] sm:$0xff]
        %v500 = vld [vmem:[%s494 + $0x18] sm:$0xff]
        %v501 = vld [vmem:[%s494 + $0x20] sm:$0xff]
        %v502 = vld [vmem:[%s494 + $0x28] sm:$0xff]
        %v503 = vld [vmem:[%s494 + $0x30] sm:$0xff]
        %v504 = vld [vmem:[%s494 + $0x38] sm:$0xff]
        %v505 = vld [vmem:[%s494 + $0x40] sm:$0xff]
        %v506 = vld [vmem:[%s494 + $0x48] sm:$0xff]
        %v507 = vld [vmem:[%s494 + $0x50] sm:$0xff]
        %v508 = vld [vmem:[%s494 + $0x58] sm:$0xff]
        %v509 = vld [vmem:[%s494 + $0x60] sm:$0xff]
        %v510 = vld [vmem:[%s494 + $0x68] sm:$0xff]
        %v511 = vld [vmem:[%s494 + $0x70] sm:$0xff]
        %v512 = vld [vmem:[%s494 + $0x78] sm:$0xff]
        %v513 = vld [vmem:[%s494 + $0x80] sm:$0xff]
        %v514 = vld [vmem:[%s494 + $0x88] sm:$0xff]
        %v515 = vld [vmem:[%s494 + $0x90] sm:$0xff]
        %v516 = vld [vmem:[%s494 + $0x98] sm:$0xff]
        %v517 = vld [vmem:[%s494 + $0xa0] sm:$0xff]
        %v518 = vld [vmem:[%s494 + $0xa8] sm:$0xff]
        %v519 = vld [vmem:[%s494 + $0xb0] sm:$0xff]
        %v520 = vld [vmem:[%s494 + $0xb8] sm:$0xff]
        %v521 = vld [vmem:[%s494 + $0xc0] sm:$0xff]
        %v522 = vld [vmem:[%s494 + $0xc8] sm:$0xff]
        %v523 = vld [vmem:[%s494 + $0xd0] sm:$0xff]
        %v524 = vld [vmem:[%s494 + $0xd8] sm:$0xff]
        %v525 = vld [vmem:[%s494 + $0xe0] sm:$0xff]
        %v526 = vld [vmem:[%s494 + $0xe8] sm:$0xff]
        %v527 = vld [vmem:[%s494 + $0xf0] sm:$0xff]
        %v528 = vld [vmem:[%s494 + $0xf8] sm:$0xff]
        %v529 = vld [vmem:[%s1] sm:$0x7]
        %531 = vset.pattern.permute.xlu0 0
        %532 = vperm.xlu0 %531, %v497
        %v533 = vpop.permute.xlu0 %532
        %536 = vset.pattern.permute.xlu0 0
        %537 = vperm.xlu0 %536, %v498
        %v538 = vpop.permute.xlu0 %537
        %541 = vset.pattern.permute.xlu0 0
        %542 = vperm.xlu0 %541, %v499
        %v543 = vpop.permute.xlu0 %542
        %546 = vset.pattern.permute.xlu0 0
        %547 = vperm.xlu0 %546, %v500
        %v548 = vpop.permute.xlu0 %547
        %551 = vset.pattern.permute.xlu0 0
        %552 = vperm.xlu0 %551, %v501
        %v553 = vpop.permute.xlu0 %552
        %556 = vset.pattern.permute.xlu0 0
        %557 = vperm.xlu0 %556, %v502
        %v558 = vpop.permute.xlu0 %557
        %561 = vset.pattern.permute.xlu0 0
        %562 = vperm.xlu0 %561, %v503
        %v563 = vpop.permute.xlu0 %562
        %566 = vset.pattern.permute.xlu0 0
        %567 = vperm.xlu0 %566, %v504
        %v568 = vpop.permute.xlu0 %567
        %571 = vset.pattern.permute.xlu0 0
        %572 = vperm.xlu0 %571, %v505
        %v573 = vpop.permute.xlu0 %572
        %576 = vset.pattern.permute.xlu0 0
        %577 = vperm.xlu0 %576, %v506
        %v578 = vpop.permute.xlu0 %577
        %581 = vset.pattern.permute.xlu0 0
        %582 = vperm.xlu0 %581, %v507
        %v583 = vpop.permute.xlu0 %582
        %586 = vset.pattern.permute.xlu0 0
        %587 = vperm.xlu0 %586, %v508
        %v588 = vpop.permute.xlu0 %587
        %591 = vset.pattern.permute.xlu0 0
        %592 = vperm.xlu0 %591, %v509
        %v593 = vpop.permute.xlu0 %592
        %596 = vset.pattern.permute.xlu0 0
        %597 = vperm.xlu0 %596, %v510
        %v598 = vpop.permute.xlu0 %597
        %601 = vset.pattern.permute.xlu0 0
        %602 = vperm.xlu0 %601, %v511
        %v603 = vpop.permute.xlu0 %602
        %606 = vset.pattern.permute.xlu0 0
        %607 = vperm.xlu0 %606, %v512
        %v608 = vpop.permute.xlu0 %607
        %611 = vset.pattern.permute.xlu0 0
        %612 = vperm.xlu0 %611, %v513
        %v613 = vpop.permute.xlu0 %612
        %616 = vset.pattern.permute.xlu0 0
        %617 = vperm.xlu0 %616, %v514
        %v618 = vpop.permute.xlu0 %617
        %621 = vset.pattern.permute.xlu0 0
        %622 = vperm.xlu0 %621, %v515
        %v623 = vpop.permute.xlu0 %622
        %626 = vset.pattern.permute.xlu0 0
        %627 = vperm.xlu0 %626, %v516
        %v628 = vpop.permute.xlu0 %627
        %631 = vset.pattern.permute.xlu0 0
        %632 = vperm.xlu0 %631, %v517
        %v633 = vpop.permute.xlu0 %632
        %636 = vset.pattern.permute.xlu0 0
        %637 = vperm.xlu0 %636, %v518
        %v638 = vpop.permute.xlu0 %637
        %641 = vset.pattern.permute.xlu0 0
        %642 = vperm.xlu0 %641, %v519
        %v643 = vpop.permute.xlu0 %642
        %646 = vset.pattern.permute.xlu0 0
        %647 = vperm.xlu0 %646, %v520
        %v648 = vpop.permute.xlu0 %647
        %651 = vset.pattern.permute.xlu0 0
        %652 = vperm.xlu0 %651, %v521
        %v653 = vpop.permute.xlu0 %652
        %656 = vset.pattern.permute.xlu0 0
        %657 = vperm.xlu0 %656, %v522
        %v658 = vpop.permute.xlu0 %657
        %661 = vset.pattern.permute.xlu0 0
        %662 = vperm.xlu0 %661, %v523
        %v663 = vpop.permute.xlu0 %662
        %666 = vset.pattern.permute.xlu0 0
        %667 = vperm.xlu0 %666, %v524
        %v668 = vpop.permute.xlu0 %667
        %671 = vset.pattern.permute.xlu0 0
        %672 = vperm.xlu0 %671, %v525
        %v673 = vpop.permute.xlu0 %672
        %676 = vset.pattern.permute.xlu0 0
        %677 = vperm.xlu0 %676, %v526
        %v678 = vpop.permute.xlu0 %677
        %681 = vset.pattern.permute.xlu0 0
        %682 = vperm.xlu0 %681, %v527
        %v683 = vpop.permute.xlu0 %682
        %686 = vset.pattern.permute.xlu0 0
        %687 = vperm.xlu0 %686, %v528
        %v688 = vpop.permute.xlu0 %687
        %v690 = vlaneseq
        %v691 = vshrl.u32 %v690, 7
        %v692 = vsub.s32 0, %v691
        %v693 = vrot.slane %v529, %v692
        %v694 = vmul.f32 %v533, %v693
        %v695 = vmul.f32 %v538, %v693
        %v696 = vmul.f32 %v543, %v693
        %v697 = vmul.f32 %v548, %v693
        %v698 = vmul.f32 %v553, %v693
        %v699 = vmul.f32 %v558, %v693
        %v700 = vmul.f32 %v563, %v693
        %v701 = vmul.f32 %v568, %v693
        %v702 = vmul.f32 %v573, %v693
        %v703 = vmul.f32 %v578, %v693
        %v704 = vmul.f32 %v583, %v693
        %v705 = vmul.f32 %v588, %v693
        %v706 = vmul.f32 %v593, %v693
        %v707 = vmul.f32 %v598, %v693
        %v708 = vmul.f32 %v603, %v693
        %v709 = vmul.f32 %v608, %v693
        %v710 = vmul.f32 %v613, %v693
        %v711 = vmul.f32 %v618, %v693
        %v712 = vmul.f32 %v623, %v693
        %v713 = vmul.f32 %v628, %v693
        %v714 = vmul.f32 %v633, %v693
        %v715 = vmul.f32 %v638, %v693
        %v716 = vmul.f32 %v643, %v693
        %v717 = vmul.f32 %v648, %v693
        %v718 = vmul.f32 %v653, %v693
        %v719 = vmul.f32 %v658, %v693
        %v720 = vmul.f32 %v663, %v693
        %v721 = vmul.f32 %v668, %v693
        %v722 = vmul.f32 %v673, %v693
        %v723 = vmul.f32 %v678, %v693
        %v724 = vmul.f32 %v683, %v693
        %v725 = vmul.f32 %v688, %v693
        %726 = vset.pattern.permute.xlu0 1
        %727 = vperm.xlu0 %726, %v497
        %v728 = vpop.permute.xlu0 %727
        %730 = vset.pattern.permute.xlu0 1
        %731 = vperm.xlu0 %730, %v498
        %v732 = vpop.permute.xlu0 %731
        %734 = vset.pattern.permute.xlu0 1
        %735 = vperm.xlu0 %734, %v499
        %v736 = vpop.permute.xlu0 %735
        %738 = vset.pattern.permute.xlu0 1
        %739 = vperm.xlu0 %738, %v500
        %v740 = vpop.permute.xlu0 %739
        %742 = vset.pattern.permute.xlu0 1
        %743 = vperm.xlu0 %742, %v501
        %v744 = vpop.permute.xlu0 %743
        %746 = vset.pattern.permute.xlu0 1
        %747 = vperm.xlu0 %746, %v502
        %v748 = vpop.permute.xlu0 %747
        %750 = vset.pattern.permute.xlu0 1
        %751 = vperm.xlu0 %750, %v503
        %v752 = vpop.permute.xlu0 %751
        %754 = vset.pattern.permute.xlu0 1
        %755 = vperm.xlu0 %754, %v504
        %v756 = vpop.permute.xlu0 %755
        %758 = vset.pattern.permute.xlu0 1
        %759 = vperm.xlu0 %758, %v505
        %v760 = vpop.permute.xlu0 %759
        %762 = vset.pattern.permute.xlu0 1
        %763 = vperm.xlu0 %762, %v506
        %v764 = vpop.permute.xlu0 %763
        %766 = vset.pattern.permute.xlu0 1
        %767 = vperm.xlu0 %766, %v507
        %v768 = vpop.permute.xlu0 %767
        %770 = vset.pattern.permute.xlu0 1
        %771 = vperm.xlu0 %770, %v508
        %v772 = vpop.permute.xlu0 %771
        %774 = vset.pattern.permute.xlu0 1
        %775 = vperm.xlu0 %774, %v509
        %v776 = vpop.permute.xlu0 %775
        %778 = vset.pattern.permute.xlu0 1
        %779 = vperm.xlu0 %778, %v510
        %v780 = vpop.permute.xlu0 %779
        %782 = vset.pattern.permute.xlu0 1
        %783 = vperm.xlu0 %782, %v511
        %v784 = vpop.permute.xlu0 %783
        %786 = vset.pattern.permute.xlu0 1
        %787 = vperm.xlu0 %786, %v512
        %v788 = vpop.permute.xlu0 %787
        %790 = vset.pattern.permute.xlu0 1
        %791 = vperm.xlu0 %790, %v513
        %v792 = vpop.permute.xlu0 %791
        %794 = vset.pattern.permute.xlu0 1
        %795 = vperm.xlu0 %794, %v514
        %v796 = vpop.permute.xlu0 %795
        %798 = vset.pattern.permute.xlu0 1
        %799 = vperm.xlu0 %798, %v515
        %v800 = vpop.permute.xlu0 %799
        %802 = vset.pattern.permute.xlu0 1
        %803 = vperm.xlu0 %802, %v516
        %v804 = vpop.permute.xlu0 %803
        %806 = vset.pattern.permute.xlu0 1
        %807 = vperm.xlu0 %806, %v517
        %v808 = vpop.permute.xlu0 %807
        %810 = vset.pattern.permute.xlu0 1
        %811 = vperm.xlu0 %810, %v518
        %v812 = vpop.permute.xlu0 %811
        %814 = vset.pattern.permute.xlu0 1
        %815 = vperm.xlu0 %814, %v519
        %v816 = vpop.permute.xlu0 %815
        %818 = vset.pattern.permute.xlu0 1
        %819 = vperm.xlu0 %818, %v520
        %v820 = vpop.permute.xlu0 %819
        %822 = vset.pattern.permute.xlu0 1
        %823 = vperm.xlu0 %822, %v521
        %v824 = vpop.permute.xlu0 %823
        %826 = vset.pattern.permute.xlu0 1
        %827 = vperm.xlu0 %826, %v522
        %v828 = vpop.permute.xlu0 %827
        %830 = vset.pattern.permute.xlu0 1
        %831 = vperm.xlu0 %830, %v523
        %v832 = vpop.permute.xlu0 %831
        %834 = vset.pattern.permute.xlu0 1
        %835 = vperm.xlu0 %834, %v524
        %v836 = vpop.permute.xlu0 %835
        %838 = vset.pattern.permute.xlu0 1
        %839 = vperm.xlu0 %838, %v525
        %v840 = vpop.permute.xlu0 %839
        %842 = vset.pattern.permute.xlu0 1
        %843 = vperm.xlu0 %842, %v526
        %v844 = vpop.permute.xlu0 %843
        %846 = vset.pattern.permute.xlu0 1
        %847 = vperm.xlu0 %846, %v527
        %v848 = vpop.permute.xlu0 %847
        %850 = vset.pattern.permute.xlu0 1
        %851 = vperm.xlu0 %850, %v528
        %v852 = vpop.permute.xlu0 %851
        %v854 = vlaneseq
        %v855 = vshrl.u32 %v854, 7
        %v856 = vsub.s32 1, %v855
        %v857 = vrot.slane %v529, %v856
        %v858 = vmul.f32 %v728, %v857
        %v859 = vmul.f32 %v732, %v857
        %v860 = vmul.f32 %v736, %v857
        %v861 = vmul.f32 %v740, %v857
        %v862 = vmul.f32 %v744, %v857
        %v863 = vmul.f32 %v748, %v857
        %v864 = vmul.f32 %v752, %v857
        %v865 = vmul.f32 %v756, %v857
        %v866 = vmul.f32 %v760, %v857
        %v867 = vmul.f32 %v764, %v857
        %v868 = vmul.f32 %v768, %v857
        %v869 = vmul.f32 %v772, %v857
        %v870 = vmul.f32 %v776, %v857
        %v871 = vmul.f32 %v780, %v857
        %v872 = vmul.f32 %v784, %v857
        %v873 = vmul.f32 %v788, %v857
        %v874 = vmul.f32 %v792, %v857
        %v875 = vmul.f32 %v796, %v857
        %v876 = vmul.f32 %v800, %v857
        %v877 = vmul.f32 %v804, %v857
        %v878 = vmul.f32 %v808, %v857
        %v879 = vmul.f32 %v812, %v857
        %v880 = vmul.f32 %v816, %v857
        %v881 = vmul.f32 %v820, %v857
        %v882 = vmul.f32 %v824, %v857
        %v883 = vmul.f32 %v828, %v857
        %v884 = vmul.f32 %v832, %v857
        %v885 = vmul.f32 %v836, %v857
        %v886 = vmul.f32 %v840, %v857
        %v887 = vmul.f32 %v844, %v857
        %v888 = vmul.f32 %v848, %v857
        %v889 = vmul.f32 %v852, %v857
        %v890 = vadd.f32 %v694, %v858
        %v891 = vadd.f32 %v695, %v859
        %v892 = vadd.f32 %v696, %v860
        %v893 = vadd.f32 %v697, %v861
        %v894 = vadd.f32 %v698, %v862
        %v895 = vadd.f32 %v699, %v863
        %v896 = vadd.f32 %v700, %v864
        %v897 = vadd.f32 %v701, %v865
        %v898 = vadd.f32 %v702, %v866
        %v899 = vadd.f32 %v703, %v867
        %v900 = vadd.f32 %v704, %v868
        %v901 = vadd.f32 %v705, %v869
        %v902 = vadd.f32 %v706, %v870
        %v903 = vadd.f32 %v707, %v871
        %v904 = vadd.f32 %v708, %v872
        %v905 = vadd.f32 %v709, %v873
        %v906 = vadd.f32 %v710, %v874
        %v907 = vadd.f32 %v711, %v875
        %v908 = vadd.f32 %v712, %v876
        %v909 = vadd.f32 %v713, %v877
        %v910 = vadd.f32 %v714, %v878
        %v911 = vadd.f32 %v715, %v879
        %v912 = vadd.f32 %v716, %v880
        %v913 = vadd.f32 %v717, %v881
        %v914 = vadd.f32 %v718, %v882
        %v915 = vadd.f32 %v719, %v883
        %v916 = vadd.f32 %v720, %v884
        %v917 = vadd.f32 %v721, %v885
        %v918 = vadd.f32 %v722, %v886
        %v919 = vadd.f32 %v723, %v887
        %v920 = vadd.f32 %v724, %v888
        %v921 = vadd.f32 %v725, %v889
        %922 = vset.pattern.permute.xlu0 2
        %923 = vperm.xlu0 %922, %v497
        %v924 = vpop.permute.xlu0 %923
        %926 = vset.pattern.permute.xlu0 2
        %927 = vperm.xlu0 %926, %v498
        %v928 = vpop.permute.xlu0 %927
        %930 = vset.pattern.permute.xlu0 2
        %931 = vperm.xlu0 %930, %v499
        %v932 = vpop.permute.xlu0 %931
        %934 = vset.pattern.permute.xlu0 2
        %935 = vperm.xlu0 %934, %v500
        %v936 = vpop.permute.xlu0 %935
        %938 = vset.pattern.permute.xlu0 2
        %939 = vperm.xlu0 %938, %v501
        %v940 = vpop.permute.xlu0 %939
        %942 = vset.pattern.permute.xlu0 2
        %943 = vperm.xlu0 %942, %v502
        %v944 = vpop.permute.xlu0 %943
        %946 = vset.pattern.permute.xlu0 2
        %947 = vperm.xlu0 %946, %v503
        %v948 = vpop.permute.xlu0 %947
        %950 = vset.pattern.permute.xlu0 2
        %951 = vperm.xlu0 %950, %v504
        %v952 = vpop.permute.xlu0 %951
        %954 = vset.pattern.permute.xlu0 2
        %955 = vperm.xlu0 %954, %v505
        %v956 = vpop.permute.xlu0 %955
        %958 = vset.pattern.permute.xlu0 2
        %959 = vperm.xlu0 %958, %v506
        %v960 = vpop.permute.xlu0 %959
        %962 = vset.pattern.permute.xlu0 2
        %963 = vperm.xlu0 %962, %v507
        %v964 = vpop.permute.xlu0 %963
        %966 = vset.pattern.permute.xlu0 2
        %967 = vperm.xlu0 %966, %v508
        %v968 = vpop.permute.xlu0 %967
        %970 = vset.pattern.permute.xlu0 2
        %971 = vperm.xlu0 %970, %v509
        %v972 = vpop.permute.xlu0 %971
        %974 = vset.pattern.permute.xlu0 2
        %975 = vperm.xlu0 %974, %v510
        %v976 = vpop.permute.xlu0 %975
        %978 = vset.pattern.permute.xlu0 2
        %979 = vperm.xlu0 %978, %v511
        %v980 = vpop.permute.xlu0 %979
        %982 = vset.pattern.permute.xlu0 2
        %983 = vperm.xlu0 %982, %v512
        %v984 = vpop.permute.xlu0 %983
        %986 = vset.pattern.permute.xlu0 2
        %987 = vperm.xlu0 %986, %v513
        %v988 = vpop.permute.xlu0 %987
        %990 = vset.pattern.permute.xlu0 2
        %991 = vperm.xlu0 %990, %v514
        %v992 = vpop.permute.xlu0 %991
        %994 = vset.pattern.permute.xlu0 2
        %995 = vperm.xlu0 %994, %v515
        %v996 = vpop.permute.xlu0 %995
        %998 = vset.pattern.permute.xlu0 2
        %999 = vperm.xlu0 %998, %v516
        %v1000 = vpop.permute.xlu0 %999
        %1002 = vset.pattern.permute.xlu0 2
        %1003 = vperm.xlu0 %1002, %v517
        %v1004 = vpop.permute.xlu0 %1003
        %1006 = vset.pattern.permute.xlu0 2
        %1007 = vperm.xlu0 %1006, %v518
        %v1008 = vpop.permute.xlu0 %1007
        %1010 = vset.pattern.permute.xlu0 2
        %1011 = vperm.xlu0 %1010, %v519
        %v1012 = vpop.permute.xlu0 %1011
        %1014 = vset.pattern.permute.xlu0 2
        %1015 = vperm.xlu0 %1014, %v520
        %v1016 = vpop.permute.xlu0 %1015
        %1018 = vset.pattern.permute.xlu0 2
        %1019 = vperm.xlu0 %1018, %v521
        %v1020 = vpop.permute.xlu0 %1019
        %1022 = vset.pattern.permute.xlu0 2
        %1023 = vperm.xlu0 %1022, %v522
        %v1024 = vpop.permute.xlu0 %1023
        %1026 = vset.pattern.permute.xlu0 2
        %1027 = vperm.xlu0 %1026, %v523
        %v1028 = vpop.permute.xlu0 %1027
        %1030 = vset.pattern.permute.xlu0 2
        %1031 = vperm.xlu0 %1030, %v524
        %v1032 = vpop.permute.xlu0 %1031
        %1034 = vset.pattern.permute.xlu0 2
        %1035 = vperm.xlu0 %1034, %v525
        %v1036 = vpop.permute.xlu0 %1035
        %1038 = vset.pattern.permute.xlu0 2
        %1039 = vperm.xlu0 %1038, %v526
        %v1040 = vpop.permute.xlu0 %1039
        %1042 = vset.pattern.permute.xlu0 2
        %1043 = vperm.xlu0 %1042, %v527
        %v1044 = vpop.permute.xlu0 %1043
        %1046 = vset.pattern.permute.xlu0 2
        %1047 = vperm.xlu0 %1046, %v528
        %v1048 = vpop.permute.xlu0 %1047
        %v1050 = vlaneseq
        %v1051 = vshrl.u32 %v1050, 7
        %v1052 = vsub.s32 2, %v1051
        %v1053 = vrot.slane %v529, %v1052
        %v1054 = vmul.f32 %v924, %v1053
        %v1055 = vmul.f32 %v928, %v1053
        %v1056 = vmul.f32 %v932, %v1053
        %v1057 = vmul.f32 %v936, %v1053
        %v1058 = vmul.f32 %v940, %v1053
        %v1059 = vmul.f32 %v944, %v1053
        %v1060 = vmul.f32 %v948, %v1053
        %v1061 = vmul.f32 %v952, %v1053
        %v1062 = vmul.f32 %v956, %v1053
        %v1063 = vmul.f32 %v960, %v1053
        %v1064 = vmul.f32 %v964, %v1053
        %v1065 = vmul.f32 %v968, %v1053
        %v1066 = vmul.f32 %v972, %v1053
        %v1067 = vmul.f32 %v976, %v1053
        %v1068 = vmul.f32 %v980, %v1053
        %v1069 = vmul.f32 %v984, %v1053
        %v1070 = vmul.f32 %v988, %v1053
        %v1071 = vmul.f32 %v992, %v1053
        %v1072 = vmul.f32 %v996, %v1053
        %v1073 = vmul.f32 %v1000, %v1053
        %v1074 = vmul.f32 %v1004, %v1053
        %v1075 = vmul.f32 %v1008, %v1053
        %v1076 = vmul.f32 %v1012, %v1053
        %v1077 = vmul.f32 %v1016, %v1053
        %v1078 = vmul.f32 %v1020, %v1053
        %v1079 = vmul.f32 %v1024, %v1053
        %v1080 = vmul.f32 %v1028, %v1053
        %v1081 = vmul.f32 %v1032, %v1053
        %v1082 = vmul.f32 %v1036, %v1053
        %v1083 = vmul.f32 %v1040, %v1053
        %v1084 = vmul.f32 %v1044, %v1053
        %v1085 = vmul.f32 %v1048, %v1053
        %v1086 = vadd.f32 %v890, %v1054
        %v1087 = vadd.f32 %v891, %v1055
        %v1088 = vadd.f32 %v892, %v1056
        %v1089 = vadd.f32 %v893, %v1057
        %v1090 = vadd.f32 %v894, %v1058
        %v1091 = vadd.f32 %v895, %v1059
        %v1092 = vadd.f32 %v896, %v1060
        %v1093 = vadd.f32 %v897, %v1061
        %v1094 = vadd.f32 %v898, %v1062
        %v1095 = vadd.f32 %v899, %v1063
        %v1096 = vadd.f32 %v900, %v1064
        %v1097 = vadd.f32 %v901, %v1065
        %v1098 = vadd.f32 %v902, %v1066
        %v1099 = vadd.f32 %v903, %v1067
        %v1100 = vadd.f32 %v904, %v1068
        %v1101 = vadd.f32 %v905, %v1069
        %v1102 = vadd.f32 %v906, %v1070
        %v1103 = vadd.f32 %v907, %v1071
        %v1104 = vadd.f32 %v908, %v1072
        %v1105 = vadd.f32 %v909, %v1073
        %v1106 = vadd.f32 %v910, %v1074
        %v1107 = vadd.f32 %v911, %v1075
        %v1108 = vadd.f32 %v912, %v1076
        %v1109 = vadd.f32 %v913, %v1077
        %v1110 = vadd.f32 %v914, %v1078
        %v1111 = vadd.f32 %v915, %v1079
        %v1112 = vadd.f32 %v916, %v1080
        %v1113 = vadd.f32 %v917, %v1081
        %v1114 = vadd.f32 %v918, %v1082
        %v1115 = vadd.f32 %v919, %v1083
        %v1116 = vadd.f32 %v920, %v1084
        %v1117 = vadd.f32 %v921, %v1085
        %v1118 = vld [vmem:[%s2] sm:$0x1]
        %v1120 = vlaneseq
        %v1121 = vshrl.u32 %v1120, 7
        %v1122 = vsub.s32 0, %v1121
        %v1123 = vrot.slane %v1118, %v1122
        %v1125 = vadd.f32 %v1086, %v1123
        %v1126 = vadd.f32 %v1087, %v1123
        %v1127 = vadd.f32 %v1088, %v1123
        %v1128 = vadd.f32 %v1089, %v1123
        %v1129 = vadd.f32 %v1090, %v1123
        %v1130 = vadd.f32 %v1091, %v1123
        %v1131 = vadd.f32 %v1092, %v1123
        %v1132 = vadd.f32 %v1093, %v1123
        %v1133 = vadd.f32 %v1094, %v1123
        %v1134 = vadd.f32 %v1095, %v1123
        %v1135 = vadd.f32 %v1096, %v1123
        %v1136 = vadd.f32 %v1097, %v1123
        %v1137 = vadd.f32 %v1098, %v1123
        %v1138 = vadd.f32 %v1099, %v1123
        %v1139 = vadd.f32 %v1100, %v1123
        %v1140 = vadd.f32 %v1101, %v1123
        %v1141 = vadd.f32 %v1102, %v1123
        %v1142 = vadd.f32 %v1103, %v1123
        %v1143 = vadd.f32 %v1104, %v1123
        %v1144 = vadd.f32 %v1105, %v1123
        %v1145 = vadd.f32 %v1106, %v1123
        %v1146 = vadd.f32 %v1107, %v1123
        %v1147 = vadd.f32 %v1108, %v1123
        %v1148 = vadd.f32 %v1109, %v1123
        %v1149 = vadd.f32 %v1110, %v1123
        %v1150 = vadd.f32 %v1111, %v1123
        %v1151 = vadd.f32 %v1112, %v1123
        %v1152 = vadd.f32 %v1113, %v1123
        %v1153 = vadd.f32 %v1114, %v1123
        %v1154 = vadd.f32 %v1115, %v1123
        %v1155 = vadd.f32 %v1116, %v1123
        %v1156 = vadd.f32 %v1117, %v1123
        %v1157 = vmax.f32 %v1125, 0.0
        %v1158 = vmax.f32 %v1126, 0.0
        %v1159 = vmax.f32 %v1127, 0.0
        %v1160 = vmax.f32 %v1128, 0.0
        %v1161 = vmax.f32 %v1129, 0.0
        %v1162 = vmax.f32 %v1130, 0.0
        %v1163 = vmax.f32 %v1131, 0.0
        %v1164 = vmax.f32 %v1132, 0.0
        %v1165 = vmax.f32 %v1133, 0.0
        %v1166 = vmax.f32 %v1134, 0.0
        %v1167 = vmax.f32 %v1135, 0.0
        %v1168 = vmax.f32 %v1136, 0.0
        %v1169 = vmax.f32 %v1137, 0.0
        %v1170 = vmax.f32 %v1138, 0.0
        %v1171 = vmax.f32 %v1139, 0.0
        %v1172 = vmax.f32 %v1140, 0.0
        %v1173 = vmax.f32 %v1141, 0.0
        %v1174 = vmax.f32 %v1142, 0.0
        %v1175 = vmax.f32 %v1143, 0.0
        %v1176 = vmax.f32 %v1144, 0.0
        %v1177 = vmax.f32 %v1145, 0.0
        %v1178 = vmax.f32 %v1146, 0.0
        %v1179 = vmax.f32 %v1147, 0.0
        %v1180 = vmax.f32 %v1148, 0.0
        %v1181 = vmax.f32 %v1149, 0.0
        %v1182 = vmax.f32 %v1150, 0.0
        %v1183 = vmax.f32 %v1151, 0.0
        %v1184 = vmax.f32 %v1152, 0.0
        %v1185 = vmax.f32 %v1153, 0.0
        %v1186 = vmax.f32 %v1154, 0.0
        %v1187 = vmax.f32 %v1155, 0.0
        %v1188 = vmax.f32 %v1156, 0.0
        %v1189 = vpack.c.bf16 %v1158, %v1157
        %v1190 = vpack.c.bf16 %v1160, %v1159
        %v1191 = vpack.c.bf16 %v1162, %v1161
        %v1192 = vpack.c.bf16 %v1164, %v1163
        %v1193 = vpack.c.bf16 %v1166, %v1165
        %v1194 = vpack.c.bf16 %v1168, %v1167
        %v1195 = vpack.c.bf16 %v1170, %v1169
        %v1196 = vpack.c.bf16 %v1172, %v1171
        %v1197 = vpack.c.bf16 %v1174, %v1173
        %v1198 = vpack.c.bf16 %v1176, %v1175
        %v1199 = vpack.c.bf16 %v1178, %v1177
        %v1200 = vpack.c.bf16 %v1180, %v1179
        %v1201 = vpack.c.bf16 %v1182, %v1181
        %v1202 = vpack.c.bf16 %v1184, %v1183
        %v1203 = vpack.c.bf16 %v1186, %v1185
        %v1204 = vpack.c.bf16 %v1188, %v1187
        %v1205 = vld [vmem:[%s3] sm:$0xf]
        %v1206 = vld [vmem:[%s3 + $0x4] sm:$0xf]
        %v1207 = vld [vmem:[%s3 + $0x8] sm:$0xf]
        %v1208 = vld [vmem:[%s3 + $0xc] sm:$0xf]
        %v1209 = vld [vmem:[%s3 + $0x10] sm:$0xf]
        %v1210 = vld [vmem:[%s3 + $0x14] sm:$0xf]
        %v1211 = vld [vmem:[%s3 + $0x18] sm:$0xf]
        %v1212 = vld [vmem:[%s3 + $0x1c] sm:$0xf]
        %v1213 = vld [vmem:[%s4] sm:$0x1]
        %v1215 = vlaneseq
        %v1216 = vshrl.u32 %v1215, 7
        %v1217 = vsub.s32 0, %v1216
        %v1218 = vrot.slane %v1213, %v1217
        %v1228 = vunpack.c.l.b16 %v1205
        %v1229 = vunpack.c.l.b16 %v1206
        %v1230 = vunpack.c.l.b16 %v1207
        %v1231 = vunpack.c.l.b16 %v1208
        %v1232 = vunpack.c.l.b16 %v1209
        %v1233 = vunpack.c.l.b16 %v1210
        %v1234 = vunpack.c.l.b16 %v1211
        %v1235 = vunpack.c.l.b16 %v1212
        %v1236 = vpack.c.b16 %v1229, %v1228
        %v1237 = vpack.c.b16 %v1231, %v1230
        %v1238 = vpack.c.b16 %v1233, %v1232
        %v1239 = vpack.c.b16 %v1235, %v1234
        %vm1244 = vcmask 523264
        %v1246 = vsel %vm1244, %v1189, 0
        %v1249 = vsel %vm1244, %v1190, 0
        %v1252 = vsel %vm1244, %v1191, 0
        %v1255 = vsel %vm1244, %v1192, 0
        %v1258 = vsel %vm1244, %v1193, 0
        %v1261 = vsel %vm1244, %v1194, 0
        %v1264 = vsel %vm1244, %v1195, 0
        %v1267 = vsel %vm1244, %v1196, 0
        %v1270 = vsel %vm1244, %v1197, 0
        %v1273 = vsel %vm1244, %v1198, 0
        %v1276 = vsel %vm1244, %v1199, 0
        %v1279 = vsel %vm1244, %v1200, 0
        %v1282 = vsel %vm1244, %v1201, 0
        %v1285 = vsel %vm1244, %v1202, 0
        %v1288 = vsel %vm1244, %v1203, 0
        %v1291 = vsel %vm1244, %v1204, 0
        %1293 = vmatprep.subr.bf16.mxu0 0
        %1294 = vmatpush1.bf16.msra.mxu0 %v1236
        %1295 = vmatprep.subr.bf16.mxu0 0
        %1296 = vmatpush1.bf16.msra.mxu0 %v1237
        %1297 = vmatprep.subr.bf16.mxu0 0
        %1298 = vmatpush1.bf16.msra.mxu0 %v1238
        %1299 = vmatprep.subr.bf16.mxu0 0
        %1300 = vmatpush1.bf16.msra.mxu0 %v1239
        %1301 = vmatprep.subr.bf16.mxu0 0
        %1302 = vmatpush1.bf16.msra.mxu0 0
        %1303 = vmatprep.subr.bf16.mxu0 0
        %1304 = vmatpush1.bf16.msra.mxu0 0
        %1305 = vmatprep.subr.bf16.mxu0 0
        %1306 = vmatpush1.bf16.msra.mxu0 0
        %1307 = vmatprep.subr.bf16.mxu0 0
        %1308 = vmatpush1.bf16.msra.mxu0 0
        %1309 = vmatprep.subr.bf16.mxu0 0
        %1310 = vmatpush1.bf16.msra.mxu0 0
        %1311 = vmatprep.subr.bf16.mxu0 0
        %1312 = vmatpush1.bf16.msra.mxu0 0
        %1313 = vmatprep.subr.bf16.mxu0 0
        %1314 = vmatpush1.bf16.msra.mxu0 0
        %1315 = vmatprep.subr.bf16.mxu0 0
        %1316 = vmatpush1.bf16.msra.mxu0 0
        %1317 = vmatprep.subr.bf16.mxu0 0
        %1318 = vmatpush1.bf16.msra.mxu0 0
        %1319 = vmatprep.subr.bf16.mxu0 0
        %1320 = vmatpush1.bf16.msra.mxu0 0
        %1321 = vmatprep.subr.bf16.mxu0 0
        %1322 = vmatpush1.bf16.msra.mxu0 0
        %1323 = vmatprep.subr.bf16.mxu0 0
        %1324 = vmatpush1.bf16.msra.mxu0 0
        %1325 = vmatprep.mubr.bf16.mxu0 0
        %1326 = vmatmul.mubr.bf16.gmra.mrb[0].mxu0 %v1246
        %v1327 = vpop.f32.mrb[0].mxu0
        %v1328 = vadd.f32 %v1218, %v1327
        %v1329 = vpop.f32.mrb[0].mxu0
        %v1330 = vpop.f32.mrb[0].mxu0
        %v1331 = vadd.f32 %v1218, %v1330
        %v1332 = vpop.f32.mrb[0].mxu0
        %1333 = vmatprep.mubr.bf16.mxu0 0
        %1334 = vmatmul.mubr.bf16.gmra.mrb[0].mxu0 %v1249
        %v1335 = vpop.f32.mrb[0].mxu0
        %v1336 = vadd.f32 %v1218, %v1335
        %v1337 = vpop.f32.mrb[0].mxu0
        %v1338 = vpop.f32.mrb[0].mxu0
        %v1339 = vadd.f32 %v1218, %v1338
        %v1340 = vpop.f32.mrb[0].mxu0
        %1341 = vmatprep.mubr.bf16.mxu0 0
        %1342 = vmatmul.mubr.bf16.gmra.mrb[0].mxu0 %v1252
        %v1343 = vpop.f32.mrb[0].mxu0
        %v1344 = vadd.f32 %v1218, %v1343
        %v1345 = vpop.f32.mrb[0].mxu0
        %v1346 = vpop.f32.mrb[0].mxu0
        %v1347 = vadd.f32 %v1218, %v1346
        %v1348 = vpop.f32.mrb[0].mxu0
        %1349 = vmatprep.mubr.bf16.mxu0 0
        %1350 = vmatmul.mubr.bf16.gmra.mrb[0].mxu0 %v1255
        %v1351 = vpop.f32.mrb[0].mxu0
        %v1352 = vadd.f32 %v1218, %v1351
        %v1353 = vpop.f32.mrb[0].mxu0
        %v1354 = vpop.f32.mrb[0].mxu0
        %v1355 = vadd.f32 %v1218, %v1354
        %v1356 = vpop.f32.mrb[0].mxu0
        %1357 = vmatprep.mubr.bf16.mxu0 0
        %1358 = vmatmul.mubr.bf16.gmra.mrb[0].mxu0 %v1258
        %v1359 = vpop.f32.mrb[0].mxu0
        %v1360 = vadd.f32 %v1218, %v1359
        %v1361 = vpop.f32.mrb[0].mxu0
        %v1362 = vpop.f32.mrb[0].mxu0
        %v1363 = vadd.f32 %v1218, %v1362
        %v1364 = vpop.f32.mrb[0].mxu0
        %1365 = vmatprep.mubr.bf16.mxu0 0
        %1366 = vmatmul.mubr.bf16.gmra.mrb[0].mxu0 %v1261
        %v1367 = vpop.f32.mrb[0].mxu0
        %v1368 = vadd.f32 %v1218, %v1367
        %v1369 = vpop.f32.mrb[0].mxu0
        %v1370 = vpop.f32.mrb[0].mxu0
        %v1371 = vadd.f32 %v1218, %v1370
        %v1372 = vpop.f32.mrb[0].mxu0
        %1373 = vmatprep.mubr.bf16.mxu0 0
        %1374 = vmatmul.mubr.bf16.gmra.mrb[0].mxu0 %v1264
        %v1375 = vpop.f32.mrb[0].mxu0
        %v1376 = vadd.f32 %v1218, %v1375
        %v1377 = vpop.f32.mrb[0].mxu0
        %v1378 = vpop.f32.mrb[0].mxu0
        %v1379 = vadd.f32 %v1218, %v1378
        %v1380 = vpop.f32.mrb[0].mxu0
        %1381 = vmatprep.mubr.bf16.mxu0 0
        %1382 = vmatmul.mubr.bf16.gmra.mrb[0].mxu0 %v1267
        %v1383 = vpop.f32.mrb[0].mxu0
        %v1384 = vadd.f32 %v1218, %v1383
        %v1385 = vpop.f32.mrb[0].mxu0
        %v1386 = vpop.f32.mrb[0].mxu0
        %v1387 = vadd.f32 %v1218, %v1386
        %v1388 = vpop.f32.mrb[0].mxu0
        %1389 = vmatprep.mubr.bf16.mxu0 0
        %1390 = vmatmul.mubr.bf16.gmra.mrb[0].mxu0 %v1270
        %v1391 = vpop.f32.mrb[0].mxu0
        %v1392 = vadd.f32 %v1218, %v1391
        %v1393 = vpop.f32.mrb[0].mxu0
        %v1394 = vpop.f32.mrb[0].mxu0
        %v1395 = vadd.f32 %v1218, %v1394
        %v1396 = vpop.f32.mrb[0].mxu0
        %1397 = vmatprep.mubr.bf16.mxu0 0
        %1398 = vmatmul.mubr.bf16.gmra.mrb[0].mxu0 %v1273
        %v1399 = vpop.f32.mrb[0].mxu0
        %v1400 = vadd.f32 %v1218, %v1399
        %v1401 = vpop.f32.mrb[0].mxu0
        %v1402 = vpop.f32.mrb[0].mxu0
        %v1403 = vadd.f32 %v1218, %v1402
        %v1404 = vpop.f32.mrb[0].mxu0
        %1405 = vmatprep.mubr.bf16.mxu0 0
        %1406 = vmatmul.mubr.bf16.gmra.mrb[0].mxu0 %v1276
        %v1407 = vpop.f32.mrb[0].mxu0
        %v1408 = vadd.f32 %v1218, %v1407
        %v1409 = vpop.f32.mrb[0].mxu0
        %v1410 = vpop.f32.mrb[0].mxu0
        %v1411 = vadd.f32 %v1218, %v1410
        %v1412 = vpop.f32.mrb[0].mxu0
        %1413 = vmatprep.mubr.bf16.mxu0 0
        %1414 = vmatmul.mubr.bf16.gmra.mrb[0].mxu0 %v1279
        %v1415 = vpop.f32.mrb[0].mxu0
        %v1416 = vadd.f32 %v1218, %v1415
        %v1417 = vpop.f32.mrb[0].mxu0
        %v1418 = vpop.f32.mrb[0].mxu0
        %v1419 = vadd.f32 %v1218, %v1418
        %v1420 = vpop.f32.mrb[0].mxu0
        %1421 = vmatprep.mubr.bf16.mxu0 0
        %1422 = vmatmul.mubr.bf16.gmra.mrb[0].mxu0 %v1282
        %v1423 = vpop.f32.mrb[0].mxu0
        %v1424 = vadd.f32 %v1218, %v1423
        %v1425 = vpop.f32.mrb[0].mxu0
        %v1426 = vpop.f32.mrb[0].mxu0
        %v1427 = vadd.f32 %v1218, %v1426
        %v1428 = vpop.f32.mrb[0].mxu0
        %1429 = vmatprep.mubr.bf16.mxu0 0
        %1430 = vmatmul.mubr.bf16.gmra.mrb[0].mxu0 %v1285
        %v1431 = vpop.f32.mrb[0].mxu0
        %v1432 = vadd.f32 %v1218, %v1431
        %v1433 = vpop.f32.mrb[0].mxu0
        %v1434 = vpop.f32.mrb[0].mxu0
        %v1435 = vadd.f32 %v1218, %v1434
        %v1436 = vpop.f32.mrb[0].mxu0
        %1437 = vmatprep.mubr.bf16.mxu0 0
        %1438 = vmatmul.mubr.bf16.gmra.mrb[0].mxu0 %v1288
        %v1439 = vpop.f32.mrb[0].mxu0
        %v1440 = vadd.f32 %v1218, %v1439
        %v1441 = vpop.f32.mrb[0].mxu0
        %v1442 = vpop.f32.mrb[0].mxu0
        %v1443 = vadd.f32 %v1218, %v1442
        %v1444 = vpop.f32.mrb[0].mxu0
        %1445 = vmatprep.mubr.bf16.mxu0 0
        %1446 = vmatmul.mubr.bf16.gmra.mrb[0].mxu0 %v1291
        %v1447 = vpop.f32.mrb[0].mxu0
        %v1448 = vadd.f32 %v1218, %v1447
        %v1449 = vpop.f32.mrb[0].mxu0
        %v1450 = vpop.f32.mrb[0].mxu0
        %v1451 = vadd.f32 %v1218, %v1450
        %v1452 = vpop.f32.mrb[0].mxu0
        %1453 = vdwg.mxu0
        %v1454 = vmax.f32 %v1328, 0.0
        %v1455 = vmax.f32 %v1331, 0.0
        %v1456 = vmax.f32 %v1336, 0.0
        %v1457 = vmax.f32 %v1339, 0.0
        %v1458 = vmax.f32 %v1344, 0.0
        %v1459 = vmax.f32 %v1347, 0.0
        %v1460 = vmax.f32 %v1352, 0.0
        %v1461 = vmax.f32 %v1355, 0.0
        %v1462 = vmax.f32 %v1360, 0.0
        %v1463 = vmax.f32 %v1363, 0.0
        %v1464 = vmax.f32 %v1368, 0.0
        %v1465 = vmax.f32 %v1371, 0.0
        %v1466 = vmax.f32 %v1376, 0.0
        %v1467 = vmax.f32 %v1379, 0.0
        %v1468 = vmax.f32 %v1384, 0.0
        %v1469 = vmax.f32 %v1387, 0.0
        %v1470 = vmax.f32 %v1392, 0.0
        %v1471 = vmax.f32 %v1395, 0.0
        %v1472 = vmax.f32 %v1400, 0.0
        %v1473 = vmax.f32 %v1403, 0.0
        %v1474 = vmax.f32 %v1408, 0.0
        %v1475 = vmax.f32 %v1411, 0.0
        %v1476 = vmax.f32 %v1416, 0.0
        %v1477 = vmax.f32 %v1419, 0.0
        %v1478 = vmax.f32 %v1424, 0.0
        %v1479 = vmax.f32 %v1427, 0.0
        %v1480 = vmax.f32 %v1432, 0.0
        %v1481 = vmax.f32 %v1435, 0.0
        %v1482 = vmax.f32 %v1440, 0.0
        %v1483 = vmax.f32 %v1443, 0.0
        %v1484 = vmax.f32 %v1448, 0.0
        %v1485 = vmax.f32 %v1451, 0.0
        %v1486 = vpack.c.bf16 %v1455, %v1454
        %v1487 = vpack.c.bf16 %v1457, %v1456
        %v1488 = vpack.c.bf16 %v1459, %v1458
        %v1489 = vpack.c.bf16 %v1461, %v1460
        %v1490 = vpack.c.bf16 %v1463, %v1462
        %v1491 = vpack.c.bf16 %v1465, %v1464
        %v1492 = vpack.c.bf16 %v1467, %v1466
        %v1493 = vpack.c.bf16 %v1469, %v1468
        %v1494 = vpack.c.bf16 %v1471, %v1470
        %v1495 = vpack.c.bf16 %v1473, %v1472
        %v1496 = vpack.c.bf16 %v1475, %v1474
        %v1497 = vpack.c.bf16 %v1477, %v1476
        %v1498 = vpack.c.bf16 %v1479, %v1478
        %v1499 = vpack.c.bf16 %v1481, %v1480
        %v1500 = vpack.c.bf16 %v1483, %v1482
        %v1501 = vpack.c.bf16 %v1485, %v1484
        %v1502 = vld [vmem:[%s5] sm:$0xff]
        %v1503 = vld [vmem:[%s5 + $0x8] sm:$0xff]
        %v1504 = vld [vmem:[%s5 + $0x10] sm:$0xff]
        %v1505 = vld [vmem:[%s5 + $0x18] sm:$0xff]
        %v1506 = vld [vmem:[%s5 + $0x20] sm:$0xff]
        %v1507 = vld [vmem:[%s5 + $0x28] sm:$0xff]
        %v1508 = vld [vmem:[%s5 + $0x30] sm:$0xff]
        %v1509 = vld [vmem:[%s5 + $0x38] sm:$0xff]
        %v1510 = vld [vmem:[%s5 + $0x40] sm:$0xff]
        %v1511 = vld [vmem:[%s5 + $0x48] sm:$0xff]
        %v1512 = vld [vmem:[%s5 + $0x50] sm:$0xff]
        %v1513 = vld [vmem:[%s5 + $0x58] sm:$0xff]
        %v1514 = vld [vmem:[%s5 + $0x60] sm:$0xff]
        %v1515 = vld [vmem:[%s5 + $0x68] sm:$0xff]
        %v1516 = vld [vmem:[%s5 + $0x70] sm:$0xff]
        %v1517 = vld [vmem:[%s5 + $0x78] sm:$0xff]
        %v1518 = vld [vmem:[%s5 + $0x80] sm:$0xff]
        %v1519 = vld [vmem:[%s5 + $0x88] sm:$0xff]
        %v1520 = vld [vmem:[%s5 + $0x90] sm:$0xff]
        %v1521 = vld [vmem:[%s5 + $0x98] sm:$0xff]
        %v1522 = vld [vmem:[%s5 + $0xa0] sm:$0xff]
        %v1523 = vld [vmem:[%s5 + $0xa8] sm:$0xff]
        %v1524 = vld [vmem:[%s5 + $0xb0] sm:$0xff]
        %v1525 = vld [vmem:[%s5 + $0xb8] sm:$0xff]
        %v1526 = vld [vmem:[%s5 + $0xc0] sm:$0xff]
        %v1527 = vld [vmem:[%s5 + $0xc8] sm:$0xff]
        %v1528 = vld [vmem:[%s5 + $0xd0] sm:$0xff]
        %v1529 = vld [vmem:[%s5 + $0xd8] sm:$0xff]
        %v1530 = vld [vmem:[%s5 + $0xe0] sm:$0xff]
        %v1531 = vld [vmem:[%s5 + $0xe8] sm:$0xff]
        %v1532 = vld [vmem:[%s5 + $0xf0] sm:$0xff]
        %v1533 = vld [vmem:[%s5 + $0xf8] sm:$0xff]
        %v1534 = vld [vmem:[%s5 + $0x100] sm:$0xff]
        %v1535 = vld [vmem:[%s5 + $0x108] sm:$0xff]
        %v1536 = vld [vmem:[%s5 + $0x110] sm:$0xff]
        %v1537 = vld [vmem:[%s5 + $0x118] sm:$0xff]
        %v1538 = vld [vmem:[%s5 + $0x120] sm:$0xff]
        %v1539 = vld [vmem:[%s5 + $0x128] sm:$0xff]
        %v1540 = vld [vmem:[%s5 + $0x130] sm:$0xff]
        %v1541 = vld [vmem:[%s5 + $0x138] sm:$0xff]
        %v1542 = vld [vmem:[%s5 + $0x140] sm:$0xff]
        %v1543 = vld [vmem:[%s5 + $0x148] sm:$0xff]
        %v1544 = vld [vmem:[%s5 + $0x150] sm:$0xff]
        %v1545 = vld [vmem:[%s5 + $0x158] sm:$0xff]
        %v1546 = vld [vmem:[%s5 + $0x160] sm:$0xff]
        %v1547 = vld [vmem:[%s5 + $0x168] sm:$0xff]
        %v1548 = vld [vmem:[%s5 + $0x170] sm:$0xff]
        %v1549 = vld [vmem:[%s5 + $0x178] sm:$0xff]
        %v1550 = vld [vmem:[%s5 + $0x180] sm:$0xff]
        %v1551 = vld [vmem:[%s5 + $0x188] sm:$0xff]
        %v1552 = vld [vmem:[%s5 + $0x190] sm:$0xff]
        %v1553 = vld [vmem:[%s5 + $0x198] sm:$0xff]
        %v1554 = vld [vmem:[%s5 + $0x1a0] sm:$0xff]
        %v1555 = vld [vmem:[%s5 + $0x1a8] sm:$0xff]
        %v1556 = vld [vmem:[%s5 + $0x1b0] sm:$0xff]
        %v1557 = vld [vmem:[%s5 + $0x1b8] sm:$0xff]
        %v1558 = vld [vmem:[%s5 + $0x1c0] sm:$0xff]
        %v1559 = vld [vmem:[%s5 + $0x1c8] sm:$0xff]
        %v1560 = vld [vmem:[%s5 + $0x1d0] sm:$0xff]
        %v1561 = vld [vmem:[%s5 + $0x1d8] sm:$0xff]
        %v1562 = vld [vmem:[%s5 + $0x1e0] sm:$0xff]
        %v1563 = vld [vmem:[%s5 + $0x1e8] sm:$0xff]
        %v1564 = vld [vmem:[%s5 + $0x1f0] sm:$0xff]
        %v1565 = vld [vmem:[%s5 + $0x1f8] sm:$0xff]
        %v1566 = vld [vmem:[%s6] sm:$0xff]
        %v1568 = vlaneseq
        %v1569 = vshrl.u32 %v1568, 7
        %v1570 = vsub.s32 0, %v1569
        %v1571 = vrot.slane %v1566, %v1570
        %v1572 = vlaneseq
        %v1573 = vshrl.u32 %v1572, 7
        %v1574 = vsub.s32 1, %v1573
        %v1575 = vrot.slane %v1566, %v1574
        %v1576 = vlaneseq
        %v1577 = vshrl.u32 %v1576, 7
        %v1578 = vsub.s32 2, %v1577
        %v1579 = vrot.slane %v1566, %v1578
        %v1580 = vlaneseq
        %v1581 = vshrl.u32 %v1580, 7
        %v1582 = vsub.s32 3, %v1581
        %v1583 = vrot.slane %v1566, %v1582
        %v1584 = vlaneseq
        %v1585 = vshrl.u32 %v1584, 7
        %v1586 = vsub.s32 4, %v1585
        %v1587 = vrot.slane %v1566, %v1586
        %v1588 = vlaneseq
        %v1589 = vshrl.u32 %v1588, 7
        %v1590 = vsub.s32 5, %v1589
        %v1591 = vrot.slane %v1566, %v1590
        %v1592 = vlaneseq
        %v1593 = vshrl.u32 %v1592, 7
        %v1594 = vsub.s32 6, %v1593
        %v1595 = vrot.slane %v1566, %v1594
        %v1596 = vlaneseq
        %v1597 = vshrl.u32 %v1596, 7
        %v1598 = vsub.s32 7, %v1597
        %v1599 = vrot.slane %v1566, %v1598
        %v1672 = vunpack.c.l.b16 %v1502
        %v1673 = vunpack.c.h.b16 %v1502
        %v1674 = vunpack.c.l.b16 %v1503
        %v1675 = vunpack.c.h.b16 %v1503
        %v1676 = vunpack.c.l.b16 %v1504
        %v1677 = vunpack.c.h.b16 %v1504
        %v1678 = vunpack.c.l.b16 %v1505
        %v1679 = vunpack.c.h.b16 %v1505
        %v1680 = vunpack.c.l.b16 %v1506
        %v1681 = vunpack.c.h.b16 %v1506
        %v1682 = vunpack.c.l.b16 %v1507
        %v1683 = vunpack.c.h.b16 %v1507
        %v1684 = vunpack.c.l.b16 %v1508
        %v1685 = vunpack.c.h.b16 %v1508
        %v1686 = vunpack.c.l.b16 %v1509
        %v1687 = vunpack.c.h.b16 %v1509
        %v1688 = vunpack.c.l.b16 %v1510
        %v1689 = vunpack.c.h.b16 %v1510
        %v1690 = vunpack.c.l.b16 %v1511
        %v1691 = vunpack.c.h.b16 %v1511
        %v1692 = vunpack.c.l.b16 %v1512
        %v1693 = vunpack.c.h.b16 %v1512
        %v1694 = vunpack.c.l.b16 %v1513
        %v1695 = vunpack.c.h.b16 %v1513
        %v1696 = vunpack.c.l.b16 %v1514
        %v1697 = vunpack.c.h.b16 %v1514
        %v1698 = vunpack.c.l.b16 %v1515
        %v1699 = vunpack.c.h.b16 %v1515
        %v1700 = vunpack.c.l.b16 %v1516
        %v1701 = vunpack.c.h.b16 %v1516
        %v1702 = vunpack.c.l.b16 %v1517
        %v1703 = vunpack.c.h.b16 %v1517
        %v1704 = vunpack.c.l.b16 %v1518
        %v1705 = vunpack.c.h.b16 %v1518
        %v1706 = vunpack.c.l.b16 %v1519
        %v1707 = vunpack.c.h.b16 %v1519
        %v1708 = vunpack.c.l.b16 %v1520
        %v1709 = vunpack.c.h.b16 %v1520
        %v1710 = vunpack.c.l.b16 %v1521
        %v1711 = vunpack.c.h.b16 %v1521
        %v1712 = vunpack.c.l.b16 %v1522
        %v1713 = vunpack.c.h.b16 %v1522
        %v1714 = vunpack.c.l.b16 %v1523
        %v1715 = vunpack.c.h.b16 %v1523
        %v1716 = vunpack.c.l.b16 %v1524
        %v1717 = vunpack.c.h.b16 %v1524
        %v1718 = vunpack.c.l.b16 %v1525
        %v1719 = vunpack.c.h.b16 %v1525
        %v1720 = vunpack.c.l.b16 %v1526
        %v1721 = vunpack.c.h.b16 %v1526
        %v1722 = vunpack.c.l.b16 %v1527
        %v1723 = vunpack.c.h.b16 %v1527
        %v1724 = vunpack.c.l.b16 %v1528
        %v1725 = vunpack.c.h.b16 %v1528
        %v1726 = vunpack.c.l.b16 %v1529
        %v1727 = vunpack.c.h.b16 %v1529
        %v1728 = vunpack.c.l.b16 %v1530
        %v1729 = vunpack.c.h.b16 %v1530
        %v1730 = vunpack.c.l.b16 %v1531
        %v1731 = vunpack.c.h.b16 %v1531
        %v1732 = vunpack.c.l.b16 %v1532
        %v1733 = vunpack.c.h.b16 %v1532
        %v1734 = vunpack.c.l.b16 %v1533
        %v1735 = vunpack.c.h.b16 %v1533
        %v1736 = vunpack.c.l.b16 %v1534
        %v1737 = vunpack.c.h.b16 %v1534
        %v1738 = vunpack.c.l.b16 %v1535
        %v1739 = vunpack.c.h.b16 %v1535
        %v1740 = vunpack.c.l.b16 %v1536
        %v1741 = vunpack.c.h.b16 %v1536
        %v1742 = vunpack.c.l.b16 %v1537
        %v1743 = vunpack.c.h.b16 %v1537
        %v1744 = vunpack.c.l.b16 %v1538
        %v1745 = vunpack.c.h.b16 %v1538
        %v1746 = vunpack.c.l.b16 %v1539
        %v1747 = vunpack.c.h.b16 %v1539
        %v1748 = vunpack.c.l.b16 %v1540
        %v1749 = vunpack.c.h.b16 %v1540
        %v1750 = vunpack.c.l.b16 %v1541
        %v1751 = vunpack.c.h.b16 %v1541
        %v1752 = vunpack.c.l.b16 %v1542
        %v1753 = vunpack.c.h.b16 %v1542
        %v1754 = vunpack.c.l.b16 %v1543
        %v1755 = vunpack.c.h.b16 %v1543
        %v1756 = vunpack.c.l.b16 %v1544
        %v1757 = vunpack.c.h.b16 %v1544
        %v1758 = vunpack.c.l.b16 %v1545
        %v1759 = vunpack.c.h.b16 %v1545
        %v1760 = vunpack.c.l.b16 %v1546
        %v1761 = vunpack.c.h.b16 %v1546
        %v1762 = vunpack.c.l.b16 %v1547
        %v1763 = vunpack.c.h.b16 %v1547
        %v1764 = vunpack.c.l.b16 %v1548
        %v1765 = vunpack.c.h.b16 %v1548
        %v1766 = vunpack.c.l.b16 %v1549
        %v1767 = vunpack.c.h.b16 %v1549
        %v1768 = vunpack.c.l.b16 %v1550
        %v1769 = vunpack.c.h.b16 %v1550
        %v1770 = vunpack.c.l.b16 %v1551
        %v1771 = vunpack.c.h.b16 %v1551
        %v1772 = vunpack.c.l.b16 %v1552
        %v1773 = vunpack.c.h.b16 %v1552
        %v1774 = vunpack.c.l.b16 %v1553
        %v1775 = vunpack.c.h.b16 %v1553
        %v1776 = vunpack.c.l.b16 %v1554
        %v1777 = vunpack.c.h.b16 %v1554
        %v1778 = vunpack.c.l.b16 %v1555
        %v1779 = vunpack.c.h.b16 %v1555
        %v1780 = vunpack.c.l.b16 %v1556
        %v1781 = vunpack.c.h.b16 %v1556
        %v1782 = vunpack.c.l.b16 %v1557
        %v1783 = vunpack.c.h.b16 %v1557
        %v1784 = vunpack.c.l.b16 %v1558
        %v1785 = vunpack.c.h.b16 %v1558
        %v1786 = vunpack.c.l.b16 %v1559
        %v1787 = vunpack.c.h.b16 %v1559
        %v1788 = vunpack.c.l.b16 %v1560
        %v1789 = vunpack.c.h.b16 %v1560
        %v1790 = vunpack.c.l.b16 %v1561
        %v1791 = vunpack.c.h.b16 %v1561
        %v1792 = vunpack.c.l.b16 %v1562
        %v1793 = vunpack.c.h.b16 %v1562
        %v1794 = vunpack.c.l.b16 %v1563
        %v1795 = vunpack.c.h.b16 %v1563
        %v1796 = vunpack.c.l.b16 %v1564
        %v1797 = vunpack.c.h.b16 %v1564
        %v1798 = vunpack.c.l.b16 %v1565
        %v1799 = vunpack.c.h.b16 %v1565
        %v1800 = vpack.c.b16 %v1680, %v1672
        %v1801 = vpack.c.b16 %v1681, %v1673
        %v1802 = vpack.c.b16 %v1682, %v1674
        %v1803 = vpack.c.b16 %v1683, %v1675
        %v1804 = vpack.c.b16 %v1684, %v1676
        %v1805 = vpack.c.b16 %v1685, %v1677
        %v1806 = vpack.c.b16 %v1686, %v1678
        %v1807 = vpack.c.b16 %v1687, %v1679
        %v1808 = vpack.c.b16 %v1696, %v1688
        %v1809 = vpack.c.b16 %v1697, %v1689
        %v1810 = vpack.c.b16 %v1698, %v1690
        %v1811 = vpack.c.b16 %v1699, %v1691
        %v1812 = vpack.c.b16 %v1700, %v1692
        %v1813 = vpack.c.b16 %v1701, %v1693
        %v1814 = vpack.c.b16 %v1702, %v1694
        %v1815 = vpack.c.b16 %v1703, %v1695
        %v1816 = vpack.c.b16 %v1712, %v1704
        %v1817 = vpack.c.b16 %v1713, %v1705
        %v1818 = vpack.c.b16 %v1714, %v1706
        %v1819 = vpack.c.b16 %v1715, %v1707
        %v1820 = vpack.c.b16 %v1716, %v1708
        %v1821 = vpack.c.b16 %v1717, %v1709
        %v1822 = vpack.c.b16 %v1718, %v1710
        %v1823 = vpack.c.b16 %v1719, %v1711
        %v1824 = vpack.c.b16 %v1728, %v1720
        %v1825 = vpack.c.b16 %v1729, %v1721
        %v1826 = vpack.c.b16 %v1730, %v1722
        %v1827 = vpack.c.b16 %v1731, %v1723
        %v1828 = vpack.c.b16 %v1732, %v1724
        %v1829 = vpack.c.b16 %v1733, %v1725
        %v1830 = vpack.c.b16 %v1734, %v1726
        %v1831 = vpack.c.b16 %v1735, %v1727
        %v1832 = vpack.c.b16 %v1744, %v1736
        %v1833 = vpack.c.b16 %v1745, %v1737
        %v1834 = vpack.c.b16 %v1746, %v1738
        %v1835 = vpack.c.b16 %v1747, %v1739
        %v1836 = vpack.c.b16 %v1748, %v1740
        %v1837 = vpack.c.b16 %v1749, %v1741
        %v1838 = vpack.c.b16 %v1750, %v1742
        %v1839 = vpack.c.b16 %v1751, %v1743
        %v1840 = vpack.c.b16 %v1760, %v1752
        %v1841 = vpack.c.b16 %v1761, %v1753
        %v1842 = vpack.c.b16 %v1762, %v1754
        %v1843 = vpack.c.b16 %v1763, %v1755
        %v1844 = vpack.c.b16 %v1764, %v1756
        %v1845 = vpack.c.b16 %v1765, %v1757
        %v1846 = vpack.c.b16 %v1766, %v1758
        %v1847 = vpack.c.b16 %v1767, %v1759
        %v1848 = vpack.c.b16 %v1776, %v1768
        %v1849 = vpack.c.b16 %v1777, %v1769
        %v1850 = vpack.c.b16 %v1778, %v1770
        %v1851 = vpack.c.b16 %v1779, %v1771
        %v1852 = vpack.c.b16 %v1780, %v1772
        %v1853 = vpack.c.b16 %v1781, %v1773
        %v1854 = vpack.c.b16 %v1782, %v1774
        %v1855 = vpack.c.b16 %v1783, %v1775
        %v1856 = vpack.c.b16 %v1792, %v1784
        %v1857 = vpack.c.b16 %v1793, %v1785
        %v1858 = vpack.c.b16 %v1794, %v1786
        %v1859 = vpack.c.b16 %v1795, %v1787
        %v1860 = vpack.c.b16 %v1796, %v1788
        %v1861 = vpack.c.b16 %v1797, %v1789
        %v1862 = vpack.c.b16 %v1798, %v1790
        %v1863 = vpack.c.b16 %v1799, %v1791
        %1928 = vmatprep.subr.bf16.mxu0 %v1801
        %1929 = vmatpush1.bf16.msra.mxu0 %v1800
        %1930 = vmatprep.subr.bf16.mxu0 %v1809
        %1931 = vmatpush1.bf16.msra.mxu0 %v1808
        %1932 = vmatprep.subr.bf16.mxu0 %v1817
        %1933 = vmatpush1.bf16.msra.mxu0 %v1816
        %1934 = vmatprep.subr.bf16.mxu0 %v1825
        %1935 = vmatpush1.bf16.msra.mxu0 %v1824
        %1936 = vmatprep.subr.bf16.mxu0 %v1833
        %1937 = vmatpush1.bf16.msra.mxu0 %v1832
        %1938 = vmatprep.subr.bf16.mxu0 %v1841
        %1939 = vmatpush1.bf16.msra.mxu0 %v1840
        %1940 = vmatprep.subr.bf16.mxu0 %v1849
        %1941 = vmatpush1.bf16.msra.mxu0 %v1848
        %1942 = vmatprep.subr.bf16.mxu0 %v1857
        %1943 = vmatpush1.bf16.msra.mxu0 %v1856
        %1944 = vmatprep.subr.bf16.mxu0 0
        %1945 = vmatpush1.bf16.msra.mxu0 0
        %1946 = vmatprep.subr.bf16.mxu0 0
        %1947 = vmatpush1.bf16.msra.mxu0 0
        %1948 = vmatprep.subr.bf16.mxu0 0
        %1949 = vmatpush1.bf16.msra.mxu0 0
        %1950 = vmatprep.subr.bf16.mxu0 0
        %1951 = vmatpush1.bf16.msra.mxu0 0
        %1952 = vmatprep.subr.bf16.mxu0 0
        %1953 = vmatpush1.bf16.msra.mxu0 0
        %1954 = vmatprep.subr.bf16.mxu0 0
        %1955 = vmatpush1.bf16.msra.mxu0 0
        %1956 = vmatprep.subr.bf16.mxu0 0
        %1957 = vmatpush1.bf16.msra.mxu0 0
        %1958 = vmatprep.subr.bf16.mxu0 0
        %1959 = vmatpush1.bf16.msra.mxu0 0
        %1960 = vmatprep.mubr.bf16.mxu0 0
        %1961 = vmatmul.mubr.bf16.gmra.mrb[0].mxu0 %v1486
        %v1962 = vpop.f32.mrb[0].mxu0
        %v1963 = vadd.f32 %v1571, %v1962
        %v1964 = vpop.f32.mrb[0].mxu0
        %v1965 = vadd.f32 %v1575, %v1964
        %v1966 = vpop.f32.mrb[0].mxu0
        %v1967 = vadd.f32 %v1571, %v1966
        %v1968 = vpop.f32.mrb[0].mxu0
        %v1969 = vadd.f32 %v1575, %v1968
        %1970 = vmatprep.mubr.bf16.mxu0 0
        %1971 = vmatmul.mubr.bf16.gmra.mrb[0].mxu0 %v1487
        %v1972 = vpop.f32.mrb[0].mxu0
        %v1973 = vadd.f32 %v1571, %v1972
        %v1974 = vpop.f32.mrb[0].mxu0
        %v1975 = vadd.f32 %v1575, %v1974
        %v1976 = vpop.f32.mrb[0].mxu0
        %v1977 = vadd.f32 %v1571, %v1976
        %v1978 = vpop.f32.mrb[0].mxu0
        %v1979 = vadd.f32 %v1575, %v1978
        %1980 = vmatprep.mubr.bf16.mxu0 0
        %1981 = vmatmul.mubr.bf16.gmra.mrb[0].mxu0 %v1488
        %v1982 = vpop.f32.mrb[0].mxu0
        %v1983 = vadd.f32 %v1571, %v1982
        %v1984 = vpop.f32.mrb[0].mxu0
        %v1985 = vadd.f32 %v1575, %v1984
        %v1986 = vpop.f32.mrb[0].mxu0
        %v1987 = vadd.f32 %v1571, %v1986
        %v1988 = vpop.f32.mrb[0].mxu0
        %v1989 = vadd.f32 %v1575, %v1988
        %1990 = vmatprep.mubr.bf16.mxu0 0
        %1991 = vmatmul.mubr.bf16.gmra.mrb[0].mxu0 %v1489
        %v1992 = vpop.f32.mrb[0].mxu0
        %v1993 = vadd.f32 %v1571, %v1992
        %v1994 = vpop.f32.mrb[0].mxu0
        %v1995 = vadd.f32 %v1575, %v1994
        %v1996 = vpop.f32.mrb[0].mxu0
        %v1997 = vadd.f32 %v1571, %v1996
        %v1998 = vpop.f32.mrb[0].mxu0
        %v1999 = vadd.f32 %v1575, %v1998
        %2000 = vmatprep.mubr.bf16.mxu0 0
        %2001 = vmatmul.mubr.bf16.gmra.mrb[0].mxu0 %v1490
        %v2002 = vpop.f32.mrb[0].mxu0
        %v2003 = vadd.f32 %v1571, %v2002
        %v2004 = vpop.f32.mrb[0].mxu0
        %v2005 = vadd.f32 %v1575, %v2004
        %v2006 = vpop.f32.mrb[0].mxu0
        %v2007 = vadd.f32 %v1571, %v2006
        %v2008 = vpop.f32.mrb[0].mxu0
        %v2009 = vadd.f32 %v1575, %v2008
        %2010 = vmatprep.mubr.bf16.mxu0 0
        %2011 = vmatmul.mubr.bf16.gmra.mrb[0].mxu0 %v1491
        %v2012 = vpop.f32.mrb[0].mxu0
        %v2013 = vadd.f32 %v1571, %v2012
        %v2014 = vpop.f32.mrb[0].mxu0
        %v2015 = vadd.f32 %v1575, %v2014
        %v2016 = vpop.f32.mrb[0].mxu0
        %v2017 = vadd.f32 %v1571, %v2016
        %v2018 = vpop.f32.mrb[0].mxu0
        %v2019 = vadd.f32 %v1575, %v2018
        %2020 = vmatprep.mubr.bf16.mxu0 0
        %2021 = vmatmul.mubr.bf16.gmra.mrb[0].mxu0 %v1492
        %v2022 = vpop.f32.mrb[0].mxu0
        %v2023 = vadd.f32 %v1571, %v2022
        %v2024 = vpop.f32.mrb[0].mxu0
        %v2025 = vadd.f32 %v1575, %v2024
        %v2026 = vpop.f32.mrb[0].mxu0
        %v2027 = vadd.f32 %v1571, %v2026
        %v2028 = vpop.f32.mrb[0].mxu0
        %v2029 = vadd.f32 %v1575, %v2028
        %2030 = vmatprep.mubr.bf16.mxu0 0
        %2031 = vmatmul.mubr.bf16.gmra.mrb[0].mxu0 %v1493
        %v2032 = vpop.f32.mrb[0].mxu0
        %v2033 = vadd.f32 %v1571, %v2032
        %v2034 = vpop.f32.mrb[0].mxu0
        %v2035 = vadd.f32 %v1575, %v2034
        %v2036 = vpop.f32.mrb[0].mxu0
        %v2037 = vadd.f32 %v1571, %v2036
        %v2038 = vpop.f32.mrb[0].mxu0
        %v2039 = vadd.f32 %v1575, %v2038
        %2040 = vmatprep.mubr.bf16.mxu0 0
        %2041 = vmatmul.mubr.bf16.gmra.mrb[0].mxu0 %v1494
        %v2042 = vpop.f32.mrb[0].mxu0
        %v2043 = vadd.f32 %v1571, %v2042
        %v2044 = vpop.f32.mrb[0].mxu0
        %v2045 = vadd.f32 %v1575, %v2044
        %v2046 = vpop.f32.mrb[0].mxu0
        %v2047 = vadd.f32 %v1571, %v2046
        %v2048 = vpop.f32.mrb[0].mxu0
        %v2049 = vadd.f32 %v1575, %v2048
        %2050 = vmatprep.mubr.bf16.mxu0 0
        %2051 = vmatmul.mubr.bf16.gmra.mrb[0].mxu0 %v1495
        %v2052 = vpop.f32.mrb[0].mxu0
        %v2053 = vadd.f32 %v1571, %v2052
        %v2054 = vpop.f32.mrb[0].mxu0
        %v2055 = vadd.f32 %v1575, %v2054
        %v2056 = vpop.f32.mrb[0].mxu0
        %v2057 = vadd.f32 %v1571, %v2056
        %v2058 = vpop.f32.mrb[0].mxu0
        %v2059 = vadd.f32 %v1575, %v2058
        %2060 = vmatprep.mubr.bf16.mxu0 0
        %2061 = vmatmul.mubr.bf16.gmra.mrb[0].mxu0 %v1496
        %v2062 = vpop.f32.mrb[0].mxu0
        %v2063 = vadd.f32 %v1571, %v2062
        %v2064 = vpop.f32.mrb[0].mxu0
        %v2065 = vadd.f32 %v1575, %v2064
        %v2066 = vpop.f32.mrb[0].mxu0
        %v2067 = vadd.f32 %v1571, %v2066
        %v2068 = vpop.f32.mrb[0].mxu0
        %v2069 = vadd.f32 %v1575, %v2068
        %2070 = vmatprep.mubr.bf16.mxu0 0
        %2071 = vmatmul.mubr.bf16.gmra.mrb[0].mxu0 %v1497
        %v2072 = vpop.f32.mrb[0].mxu0
        %v2073 = vadd.f32 %v1571, %v2072
        %v2074 = vpop.f32.mrb[0].mxu0
        %v2075 = vadd.f32 %v1575, %v2074
        %v2076 = vpop.f32.mrb[0].mxu0
        %v2077 = vadd.f32 %v1571, %v2076
        %v2078 = vpop.f32.mrb[0].mxu0
        %v2079 = vadd.f32 %v1575, %v2078
        %2080 = vmatprep.mubr.bf16.mxu0 0
        %2081 = vmatmul.mubr.bf16.gmra.mrb[0].mxu0 %v1498
        %v2082 = vpop.f32.mrb[0].mxu0
        %v2083 = vadd.f32 %v1571, %v2082
        %v2084 = vpop.f32.mrb[0].mxu0
        %v2085 = vadd.f32 %v1575, %v2084
        %v2086 = vpop.f32.mrb[0].mxu0
        %v2087 = vadd.f32 %v1571, %v2086
        %v2088 = vpop.f32.mrb[0].mxu0
        %v2089 = vadd.f32 %v1575, %v2088
        %2090 = vmatprep.mubr.bf16.mxu0 0
        %2091 = vmatmul.mubr.bf16.gmra.mrb[0].mxu0 %v1499
        %v2092 = vpop.f32.mrb[0].mxu0
        %v2093 = vadd.f32 %v1571, %v2092
        %v2094 = vpop.f32.mrb[0].mxu0
        %v2095 = vadd.f32 %v1575, %v2094
        %v2096 = vpop.f32.mrb[0].mxu0
        %v2097 = vadd.f32 %v1571, %v2096
        %v2098 = vpop.f32.mrb[0].mxu0
        %v2099 = vadd.f32 %v1575, %v2098
        %2100 = vmatprep.mubr.bf16.mxu0 0
        %2101 = vmatmul.mubr.bf16.gmra.mrb[0].mxu0 %v1500
        %v2102 = vpop.f32.mrb[0].mxu0
        %v2103 = vadd.f32 %v1571, %v2102
        %v2104 = vpop.f32.mrb[0].mxu0
        %v2105 = vadd.f32 %v1575, %v2104
        %v2106 = vpop.f32.mrb[0].mxu0
        %v2107 = vadd.f32 %v1571, %v2106
        %v2108 = vpop.f32.mrb[0].mxu0
        %v2109 = vadd.f32 %v1575, %v2108
        %2110 = vmatprep.mubr.bf16.mxu0 0
        %2111 = vmatmul.mubr.bf16.gmra.mrb[0].mxu0 %v1501
        %v2112 = vpop.f32.mrb[0].mxu0
        %v2113 = vadd.f32 %v1571, %v2112
        %v2114 = vpop.f32.mrb[0].mxu0
        %v2115 = vadd.f32 %v1575, %v2114
        %v2116 = vpop.f32.mrb[0].mxu0
        %v2117 = vadd.f32 %v1571, %v2116
        %v2118 = vpop.f32.mrb[0].mxu0
        %v2119 = vadd.f32 %v1575, %v2118
        %2120 = vdwg.mxu0
        %2121 = vmatprep.subr.bf16.mxu0 %v1803
        %2122 = vmatpush1.bf16.msra.mxu0 %v1802
        %2123 = vmatprep.subr.bf16.mxu0 %v1811
        %2124 = vmatpush1.bf16.msra.mxu0 %v1810
        %2125 = vmatprep.subr.bf16.mxu0 %v1819
        %2126 = vmatpush1.bf16.msra.mxu0 %v1818
        %2127 = vmatprep.subr.bf16.mxu0 %v1827
        %2128 = vmatpush1.bf16.msra.mxu0 %v1826
        %2129 = vmatprep.subr.bf16.mxu0 %v1835
        %2130 = vmatpush1.bf16.msra.mxu0 %v1834
        %2131 = vmatprep.subr.bf16.mxu0 %v1843
        %2132 = vmatpush1.bf16.msra.mxu0 %v1842
        %2133 = vmatprep.subr.bf16.mxu0 %v1851
        %2134 = vmatpush1.bf16.msra.mxu0 %v1850
        %2135 = vmatprep.subr.bf16.mxu0 %v1859
        %2136 = vmatpush1.bf16.msra.mxu0 %v1858
        %2137 = vmatprep.subr.bf16.mxu0 0
        %2138 = vmatpush1.bf16.msra.mxu0 0
        %2139 = vmatprep.subr.bf16.mxu0 0
        %2140 = vmatpush1.bf16.msra.mxu0 0
        %2141 = vmatprep.subr.bf16.mxu0 0
        %2142 = vmatpush1.bf16.msra.mxu0 0
        %2143 = vmatprep.subr.bf16.mxu0 0
        %2144 = vmatpush1.bf16.msra.mxu0 0
        %2145 = vmatprep.subr.bf16.mxu0 0
        %2146 = vmatpush1.bf16.msra.mxu0 0
        %2147 = vmatprep.subr.bf16.mxu0 0
        %2148 = vmatpush1.bf16.msra.mxu0 0
        %2149 = vmatprep.subr.bf16.mxu0 0
        %2150 = vmatpush1.bf16.msra.mxu0 0
        %2151 = vmatprep.subr.bf16.mxu0 0
        %2152 = vmatpush1.bf16.msra.mxu0 0
        %2153 = vmatprep.mubr.bf16.mxu0 0
        %2154 = vmatmul.mubr.bf16.gmra.mrb[0].mxu0 %v1486
        %v2155 = vpop.f32.mrb[0].mxu0
        %v2156 = vadd.f32 %v1579, %v2155
        %v2157 = vpop.f32.mrb[0].mxu0
        %v2158 = vadd.f32 %v1583, %v2157
        %v2159 = vpop.f32.mrb[0].mxu0
        %v2160 = vadd.f32 %v1579, %v2159
        %v2161 = vpop.f32.mrb[0].mxu0
        %v2162 = vadd.f32 %v1583, %v2161
        %2163 = vmatprep.mubr.bf16.mxu0 0
        %2164 = vmatmul.mubr.bf16.gmra.mrb[0].mxu0 %v1487
        %v2165 = vpop.f32.mrb[0].mxu0
        %v2166 = vadd.f32 %v1579, %v2165
        %v2167 = vpop.f32.mrb[0].mxu0
        %v2168 = vadd.f32 %v1583, %v2167
        %v2169 = vpop.f32.mrb[0].mxu0
        %v2170 = vadd.f32 %v1579, %v2169
        %v2171 = vpop.f32.mrb[0].mxu0
        %v2172 = vadd.f32 %v1583, %v2171
        %2173 = vmatprep.mubr.bf16.mxu0 0
        %2174 = vmatmul.mubr.bf16.gmra.mrb[0].mxu0 %v1488
        %v2175 = vpop.f32.mrb[0].mxu0
        %v2176 = vadd.f32 %v1579, %v2175
        %v2177 = vpop.f32.mrb[0].mxu0
        %v2178 = vadd.f32 %v1583, %v2177
        %v2179 = vpop.f32.mrb[0].mxu0
        %v2180 = vadd.f32 %v1579, %v2179
        %v2181 = vpop.f32.mrb[0].mxu0
        %v2182 = vadd.f32 %v1583, %v2181
        %2183 = vmatprep.mubr.bf16.mxu0 0
        %2184 = vmatmul.mubr.bf16.gmra.mrb[0].mxu0 %v1489
        %v2185 = vpop.f32.mrb[0].mxu0
        %v2186 = vadd.f32 %v1579, %v2185
        %v2187 = vpop.f32.mrb[0].mxu0
        %v2188 = vadd.f32 %v1583, %v2187
        %v2189 = vpop.f32.mrb[0].mxu0
        %v2190 = vadd.f32 %v1579, %v2189
        %v2191 = vpop.f32.mrb[0].mxu0
        %v2192 = vadd.f32 %v1583, %v2191
        %2193 = vmatprep.mubr.bf16.mxu0 0
        %2194 = vmatmul.mubr.bf16.gmra.mrb[0].mxu0 %v1490
        %v2195 = vpop.f32.mrb[0].mxu0
        %v2196 = vadd.f32 %v1579, %v2195
        %v2197 = vpop.f32.mrb[0].mxu0
        %v2198 = vadd.f32 %v1583, %v2197
        %v2199 = vpop.f32.mrb[0].mxu0
        %v2200 = vadd.f32 %v1579, %v2199
        %v2201 = vpop.f32.mrb[0].mxu0
        %v2202 = vadd.f32 %v1583, %v2201
        %2203 = vmatprep.mubr.bf16.mxu0 0
        %2204 = vmatmul.mubr.bf16.gmra.mrb[0].mxu0 %v1491
        %v2205 = vpop.f32.mrb[0].mxu0
        %v2206 = vadd.f32 %v1579, %v2205
        %v2207 = vpop.f32.mrb[0].mxu0
        %v2208 = vadd.f32 %v1583, %v2207
        %v2209 = vpop.f32.mrb[0].mxu0
        %v2210 = vadd.f32 %v1579, %v2209
        %v2211 = vpop.f32.mrb[0].mxu0
        %v2212 = vadd.f32 %v1583, %v2211
        %2213 = vmatprep.mubr.bf16.mxu0 0
        %2214 = vmatmul.mubr.bf16.gmra.mrb[0].mxu0 %v1492
        %v2215 = vpop.f32.mrb[0].mxu0
        %v2216 = vadd.f32 %v1579, %v2215
        %v2217 = vpop.f32.mrb[0].mxu0
        %v2218 = vadd.f32 %v1583, %v2217
        %v2219 = vpop.f32.mrb[0].mxu0
        %v2220 = vadd.f32 %v1579, %v2219
        %v2221 = vpop.f32.mrb[0].mxu0
        %v2222 = vadd.f32 %v1583, %v2221
        %2223 = vmatprep.mubr.bf16.mxu0 0
        %2224 = vmatmul.mubr.bf16.gmra.mrb[0].mxu0 %v1493
        %v2225 = vpop.f32.mrb[0].mxu0
        %v2226 = vadd.f32 %v1579, %v2225
        %v2227 = vpop.f32.mrb[0].mxu0
        %v2228 = vadd.f32 %v1583, %v2227
        %v2229 = vpop.f32.mrb[0].mxu0
        %v2230 = vadd.f32 %v1579, %v2229
        %v2231 = vpop.f32.mrb[0].mxu0
        %v2232 = vadd.f32 %v1583, %v2231
        %2233 = vmatprep.mubr.bf16.mxu0 0
        %2234 = vmatmul.mubr.bf16.gmra.mrb[0].mxu0 %v1494
        %v2235 = vpop.f32.mrb[0].mxu0
        %v2236 = vadd.f32 %v1579, %v2235
        %v2237 = vpop.f32.mrb[0].mxu0
        %v2238 = vadd.f32 %v1583, %v2237
        %v2239 = vpop.f32.mrb[0].mxu0
        %v2240 = vadd.f32 %v1579, %v2239
        %v2241 = vpop.f32.mrb[0].mxu0
        %v2242 = vadd.f32 %v1583, %v2241
        %2243 = vmatprep.mubr.bf16.mxu0 0
        %2244 = vmatmul.mubr.bf16.gmra.mrb[0].mxu0 %v1495
        %v2245 = vpop.f32.mrb[0].mxu0
        %v2246 = vadd.f32 %v1579, %v2245
        %v2247 = vpop.f32.mrb[0].mxu0
        %v2248 = vadd.f32 %v1583, %v2247
        %v2249 = vpop.f32.mrb[0].mxu0
        %v2250 = vadd.f32 %v1579, %v2249
        %v2251 = vpop.f32.mrb[0].mxu0
        %v2252 = vadd.f32 %v1583, %v2251
        %2253 = vmatprep.mubr.bf16.mxu0 0
        %2254 = vmatmul.mubr.bf16.gmra.mrb[0].mxu0 %v1496
        %v2255 = vpop.f32.mrb[0].mxu0
        %v2256 = vadd.f32 %v1579, %v2255
        %v2257 = vpop.f32.mrb[0].mxu0
        %v2258 = vadd.f32 %v1583, %v2257
        %v2259 = vpop.f32.mrb[0].mxu0
        %v2260 = vadd.f32 %v1579, %v2259
        %v2261 = vpop.f32.mrb[0].mxu0
        %v2262 = vadd.f32 %v1583, %v2261
        %2263 = vmatprep.mubr.bf16.mxu0 0
        %2264 = vmatmul.mubr.bf16.gmra.mrb[0].mxu0 %v1497
        %v2265 = vpop.f32.mrb[0].mxu0
        %v2266 = vadd.f32 %v1579, %v2265
        %v2267 = vpop.f32.mrb[0].mxu0
        %v2268 = vadd.f32 %v1583, %v2267
        %v2269 = vpop.f32.mrb[0].mxu0
        %v2270 = vadd.f32 %v1579, %v2269
        %v2271 = vpop.f32.mrb[0].mxu0
        %v2272 = vadd.f32 %v1583, %v2271
        %2273 = vmatprep.mubr.bf16.mxu0 0
        %2274 = vmatmul.mubr.bf16.gmra.mrb[0].mxu0 %v1498
        %v2275 = vpop.f32.mrb[0].mxu0
        %v2276 = vadd.f32 %v1579, %v2275
        %v2277 = vpop.f32.mrb[0].mxu0
        %v2278 = vadd.f32 %v1583, %v2277
        %v2279 = vpop.f32.mrb[0].mxu0
        %v2280 = vadd.f32 %v1579, %v2279
        %v2281 = vpop.f32.mrb[0].mxu0
        %v2282 = vadd.f32 %v1583, %v2281
        %2283 = vmatprep.mubr.bf16.mxu0 0
        %2284 = vmatmul.mubr.bf16.gmra.mrb[0].mxu0 %v1499
        %v2285 = vpop.f32.mrb[0].mxu0
        %v2286 = vadd.f32 %v1579, %v2285
        %v2287 = vpop.f32.mrb[0].mxu0
        %v2288 = vadd.f32 %v1583, %v2287
        %v2289 = vpop.f32.mrb[0].mxu0
        %v2290 = vadd.f32 %v1579, %v2289
        %v2291 = vpop.f32.mrb[0].mxu0
        %v2292 = vadd.f32 %v1583, %v2291
        %2293 = vmatprep.mubr.bf16.mxu0 0
        %2294 = vmatmul.mubr.bf16.gmra.mrb[0].mxu0 %v1500
        %v2295 = vpop.f32.mrb[0].mxu0
        %v2296 = vadd.f32 %v1579, %v2295
        %v2297 = vpop.f32.mrb[0].mxu0
        %v2298 = vadd.f32 %v1583, %v2297
        %v2299 = vpop.f32.mrb[0].mxu0
        %v2300 = vadd.f32 %v1579, %v2299
        %v2301 = vpop.f32.mrb[0].mxu0
        %v2302 = vadd.f32 %v1583, %v2301
        %2303 = vmatprep.mubr.bf16.mxu0 0
        %2304 = vmatmul.mubr.bf16.gmra.mrb[0].mxu0 %v1501
        %v2305 = vpop.f32.mrb[0].mxu0
        %v2306 = vadd.f32 %v1579, %v2305
        %v2307 = vpop.f32.mrb[0].mxu0
        %v2308 = vadd.f32 %v1583, %v2307
        %v2309 = vpop.f32.mrb[0].mxu0
        %v2310 = vadd.f32 %v1579, %v2309
        %v2311 = vpop.f32.mrb[0].mxu0
        %v2312 = vadd.f32 %v1583, %v2311
        %2313 = vdwg.mxu0
        %2314 = vmatprep.subr.bf16.mxu0 %v1805
        %2315 = vmatpush1.bf16.msra.mxu0 %v1804
        %2316 = vmatprep.subr.bf16.mxu0 %v1813
        %2317 = vmatpush1.bf16.msra.mxu0 %v1812
        %2318 = vmatprep.subr.bf16.mxu0 %v1821
        %2319 = vmatpush1.bf16.msra.mxu0 %v1820
        %2320 = vmatprep.subr.bf16.mxu0 %v1829
        %2321 = vmatpush1.bf16.msra.mxu0 %v1828
        %2322 = vmatprep.subr.bf16.mxu0 %v1837
        %2323 = vmatpush1.bf16.msra.mxu0 %v1836
        %2324 = vmatprep.subr.bf16.mxu0 %v1845
        %2325 = vmatpush1.bf16.msra.mxu0 %v1844
        %2326 = vmatprep.subr.bf16.mxu0 %v1853
        %2327 = vmatpush1.bf16.msra.mxu0 %v1852
        %2328 = vmatprep.subr.bf16.mxu0 %v1861
        %2329 = vmatpush1.bf16.msra.mxu0 %v1860
        %2330 = vmatprep.subr.bf16.mxu0 0
        %2331 = vmatpush1.bf16.msra.mxu0 0
        %2332 = vmatprep.subr.bf16.mxu0 0
        %2333 = vmatpush1.bf16.msra.mxu0 0
        %2334 = vmatprep.subr.bf16.mxu0 0
        %2335 = vmatpush1.bf16.msra.mxu0 0
        %2336 = vmatprep.subr.bf16.mxu0 0
        %2337 = vmatpush1.bf16.msra.mxu0 0
        %2338 = vmatprep.subr.bf16.mxu0 0
        %2339 = vmatpush1.bf16.msra.mxu0 0
        %2340 = vmatprep.subr.bf16.mxu0 0
        %2341 = vmatpush1.bf16.msra.mxu0 0
        %2342 = vmatprep.subr.bf16.mxu0 0
        %2343 = vmatpush1.bf16.msra.mxu0 0
        %2344 = vmatprep.subr.bf16.mxu0 0
        %2345 = vmatpush1.bf16.msra.mxu0 0
        %2346 = vmatprep.mubr.bf16.mxu0 0
        %2347 = vmatmul.mubr.bf16.gmra.mrb[0].mxu0 %v1486
        %v2348 = vpop.f32.mrb[0].mxu0
        %v2349 = vadd.f32 %v1587, %v2348
        %v2350 = vpop.f32.mrb[0].mxu0
        %v2351 = vadd.f32 %v1591, %v2350
        %v2352 = vpop.f32.mrb[0].mxu0
        %v2353 = vadd.f32 %v1587, %v2352
        %v2354 = vpop.f32.mrb[0].mxu0
        %v2355 = vadd.f32 %v1591, %v2354
        %2356 = vmatprep.mubr.bf16.mxu0 0
        %2357 = vmatmul.mubr.bf16.gmra.mrb[0].mxu0 %v1487
        %v2358 = vpop.f32.mrb[0].mxu0
        %v2359 = vadd.f32 %v1587, %v2358
        %v2360 = vpop.f32.mrb[0].mxu0
        %v2361 = vadd.f32 %v1591, %v2360
        %v2362 = vpop.f32.mrb[0].mxu0
        %v2363 = vadd.f32 %v1587, %v2362
        %v2364 = vpop.f32.mrb[0].mxu0
        %v2365 = vadd.f32 %v1591, %v2364
        %2366 = vmatprep.mubr.bf16.mxu0 0
        %2367 = vmatmul.mubr.bf16.gmra.mrb[0].mxu0 %v1488
        %v2368 = vpop.f32.mrb[0].mxu0
        %v2369 = vadd.f32 %v1587, %v2368
        %v2370 = vpop.f32.mrb[0].mxu0
        %v2371 = vadd.f32 %v1591, %v2370
        %v2372 = vpop.f32.mrb[0].mxu0
        %v2373 = vadd.f32 %v1587, %v2372
        %v2374 = vpop.f32.mrb[0].mxu0
        %v2375 = vadd.f32 %v1591, %v2374
        %2376 = vmatprep.mubr.bf16.mxu0 0
        %2377 = vmatmul.mubr.bf16.gmra.mrb[0].mxu0 %v1489
        %v2378 = vpop.f32.mrb[0].mxu0
        %v2379 = vadd.f32 %v1587, %v2378
        %v2380 = vpop.f32.mrb[0].mxu0
        %v2381 = vadd.f32 %v1591, %v2380
        %v2382 = vpop.f32.mrb[0].mxu0
        %v2383 = vadd.f32 %v1587, %v2382
        %v2384 = vpop.f32.mrb[0].mxu0
        %v2385 = vadd.f32 %v1591, %v2384
        %2386 = vmatprep.mubr.bf16.mxu0 0
        %2387 = vmatmul.mubr.bf16.gmra.mrb[0].mxu0 %v1490
        %v2388 = vpop.f32.mrb[0].mxu0
        %v2389 = vadd.f32 %v1587, %v2388
        %v2390 = vpop.f32.mrb[0].mxu0
        %v2391 = vadd.f32 %v1591, %v2390
        %v2392 = vpop.f32.mrb[0].mxu0
        %v2393 = vadd.f32 %v1587, %v2392
        %v2394 = vpop.f32.mrb[0].mxu0
        %v2395 = vadd.f32 %v1591, %v2394
        %2396 = vmatprep.mubr.bf16.mxu0 0
        %2397 = vmatmul.mubr.bf16.gmra.mrb[0].mxu0 %v1491
        %v2398 = vpop.f32.mrb[0].mxu0
        %v2399 = vadd.f32 %v1587, %v2398
        %v2400 = vpop.f32.mrb[0].mxu0
        %v2401 = vadd.f32 %v1591, %v2400
        %v2402 = vpop.f32.mrb[0].mxu0
        %v2403 = vadd.f32 %v1587, %v2402
        %v2404 = vpop.f32.mrb[0].mxu0
        %v2405 = vadd.f32 %v1591, %v2404
        %2406 = vmatprep.mubr.bf16.mxu0 0
        %2407 = vmatmul.mubr.bf16.gmra.mrb[0].mxu0 %v1492
        %v2408 = vpop.f32.mrb[0].mxu0
        %v2409 = vadd.f32 %v1587, %v2408
        %v2410 = vpop.f32.mrb[0].mxu0
        %v2411 = vadd.f32 %v1591, %v2410
        %v2412 = vpop.f32.mrb[0].mxu0
        %v2413 = vadd.f32 %v1587, %v2412
        %v2414 = vpop.f32.mrb[0].mxu0
        %v2415 = vadd.f32 %v1591, %v2414
        %2416 = vmatprep.mubr.bf16.mxu0 0
        %2417 = vmatmul.mubr.bf16.gmra.mrb[0].mxu0 %v1493
        %v2418 = vpop.f32.mrb[0].mxu0
        %v2419 = vadd.f32 %v1587, %v2418
        %v2420 = vpop.f32.mrb[0].mxu0
        %v2421 = vadd.f32 %v1591, %v2420
        %v2422 = vpop.f32.mrb[0].mxu0
        %v2423 = vadd.f32 %v1587, %v2422
        %v2424 = vpop.f32.mrb[0].mxu0
        %v2425 = vadd.f32 %v1591, %v2424
        %2426 = vmatprep.mubr.bf16.mxu0 0
        %2427 = vmatmul.mubr.bf16.gmra.mrb[0].mxu0 %v1494
        %v2428 = vpop.f32.mrb[0].mxu0
        %v2429 = vadd.f32 %v1587, %v2428
        %v2430 = vpop.f32.mrb[0].mxu0
        %v2431 = vadd.f32 %v1591, %v2430
        %v2432 = vpop.f32.mrb[0].mxu0
        %v2433 = vadd.f32 %v1587, %v2432
        %v2434 = vpop.f32.mrb[0].mxu0
        %v2435 = vadd.f32 %v1591, %v2434
        %2436 = vmatprep.mubr.bf16.mxu0 0
        %2437 = vmatmul.mubr.bf16.gmra.mrb[0].mxu0 %v1495
        %v2438 = vpop.f32.mrb[0].mxu0
        %v2439 = vadd.f32 %v1587, %v2438
        %v2440 = vpop.f32.mrb[0].mxu0
        %v2441 = vadd.f32 %v1591, %v2440
        %v2442 = vpop.f32.mrb[0].mxu0
        %v2443 = vadd.f32 %v1587, %v2442
        %v2444 = vpop.f32.mrb[0].mxu0
        %v2445 = vadd.f32 %v1591, %v2444
        %2446 = vmatprep.mubr.bf16.mxu0 0
        %2447 = vmatmul.mubr.bf16.gmra.mrb[0].mxu0 %v1496
        %v2448 = vpop.f32.mrb[0].mxu0
        %v2449 = vadd.f32 %v1587, %v2448
        %v2450 = vpop.f32.mrb[0].mxu0
        %v2451 = vadd.f32 %v1591, %v2450
        %v2452 = vpop.f32.mrb[0].mxu0
        %v2453 = vadd.f32 %v1587, %v2452
        %v2454 = vpop.f32.mrb[0].mxu0
        %v2455 = vadd.f32 %v1591, %v2454
        %2456 = vmatprep.mubr.bf16.mxu0 0
        %2457 = vmatmul.mubr.bf16.gmra.mrb[0].mxu0 %v1497
        %v2458 = vpop.f32.mrb[0].mxu0
        %v2459 = vadd.f32 %v1587, %v2458
        %v2460 = vpop.f32.mrb[0].mxu0
        %v2461 = vadd.f32 %v1591, %v2460
        %v2462 = vpop.f32.mrb[0].mxu0
        %v2463 = vadd.f32 %v1587, %v2462
        %v2464 = vpop.f32.mrb[0].mxu0
        %v2465 = vadd.f32 %v1591, %v2464
        %2466 = vmatprep.mubr.bf16.mxu0 0
        %2467 = vmatmul.mubr.bf16.gmra.mrb[0].mxu0 %v1498
        %v2468 = vpop.f32.mrb[0].mxu0
        %v2469 = vadd.f32 %v1587, %v2468
        %v2470 = vpop.f32.mrb[0].mxu0
        %v2471 = vadd.f32 %v1591, %v2470
        %v2472 = vpop.f32.mrb[0].mxu0
        %v2473 = vadd.f32 %v1587, %v2472
        %v2474 = vpop.f32.mrb[0].mxu0
        %v2475 = vadd.f32 %v1591, %v2474
        %2476 = vmatprep.mubr.bf16.mxu0 0
        %2477 = vmatmul.mubr.bf16.gmra.mrb[0].mxu0 %v1499
        %v2478 = vpop.f32.mrb[0].mxu0
        %v2479 = vadd.f32 %v1587, %v2478
        %v2480 = vpop.f32.mrb[0].mxu0
        %v2481 = vadd.f32 %v1591, %v2480
        %v2482 = vpop.f32.mrb[0].mxu0
        %v2483 = vadd.f32 %v1587, %v2482
        %v2484 = vpop.f32.mrb[0].mxu0
        %v2485 = vadd.f32 %v1591, %v2484
        %2486 = vmatprep.mubr.bf16.mxu0 0
        %2487 = vmatmul.mubr.bf16.gmra.mrb[0].mxu0 %v1500
        %v2488 = vpop.f32.mrb[0].mxu0
        %v2489 = vadd.f32 %v1587, %v2488
        %v2490 = vpop.f32.mrb[0].mxu0
        %v2491 = vadd.f32 %v1591, %v2490
        %v2492 = vpop.f32.mrb[0].mxu0
        %v2493 = vadd.f32 %v1587, %v2492
        %v2494 = vpop.f32.mrb[0].mxu0
        %v2495 = vadd.f32 %v1591, %v2494
        %2496 = vmatprep.mubr.bf16.mxu0 0
        %2497 = vmatmul.mubr.bf16.gmra.mrb[0].mxu0 %v1501
        %v2498 = vpop.f32.mrb[0].mxu0
        %v2499 = vadd.f32 %v1587, %v2498
        %v2500 = vpop.f32.mrb[0].mxu0
        %v2501 = vadd.f32 %v1591, %v2500
        %v2502 = vpop.f32.mrb[0].mxu0
        %v2503 = vadd.f32 %v1587, %v2502
        %v2504 = vpop.f32.mrb[0].mxu0
        %v2505 = vadd.f32 %v1591, %v2504
        %2506 = vdwg.mxu0
        %2507 = vmatprep.subr.bf16.mxu0 %v1807
        %2508 = vmatpush1.bf16.msra.mxu0 %v1806
        %2509 = vmatprep.subr.bf16.mxu0 %v1815
        %2510 = vmatpush1.bf16.msra.mxu0 %v1814
        %2511 = vmatprep.subr.bf16.mxu0 %v1823
        %2512 = vmatpush1.bf16.msra.mxu0 %v1822
        %2513 = vmatprep.subr.bf16.mxu0 %v1831
        %2514 = vmatpush1.bf16.msra.mxu0 %v1830
        %2515 = vmatprep.subr.bf16.mxu0 %v1839
        %2516 = vmatpush1.bf16.msra.mxu0 %v1838
        %2517 = vmatprep.subr.bf16.mxu0 %v1847
        %2518 = vmatpush1.bf16.msra.mxu0 %v1846
        %2519 = vmatprep.subr.bf16.mxu0 %v1855
        %2520 = vmatpush1.bf16.msra.mxu0 %v1854
        %2521 = vmatprep.subr.bf16.mxu0 %v1863
        %2522 = vmatpush1.bf16.msra.mxu0 %v1862
        %2523 = vmatprep.subr.bf16.mxu0 0
        %2524 = vmatpush1.bf16.msra.mxu0 0
        %2525 = vmatprep.subr.bf16.mxu0 0
        %2526 = vmatpush1.bf16.msra.mxu0 0
        %2527 = vmatprep.subr.bf16.mxu0 0
        %2528 = vmatpush1.bf16.msra.mxu0 0
        %2529 = vmatprep.subr.bf16.mxu0 0
        %2530 = vmatpush1.bf16.msra.mxu0 0
        %2531 = vmatprep.subr.bf16.mxu0 0
        %2532 = vmatpush1.bf16.msra.mxu0 0
        %2533 = vmatprep.subr.bf16.mxu0 0
        %2534 = vmatpush1.bf16.msra.mxu0 0
        %2535 = vmatprep.subr.bf16.mxu0 0
        %2536 = vmatpush1.bf16.msra.mxu0 0
        %2537 = vmatprep.subr.bf16.mxu0 0
        %2538 = vmatpush1.bf16.msra.mxu0 0
        %2539 = vmatprep.mubr.bf16.mxu0 0
        %2540 = vmatmul.mubr.bf16.gmra.mrb[0].mxu0 %v1486
        %v2541 = vpop.f32.mrb[0].mxu0
        %v2542 = vadd.f32 %v1595, %v2541
        %v2543 = vpop.f32.mrb[0].mxu0
        %v2544 = vadd.f32 %v1599, %v2543
        %v2545 = vpop.f32.mrb[0].mxu0
        %v2546 = vadd.f32 %v1595, %v2545
        %v2547 = vpop.f32.mrb[0].mxu0
        %v2548 = vadd.f32 %v1599, %v2547
        %2549 = vmatprep.mubr.bf16.mxu0 0
        %2550 = vmatmul.mubr.bf16.gmra.mrb[0].mxu0 %v1487
        %v2551 = vpop.f32.mrb[0].mxu0
        %v2552 = vadd.f32 %v1595, %v2551
        %v2553 = vpop.f32.mrb[0].mxu0
        %v2554 = vadd.f32 %v1599, %v2553
        %v2555 = vpop.f32.mrb[0].mxu0
        %v2556 = vadd.f32 %v1595, %v2555
        %v2557 = vpop.f32.mrb[0].mxu0
        %v2558 = vadd.f32 %v1599, %v2557
        %2559 = vmatprep.mubr.bf16.mxu0 0
        %2560 = vmatmul.mubr.bf16.gmra.mrb[0].mxu0 %v1488
        %v2561 = vpop.f32.mrb[0].mxu0
        %v2562 = vadd.f32 %v1595, %v2561
        %v2563 = vpop.f32.mrb[0].mxu0
        %v2564 = vadd.f32 %v1599, %v2563
        %v2565 = vpop.f32.mrb[0].mxu0
        %v2566 = vadd.f32 %v1595, %v2565
        %v2567 = vpop.f32.mrb[0].mxu0
        %v2568 = vadd.f32 %v1599, %v2567
        %2569 = vmatprep.mubr.bf16.mxu0 0
        %2570 = vmatmul.mubr.bf16.gmra.mrb[0].mxu0 %v1489
        %v2571 = vpop.f32.mrb[0].mxu0
        %v2572 = vadd.f32 %v1595, %v2571
        %v2573 = vpop.f32.mrb[0].mxu0
        %v2574 = vadd.f32 %v1599, %v2573
        %v2575 = vpop.f32.mrb[0].mxu0
        %v2576 = vadd.f32 %v1595, %v2575
        %v2577 = vpop.f32.mrb[0].mxu0
        %v2578 = vadd.f32 %v1599, %v2577
        %2579 = vmatprep.mubr.bf16.mxu0 0
        %2580 = vmatmul.mubr.bf16.gmra.mrb[0].mxu0 %v1490
        %v2581 = vpop.f32.mrb[0].mxu0
        %v2582 = vadd.f32 %v1595, %v2581
        %v2583 = vpop.f32.mrb[0].mxu0
        %v2584 = vadd.f32 %v1599, %v2583
        %v2585 = vpop.f32.mrb[0].mxu0
        %v2586 = vadd.f32 %v1595, %v2585
        %v2587 = vpop.f32.mrb[0].mxu0
        %v2588 = vadd.f32 %v1599, %v2587
        %2589 = vmatprep.mubr.bf16.mxu0 0
        %2590 = vmatmul.mubr.bf16.gmra.mrb[0].mxu0 %v1491
        %v2591 = vpop.f32.mrb[0].mxu0
        %v2592 = vadd.f32 %v1595, %v2591
        %v2593 = vpop.f32.mrb[0].mxu0
        %v2594 = vadd.f32 %v1599, %v2593
        %v2595 = vpop.f32.mrb[0].mxu0
        %v2596 = vadd.f32 %v1595, %v2595
        %v2597 = vpop.f32.mrb[0].mxu0
        %v2598 = vadd.f32 %v1599, %v2597
        %2599 = vmatprep.mubr.bf16.mxu0 0
        %2600 = vmatmul.mubr.bf16.gmra.mrb[0].mxu0 %v1492
        %v2601 = vpop.f32.mrb[0].mxu0
        %v2602 = vadd.f32 %v1595, %v2601
        %v2603 = vpop.f32.mrb[0].mxu0
        %v2604 = vadd.f32 %v1599, %v2603
        %v2605 = vpop.f32.mrb[0].mxu0
        %v2606 = vadd.f32 %v1595, %v2605
        %v2607 = vpop.f32.mrb[0].mxu0
        %v2608 = vadd.f32 %v1599, %v2607
        %2609 = vmatprep.mubr.bf16.mxu0 0
        %2610 = vmatmul.mubr.bf16.gmra.mrb[0].mxu0 %v1493
        %v2611 = vpop.f32.mrb[0].mxu0
        %v2612 = vadd.f32 %v1595, %v2611
        %v2613 = vpop.f32.mrb[0].mxu0
        %v2614 = vadd.f32 %v1599, %v2613
        %v2615 = vpop.f32.mrb[0].mxu0
        %v2616 = vadd.f32 %v1595, %v2615
        %v2617 = vpop.f32.mrb[0].mxu0
        %v2618 = vadd.f32 %v1599, %v2617
        %2619 = vmatprep.mubr.bf16.mxu0 0
        %2620 = vmatmul.mubr.bf16.gmra.mrb[0].mxu0 %v1494
        %v2621 = vpop.f32.mrb[0].mxu0
        %v2622 = vadd.f32 %v1595, %v2621
        %v2623 = vpop.f32.mrb[0].mxu0
        %v2624 = vadd.f32 %v1599, %v2623
        %v2625 = vpop.f32.mrb[0].mxu0
        %v2626 = vadd.f32 %v1595, %v2625
        %v2627 = vpop.f32.mrb[0].mxu0
        %v2628 = vadd.f32 %v1599, %v2627
        %2629 = vmatprep.mubr.bf16.mxu0 0
        %2630 = vmatmul.mubr.bf16.gmra.mrb[0].mxu0 %v1495
        %v2631 = vpop.f32.mrb[0].mxu0
        %v2632 = vadd.f32 %v1595, %v2631
        %v2633 = vpop.f32.mrb[0].mxu0
        %v2634 = vadd.f32 %v1599, %v2633
        %v2635 = vpop.f32.mrb[0].mxu0
        %v2636 = vadd.f32 %v1595, %v2635
        %v2637 = vpop.f32.mrb[0].mxu0
        %v2638 = vadd.f32 %v1599, %v2637
        %2639 = vmatprep.mubr.bf16.mxu0 0
        %2640 = vmatmul.mubr.bf16.gmra.mrb[0].mxu0 %v1496
        %v2641 = vpop.f32.mrb[0].mxu0
        %v2642 = vadd.f32 %v1595, %v2641
        %v2643 = vpop.f32.mrb[0].mxu0
        %v2644 = vadd.f32 %v1599, %v2643
        %v2645 = vpop.f32.mrb[0].mxu0
        %v2646 = vadd.f32 %v1595, %v2645
        %v2647 = vpop.f32.mrb[0].mxu0
        %v2648 = vadd.f32 %v1599, %v2647
        %2649 = vmatprep.mubr.bf16.mxu0 0
        %2650 = vmatmul.mubr.bf16.gmra.mrb[0].mxu0 %v1497
        %v2651 = vpop.f32.mrb[0].mxu0
        %v2652 = vadd.f32 %v1595, %v2651
        %v2653 = vpop.f32.mrb[0].mxu0
        %v2654 = vadd.f32 %v1599, %v2653
        %v2655 = vpop.f32.mrb[0].mxu0
        %v2656 = vadd.f32 %v1595, %v2655
        %v2657 = vpop.f32.mrb[0].mxu0
        %v2658 = vadd.f32 %v1599, %v2657
        %2659 = vmatprep.mubr.bf16.mxu0 0
        %2660 = vmatmul.mubr.bf16.gmra.mrb[0].mxu0 %v1498
        %v2661 = vpop.f32.mrb[0].mxu0
        %v2662 = vadd.f32 %v1595, %v2661
        %v2663 = vpop.f32.mrb[0].mxu0
        %v2664 = vadd.f32 %v1599, %v2663
        %v2665 = vpop.f32.mrb[0].mxu0
        %v2666 = vadd.f32 %v1595, %v2665
        %v2667 = vpop.f32.mrb[0].mxu0
        %v2668 = vadd.f32 %v1599, %v2667
        %2669 = vmatprep.mubr.bf16.mxu0 0
        %2670 = vmatmul.mubr.bf16.gmra.mrb[0].mxu0 %v1499
        %v2671 = vpop.f32.mrb[0].mxu0
        %v2672 = vadd.f32 %v1595, %v2671
        %v2673 = vpop.f32.mrb[0].mxu0
        %v2674 = vadd.f32 %v1599, %v2673
        %v2675 = vpop.f32.mrb[0].mxu0
        %v2676 = vadd.f32 %v1595, %v2675
        %v2677 = vpop.f32.mrb[0].mxu0
        %v2678 = vadd.f32 %v1599, %v2677
        %2679 = vmatprep.mubr.bf16.mxu0 0
        %2680 = vmatmul.mubr.bf16.gmra.mrb[0].mxu0 %v1500
        %v2681 = vpop.f32.mrb[0].mxu0
        %v2682 = vadd.f32 %v1595, %v2681
        %v2683 = vpop.f32.mrb[0].mxu0
        %v2684 = vadd.f32 %v1599, %v2683
        %v2685 = vpop.f32.mrb[0].mxu0
        %v2686 = vadd.f32 %v1595, %v2685
        %v2687 = vpop.f32.mrb[0].mxu0
        %v2688 = vadd.f32 %v1599, %v2687
        %2689 = vmatprep.mubr.bf16.mxu0 0
        %2690 = vmatmul.mubr.bf16.gmra.mrb[0].mxu0 %v1501
        %v2691 = vpop.f32.mrb[0].mxu0
        %v2692 = vadd.f32 %v1595, %v2691
        %v2693 = vpop.f32.mrb[0].mxu0
        %v2694 = vadd.f32 %v1599, %v2693
        %v2695 = vpop.f32.mrb[0].mxu0
        %v2696 = vadd.f32 %v1595, %v2695
        %v2697 = vpop.f32.mrb[0].mxu0
        %v2698 = vadd.f32 %v1599, %v2697
        %2699 = vdwg.mxu0
        %v2700 = vmax.f32 %v1963, 0.0
        %v2701 = vmax.f32 %v1965, 0.0
        %v2702 = vmax.f32 %v2156, 0.0
        %v2703 = vmax.f32 %v2158, 0.0
        %v2704 = vmax.f32 %v2349, 0.0
        %v2705 = vmax.f32 %v2351, 0.0
        %v2706 = vmax.f32 %v2542, 0.0
        %v2707 = vmax.f32 %v2544, 0.0
        %v2708 = vmax.f32 %v1967, 0.0
        %v2709 = vmax.f32 %v1969, 0.0
        %v2710 = vmax.f32 %v2160, 0.0
        %v2711 = vmax.f32 %v2162, 0.0
        %v2712 = vmax.f32 %v2353, 0.0
        %v2713 = vmax.f32 %v2355, 0.0
        %v2714 = vmax.f32 %v2546, 0.0
        %v2715 = vmax.f32 %v2548, 0.0
        %v2716 = vmax.f32 %v1973, 0.0
        %v2717 = vmax.f32 %v1975, 0.0
        %v2718 = vmax.f32 %v2166, 0.0
        %v2719 = vmax.f32 %v2168, 0.0
        %v2720 = vmax.f32 %v2359, 0.0
        %v2721 = vmax.f32 %v2361, 0.0
        %v2722 = vmax.f32 %v2552, 0.0
        %v2723 = vmax.f32 %v2554, 0.0
        %v2724 = vmax.f32 %v1977, 0.0
        %v2725 = vmax.f32 %v1979, 0.0
        %v2726 = vmax.f32 %v2170, 0.0
        %v2727 = vmax.f32 %v2172, 0.0
        %v2728 = vmax.f32 %v2363, 0.0
        %v2729 = vmax.f32 %v2365, 0.0
        %v2730 = vmax.f32 %v2556, 0.0
        %v2731 = vmax.f32 %v2558, 0.0
        %v2732 = vmax.f32 %v1983, 0.0
        %v2733 = vmax.f32 %v1985, 0.0
        %v2734 = vmax.f32 %v2176, 0.0
        %v2735 = vmax.f32 %v2178, 0.0
        %v2736 = vmax.f32 %v2369, 0.0
        %v2737 = vmax.f32 %v2371, 0.0
        %v2738 = vmax.f32 %v2562, 0.0
        %v2739 = vmax.f32 %v2564, 0.0
        %v2740 = vmax.f32 %v1987, 0.0
        %v2741 = vmax.f32 %v1989, 0.0
        %v2742 = vmax.f32 %v2180, 0.0
        %v2743 = vmax.f32 %v2182, 0.0
        %v2744 = vmax.f32 %v2373, 0.0
        %v2745 = vmax.f32 %v2375, 0.0
        %v2746 = vmax.f32 %v2566, 0.0
        %v2747 = vmax.f32 %v2568, 0.0
        %v2748 = vmax.f32 %v1993, 0.0
        %v2749 = vmax.f32 %v1995, 0.0
        %v2750 = vmax.f32 %v2186, 0.0
        %v2751 = vmax.f32 %v2188, 0.0
        %v2752 = vmax.f32 %v2379, 0.0
        %v2753 = vmax.f32 %v2381, 0.0
        %v2754 = vmax.f32 %v2572, 0.0
        %v2755 = vmax.f32 %v2574, 0.0
        %v2756 = vmax.f32 %v1997, 0.0
        %v2757 = vmax.f32 %v1999, 0.0
        %v2758 = vmax.f32 %v2190, 0.0
        %v2759 = vmax.f32 %v2192, 0.0
        %v2760 = vmax.f32 %v2383, 0.0
        %v2761 = vmax.f32 %v2385, 0.0
        %v2762 = vmax.f32 %v2576, 0.0
        %v2763 = vmax.f32 %v2578, 0.0
        %v2764 = vmax.f32 %v2003, 0.0
        %v2765 = vmax.f32 %v2005, 0.0
        %v2766 = vmax.f32 %v2196, 0.0
        %v2767 = vmax.f32 %v2198, 0.0
        %v2768 = vmax.f32 %v2389, 0.0
        %v2769 = vmax.f32 %v2391, 0.0
        %v2770 = vmax.f32 %v2582, 0.0
        %v2771 = vmax.f32 %v2584, 0.0
        %v2772 = vmax.f32 %v2007, 0.0
        %v2773 = vmax.f32 %v2009, 0.0
        %v2774 = vmax.f32 %v2200, 0.0
        %v2775 = vmax.f32 %v2202, 0.0
        %v2776 = vmax.f32 %v2393, 0.0
        %v2777 = vmax.f32 %v2395, 0.0
        %v2778 = vmax.f32 %v2586, 0.0
        %v2779 = vmax.f32 %v2588, 0.0
        %v2780 = vmax.f32 %v2013, 0.0
        %v2781 = vmax.f32 %v2015, 0.0
        %v2782 = vmax.f32 %v2206, 0.0
        %v2783 = vmax.f32 %v2208, 0.0
        %v2784 = vmax.f32 %v2399, 0.0
        %v2785 = vmax.f32 %v2401, 0.0
        %v2786 = vmax.f32 %v2592, 0.0
        %v2787 = vmax.f32 %v2594, 0.0
        %v2788 = vmax.f32 %v2017, 0.0
        %v2789 = vmax.f32 %v2019, 0.0
        %v2790 = vmax.f32 %v2210, 0.0
        %v2791 = vmax.f32 %v2212, 0.0
        %v2792 = vmax.f32 %v2403, 0.0
        %v2793 = vmax.f32 %v2405, 0.0
        %v2794 = vmax.f32 %v2596, 0.0
        %v2795 = vmax.f32 %v2598, 0.0
        %v2796 = vmax.f32 %v2023, 0.0
        %v2797 = vmax.f32 %v2025, 0.0
        %v2798 = vmax.f32 %v2216, 0.0
        %v2799 = vmax.f32 %v2218, 0.0
        %v2800 = vmax.f32 %v2409, 0.0
        %v2801 = vmax.f32 %v2411, 0.0
        %v2802 = vmax.f32 %v2602, 0.0
        %v2803 = vmax.f32 %v2604, 0.0
        %v2804 = vmax.f32 %v2027, 0.0
        %v2805 = vmax.f32 %v2029, 0.0
        %v2806 = vmax.f32 %v2220, 0.0
        %v2807 = vmax.f32 %v2222, 0.0
        %v2808 = vmax.f32 %v2413, 0.0
        %v2809 = vmax.f32 %v2415, 0.0
        %v2810 = vmax.f32 %v2606, 0.0
        %v2811 = vmax.f32 %v2608, 0.0
        %v2812 = vmax.f32 %v2033, 0.0
        %v2813 = vmax.f32 %v2035, 0.0
        %v2814 = vmax.f32 %v2226, 0.0
        %v2815 = vmax.f32 %v2228, 0.0
        %v2816 = vmax.f32 %v2419, 0.0
        %v2817 = vmax.f32 %v2421, 0.0
        %v2818 = vmax.f32 %v2612, 0.0
        %v2819 = vmax.f32 %v2614, 0.0
        %v2820 = vmax.f32 %v2037, 0.0
        %v2821 = vmax.f32 %v2039, 0.0
        %v2822 = vmax.f32 %v2230, 0.0
        %v2823 = vmax.f32 %v2232, 0.0
        %v2824 = vmax.f32 %v2423, 0.0
        %v2825 = vmax.f32 %v2425, 0.0
        %v2826 = vmax.f32 %v2616, 0.0
        %v2827 = vmax.f32 %v2618, 0.0
        %v2828 = vmax.f32 %v2043, 0.0
        %v2829 = vmax.f32 %v2045, 0.0
        %v2830 = vmax.f32 %v2236, 0.0
        %v2831 = vmax.f32 %v2238, 0.0
        %v2832 = vmax.f32 %v2429, 0.0
        %v2833 = vmax.f32 %v2431, 0.0
        %v2834 = vmax.f32 %v2622, 0.0
        %v2835 = vmax.f32 %v2624, 0.0
        %v2836 = vmax.f32 %v2047, 0.0
        %v2837 = vmax.f32 %v2049, 0.0
        %v2838 = vmax.f32 %v2240, 0.0
        %v2839 = vmax.f32 %v2242, 0.0
        %v2840 = vmax.f32 %v2433, 0.0
        %v2841 = vmax.f32 %v2435, 0.0
        %v2842 = vmax.f32 %v2626, 0.0
        %v2843 = vmax.f32 %v2628, 0.0
        %v2844 = vmax.f32 %v2053, 0.0
        %v2845 = vmax.f32 %v2055, 0.0
        %v2846 = vmax.f32 %v2246, 0.0
        %v2847 = vmax.f32 %v2248, 0.0
        %v2848 = vmax.f32 %v2439, 0.0
        %v2849 = vmax.f32 %v2441, 0.0
        %v2850 = vmax.f32 %v2632, 0.0
        %v2851 = vmax.f32 %v2634, 0.0
        %v2852 = vmax.f32 %v2057, 0.0
        %v2853 = vmax.f32 %v2059, 0.0
        %v2854 = vmax.f32 %v2250, 0.0
        %v2855 = vmax.f32 %v2252, 0.0
        %v2856 = vmax.f32 %v2443, 0.0
        %v2857 = vmax.f32 %v2445, 0.0
        %v2858 = vmax.f32 %v2636, 0.0
        %v2859 = vmax.f32 %v2638, 0.0
        %v2860 = vmax.f32 %v2063, 0.0
        %v2861 = vmax.f32 %v2065, 0.0
        %v2862 = vmax.f32 %v2256, 0.0
        %v2863 = vmax.f32 %v2258, 0.0
        %v2864 = vmax.f32 %v2449, 0.0
        %v2865 = vmax.f32 %v2451, 0.0
        %v2866 = vmax.f32 %v2642, 0.0
        %v2867 = vmax.f32 %v2644, 0.0
        %v2868 = vmax.f32 %v2067, 0.0
        %v2869 = vmax.f32 %v2069, 0.0
        %v2870 = vmax.f32 %v2260, 0.0
        %v2871 = vmax.f32 %v2262, 0.0
        %v2872 = vmax.f32 %v2453, 0.0
        %v2873 = vmax.f32 %v2455, 0.0
        %v2874 = vmax.f32 %v2646, 0.0
        %v2875 = vmax.f32 %v2648, 0.0
        %v2876 = vmax.f32 %v2073, 0.0
        %v2877 = vmax.f32 %v2075, 0.0
        %v2878 = vmax.f32 %v2266, 0.0
        %v2879 = vmax.f32 %v2268, 0.0
        %v2880 = vmax.f32 %v2459, 0.0
        %v2881 = vmax.f32 %v2461, 0.0
        %v2882 = vmax.f32 %v2652, 0.0
        %v2883 = vmax.f32 %v2654, 0.0
        %v2884 = vmax.f32 %v2077, 0.0
        %v2885 = vmax.f32 %v2079, 0.0
        %v2886 = vmax.f32 %v2270, 0.0
        %v2887 = vmax.f32 %v2272, 0.0
        %v2888 = vmax.f32 %v2463, 0.0
        %v2889 = vmax.f32 %v2465, 0.0
        %v2890 = vmax.f32 %v2656, 0.0
        %v2891 = vmax.f32 %v2658, 0.0
        %v2892 = vmax.f32 %v2083, 0.0
        %v2893 = vmax.f32 %v2085, 0.0
        %v2894 = vmax.f32 %v2276, 0.0
        %v2895 = vmax.f32 %v2278, 0.0
        %v2896 = vmax.f32 %v2469, 0.0
        %v2897 = vmax.f32 %v2471, 0.0
        %v2898 = vmax.f32 %v2662, 0.0
        %v2899 = vmax.f32 %v2664, 0.0
        %v2900 = vmax.f32 %v2087, 0.0
        %v2901 = vmax.f32 %v2089, 0.0
        %v2902 = vmax.f32 %v2280, 0.0
        %v2903 = vmax.f32 %v2282, 0.0
        %v2904 = vmax.f32 %v2473, 0.0
        %v2905 = vmax.f32 %v2475, 0.0
        %v2906 = vmax.f32 %v2666, 0.0
        %v2907 = vmax.f32 %v2668, 0.0
        %v2908 = vmax.f32 %v2093, 0.0
        %v2909 = vmax.f32 %v2095, 0.0
        %v2910 = vmax.f32 %v2286, 0.0
        %v2911 = vmax.f32 %v2288, 0.0
        %v2912 = vmax.f32 %v2479, 0.0
        %v2913 = vmax.f32 %v2481, 0.0
        %v2914 = vmax.f32 %v2672, 0.0
        %v2915 = vmax.f32 %v2674, 0.0
        %v2916 = vmax.f32 %v2097, 0.0
        %v2917 = vmax.f32 %v2099, 0.0
        %v2918 = vmax.f32 %v2290, 0.0
        %v2919 = vmax.f32 %v2292, 0.0
        %v2920 = vmax.f32 %v2483, 0.0
        %v2921 = vmax.f32 %v2485, 0.0
        %v2922 = vmax.f32 %v2676, 0.0
        %v2923 = vmax.f32 %v2678, 0.0
        %v2924 = vmax.f32 %v2103, 0.0
        %v2925 = vmax.f32 %v2105, 0.0
        %v2926 = vmax.f32 %v2296, 0.0
        %v2927 = vmax.f32 %v2298, 0.0
        %v2928 = vmax.f32 %v2489, 0.0
        %v2929 = vmax.f32 %v2491, 0.0
        %v2930 = vmax.f32 %v2682, 0.0
        %v2931 = vmax.f32 %v2684, 0.0
        %v2932 = vmax.f32 %v2107, 0.0
        %v2933 = vmax.f32 %v2109, 0.0
        %v2934 = vmax.f32 %v2300, 0.0
        %v2935 = vmax.f32 %v2302, 0.0
        %v2936 = vmax.f32 %v2493, 0.0
        %v2937 = vmax.f32 %v2495, 0.0
        %v2938 = vmax.f32 %v2686, 0.0
        %v2939 = vmax.f32 %v2688, 0.0
        %v2940 = vmax.f32 %v2113, 0.0
        %v2941 = vmax.f32 %v2115, 0.0
        %v2942 = vmax.f32 %v2306, 0.0
        %v2943 = vmax.f32 %v2308, 0.0
        %v2944 = vmax.f32 %v2499, 0.0
        %v2945 = vmax.f32 %v2501, 0.0
        %v2946 = vmax.f32 %v2692, 0.0
        %v2947 = vmax.f32 %v2694, 0.0
        %v2948 = vmax.f32 %v2117, 0.0
        %v2949 = vmax.f32 %v2119, 0.0
        %v2950 = vmax.f32 %v2310, 0.0
        %v2951 = vmax.f32 %v2312, 0.0
        %v2952 = vmax.f32 %v2503, 0.0
        %v2953 = vmax.f32 %v2505, 0.0
        %v2954 = vmax.f32 %v2696, 0.0
        %v2955 = vmax.f32 %v2698, 0.0
        %v2956 = vmax.f32 %v2700, %v2708
        %v2957 = vmax.f32 %v2956, %v2716
        %v2958 = vmax.f32 %v2957, %v2724
        %v2959 = vmax.f32 %v2958, %v2732
        %v2960 = vmax.f32 %v2959, %v2740
        %v2961 = vmax.f32 %v2960, %v2748
        %v2962 = vmax.f32 %v2961, %v2756
        %v2963 = vmax.f32 %v2962, %v2764
        %v2964 = vmax.f32 %v2963, %v2772
        %v2965 = vmax.f32 %v2964, %v2780
        %v2966 = vmax.f32 %v2965, %v2788
        %v2967 = vmax.f32 %v2966, %v2796
        %v2968 = vmax.f32 %v2967, %v2804
        %v2969 = vmax.f32 %v2968, %v2812
        %v2970 = vmax.f32 %v2969, %v2820
        %v2971 = vmax.f32 %v2970, %v2828
        %v2972 = vmax.f32 %v2971, %v2836
        %v2973 = vmax.f32 %v2972, %v2844
        %v2974 = vmax.f32 %v2973, %v2852
        %v2975 = vmax.f32 %v2974, %v2860
        %v2976 = vmax.f32 %v2975, %v2868
        %v2977 = vmax.f32 %v2976, %v2876
        %v2978 = vmax.f32 %v2977, %v2884
        %v2979 = vmax.f32 %v2978, %v2892
        %v2980 = vmax.f32 %v2979, %v2900
        %v2981 = vmax.f32 %v2980, %v2908
        %v2982 = vmax.f32 %v2981, %v2916
        %v2983 = vmax.f32 %v2982, %v2924
        %v2984 = vmax.f32 %v2983, %v2932
        %v2985 = vmax.f32 %v2984, %v2940
        %v2986 = vmax.f32 %v2985, %v2948
        %v2987 = vrot.slane %v2986, 4
        %v2988 = vmax.f32 %v2986, %v2987
        %v2989 = vrot.slane %v2988, 2
        %v2990 = vmax.f32 %v2988, %v2989
        %v2991 = vrot.slane %v2990, 1
        %v2992 = vmax.f32 %v2990, %v2991
        %v2993 = vmax.f32 %v2701, %v2709
        %v2994 = vmax.f32 %v2993, %v2717
        %v2995 = vmax.f32 %v2994, %v2725
        %v2996 = vmax.f32 %v2995, %v2733
        %v2997 = vmax.f32 %v2996, %v2741
        %v2998 = vmax.f32 %v2997, %v2749
        %v2999 = vmax.f32 %v2998, %v2757
        %v3000 = vmax.f32 %v2999, %v2765
        %v3001 = vmax.f32 %v3000, %v2773
        %v3002 = vmax.f32 %v3001, %v2781
        %v3003 = vmax.f32 %v3002, %v2789
        %v3004 = vmax.f32 %v3003, %v2797
        %v3005 = vmax.f32 %v3004, %v2805
        %v3006 = vmax.f32 %v3005, %v2813
        %v3007 = vmax.f32 %v3006, %v2821
        %v3008 = vmax.f32 %v3007, %v2829
        %v3009 = vmax.f32 %v3008, %v2837
        %v3010 = vmax.f32 %v3009, %v2845
        %v3011 = vmax.f32 %v3010, %v2853
        %v3012 = vmax.f32 %v3011, %v2861
        %v3013 = vmax.f32 %v3012, %v2869
        %v3014 = vmax.f32 %v3013, %v2877
        %v3015 = vmax.f32 %v3014, %v2885
        %v3016 = vmax.f32 %v3015, %v2893
        %v3017 = vmax.f32 %v3016, %v2901
        %v3018 = vmax.f32 %v3017, %v2909
        %v3019 = vmax.f32 %v3018, %v2917
        %v3020 = vmax.f32 %v3019, %v2925
        %v3021 = vmax.f32 %v3020, %v2933
        %v3022 = vmax.f32 %v3021, %v2941
        %v3023 = vmax.f32 %v3022, %v2949
        %v3024 = vrot.slane %v3023, 4
        %v3025 = vmax.f32 %v3023, %v3024
        %v3026 = vrot.slane %v3025, 2
        %v3027 = vmax.f32 %v3025, %v3026
        %v3028 = vrot.slane %v3027, 1
        %v3029 = vmax.f32 %v3027, %v3028
        %v3030 = vmax.f32 %v2702, %v2710
        %v3031 = vmax.f32 %v3030, %v2718
        %v3032 = vmax.f32 %v3031, %v2726
        %v3033 = vmax.f32 %v3032, %v2734
        %v3034 = vmax.f32 %v3033, %v2742
        %v3035 = vmax.f32 %v3034, %v2750
        %v3036 = vmax.f32 %v3035, %v2758
        %v3037 = vmax.f32 %v3036, %v2766
        %v3038 = vmax.f32 %v3037, %v2774
        %v3039 = vmax.f32 %v3038, %v2782
        %v3040 = vmax.f32 %v3039, %v2790
        %v3041 = vmax.f32 %v3040, %v2798
        %v3042 = vmax.f32 %v3041, %v2806
        %v3043 = vmax.f32 %v3042, %v2814
        %v3044 = vmax.f32 %v3043, %v2822
        %v3045 = vmax.f32 %v3044, %v2830
        %v3046 = vmax.f32 %v3045, %v2838
        %v3047 = vmax.f32 %v3046, %v2846
        %v3048 = vmax.f32 %v3047, %v2854
        %v3049 = vmax.f32 %v3048, %v2862
        %v3050 = vmax.f32 %v3049, %v2870
        %v3051 = vmax.f32 %v3050, %v2878
        %v3052 = vmax.f32 %v3051, %v2886
        %v3053 = vmax.f32 %v3052, %v2894
        %v3054 = vmax.f32 %v3053, %v2902
        %v3055 = vmax.f32 %v3054, %v2910
        %v3056 = vmax.f32 %v3055, %v2918
        %v3057 = vmax.f32 %v3056, %v2926
        %v3058 = vmax.f32 %v3057, %v2934
        %v3059 = vmax.f32 %v3058, %v2942
        %v3060 = vmax.f32 %v3059, %v2950
        %v3061 = vrot.slane %v3060, 4
        %v3062 = vmax.f32 %v3060, %v3061
        %v3063 = vrot.slane %v3062, 2
        %v3064 = vmax.f32 %v3062, %v3063
        %v3065 = vrot.slane %v3064, 1
        %v3066 = vmax.f32 %v3064, %v3065
        %v3067 = vmax.f32 %v2703, %v2711
        %v3068 = vmax.f32 %v3067, %v2719
        %v3069 = vmax.f32 %v3068, %v2727
        %v3070 = vmax.f32 %v3069, %v2735
        %v3071 = vmax.f32 %v3070, %v2743
        %v3072 = vmax.f32 %v3071, %v2751
        %v3073 = vmax.f32 %v3072, %v2759
        %v3074 = vmax.f32 %v3073, %v2767
        %v3075 = vmax.f32 %v3074, %v2775
        %v3076 = vmax.f32 %v3075, %v2783
        %v3077 = vmax.f32 %v3076, %v2791
        %v3078 = vmax.f32 %v3077, %v2799
        %v3079 = vmax.f32 %v3078, %v2807
        %v3080 = vmax.f32 %v3079, %v2815
        %v3081 = vmax.f32 %v3080, %v2823
        %v3082 = vmax.f32 %v3081, %v2831
        %v3083 = vmax.f32 %v3082, %v2839
        %v3084 = vmax.f32 %v3083, %v2847
        %v3085 = vmax.f32 %v3084, %v2855
        %v3086 = vmax.f32 %v3085, %v2863
        %v3087 = vmax.f32 %v3086, %v2871
        %v3088 = vmax.f32 %v3087, %v2879
        %v3089 = vmax.f32 %v3088, %v2887
        %v3090 = vmax.f32 %v3089, %v2895
        %v3091 = vmax.f32 %v3090, %v2903
        %v3092 = vmax.f32 %v3091, %v2911
        %v3093 = vmax.f32 %v3092, %v2919
        %v3094 = vmax.f32 %v3093, %v2927
        %v3095 = vmax.f32 %v3094, %v2935
        %v3096 = vmax.f32 %v3095, %v2943
        %v3097 = vmax.f32 %v3096, %v2951
        %v3098 = vrot.slane %v3097, 4
        %v3099 = vmax.f32 %v3097, %v3098
        %v3100 = vrot.slane %v3099, 2
        %v3101 = vmax.f32 %v3099, %v3100
        %v3102 = vrot.slane %v3101, 1
        %v3103 = vmax.f32 %v3101, %v3102
        %v3104 = vmax.f32 %v2704, %v2712
        %v3105 = vmax.f32 %v3104, %v2720
        %v3106 = vmax.f32 %v3105, %v2728
        %v3107 = vmax.f32 %v3106, %v2736
        %v3108 = vmax.f32 %v3107, %v2744
        %v3109 = vmax.f32 %v3108, %v2752
        %v3110 = vmax.f32 %v3109, %v2760
        %v3111 = vmax.f32 %v3110, %v2768
        %v3112 = vmax.f32 %v3111, %v2776
        %v3113 = vmax.f32 %v3112, %v2784
        %v3114 = vmax.f32 %v3113, %v2792
        %v3115 = vmax.f32 %v3114, %v2800
        %v3116 = vmax.f32 %v3115, %v2808
        %v3117 = vmax.f32 %v3116, %v2816
        %v3118 = vmax.f32 %v3117, %v2824
        %v3119 = vmax.f32 %v3118, %v2832
        %v3120 = vmax.f32 %v3119, %v2840
        %v3121 = vmax.f32 %v3120, %v2848
        %v3122 = vmax.f32 %v3121, %v2856
        %v3123 = vmax.f32 %v3122, %v2864
        %v3124 = vmax.f32 %v3123, %v2872
        %v3125 = vmax.f32 %v3124, %v2880
        %v3126 = vmax.f32 %v3125, %v2888
        %v3127 = vmax.f32 %v3126, %v2896
        %v3128 = vmax.f32 %v3127, %v2904
        %v3129 = vmax.f32 %v3128, %v2912
        %v3130 = vmax.f32 %v3129, %v2920
        %v3131 = vmax.f32 %v3130, %v2928
        %v3132 = vmax.f32 %v3131, %v2936
        %v3133 = vmax.f32 %v3132, %v2944
        %v3134 = vmax.f32 %v3133, %v2952
        %v3135 = vrot.slane %v3134, 4
        %v3136 = vmax.f32 %v3134, %v3135
        %v3137 = vrot.slane %v3136, 2
        %v3138 = vmax.f32 %v3136, %v3137
        %v3139 = vrot.slane %v3138, 1
        %v3140 = vmax.f32 %v3138, %v3139
        %v3141 = vmax.f32 %v2705, %v2713
        %v3142 = vmax.f32 %v3141, %v2721
        %v3143 = vmax.f32 %v3142, %v2729
        %v3144 = vmax.f32 %v3143, %v2737
        %v3145 = vmax.f32 %v3144, %v2745
        %v3146 = vmax.f32 %v3145, %v2753
        %v3147 = vmax.f32 %v3146, %v2761
        %v3148 = vmax.f32 %v3147, %v2769
        %v3149 = vmax.f32 %v3148, %v2777
        %v3150 = vmax.f32 %v3149, %v2785
        %v3151 = vmax.f32 %v3150, %v2793
        %v3152 = vmax.f32 %v3151, %v2801
        %v3153 = vmax.f32 %v3152, %v2809
        %v3154 = vmax.f32 %v3153, %v2817
        %v3155 = vmax.f32 %v3154, %v2825
        %v3156 = vmax.f32 %v3155, %v2833
        %v3157 = vmax.f32 %v3156, %v2841
        %v3158 = vmax.f32 %v3157, %v2849
        %v3159 = vmax.f32 %v3158, %v2857
        %v3160 = vmax.f32 %v3159, %v2865
        %v3161 = vmax.f32 %v3160, %v2873
        %v3162 = vmax.f32 %v3161, %v2881
        %v3163 = vmax.f32 %v3162, %v2889
        %v3164 = vmax.f32 %v3163, %v2897
        %v3165 = vmax.f32 %v3164, %v2905
        %v3166 = vmax.f32 %v3165, %v2913
        %v3167 = vmax.f32 %v3166, %v2921
        %v3168 = vmax.f32 %v3167, %v2929
        %v3169 = vmax.f32 %v3168, %v2937
        %v3170 = vmax.f32 %v3169, %v2945
        %v3171 = vmax.f32 %v3170, %v2953
        %v3172 = vrot.slane %v3171, 4
        %v3173 = vmax.f32 %v3171, %v3172
        %v3174 = vrot.slane %v3173, 2
        %v3175 = vmax.f32 %v3173, %v3174
        %v3176 = vrot.slane %v3175, 1
        %v3177 = vmax.f32 %v3175, %v3176
        %v3178 = vmax.f32 %v2706, %v2714
        %v3179 = vmax.f32 %v3178, %v2722
        %v3180 = vmax.f32 %v3179, %v2730
        %v3181 = vmax.f32 %v3180, %v2738
        %v3182 = vmax.f32 %v3181, %v2746
        %v3183 = vmax.f32 %v3182, %v2754
        %v3184 = vmax.f32 %v3183, %v2762
        %v3185 = vmax.f32 %v3184, %v2770
        %v3186 = vmax.f32 %v3185, %v2778
        %v3187 = vmax.f32 %v3186, %v2786
        %v3188 = vmax.f32 %v3187, %v2794
        %v3189 = vmax.f32 %v3188, %v2802
        %v3190 = vmax.f32 %v3189, %v2810
        %v3191 = vmax.f32 %v3190, %v2818
        %v3192 = vmax.f32 %v3191, %v2826
        %v3193 = vmax.f32 %v3192, %v2834
        %v3194 = vmax.f32 %v3193, %v2842
        %v3195 = vmax.f32 %v3194, %v2850
        %v3196 = vmax.f32 %v3195, %v2858
        %v3197 = vmax.f32 %v3196, %v2866
        %v3198 = vmax.f32 %v3197, %v2874
        %v3199 = vmax.f32 %v3198, %v2882
        %v3200 = vmax.f32 %v3199, %v2890
        %v3201 = vmax.f32 %v3200, %v2898
        %v3202 = vmax.f32 %v3201, %v2906
        %v3203 = vmax.f32 %v3202, %v2914
        %v3204 = vmax.f32 %v3203, %v2922
        %v3205 = vmax.f32 %v3204, %v2930
        %v3206 = vmax.f32 %v3205, %v2938
        %v3207 = vmax.f32 %v3206, %v2946
        %v3208 = vmax.f32 %v3207, %v2954
        %v3209 = vrot.slane %v3208, 4
        %v3210 = vmax.f32 %v3208, %v3209
        %v3211 = vrot.slane %v3210, 2
        %v3212 = vmax.f32 %v3210, %v3211
        %v3213 = vrot.slane %v3212, 1
        %v3214 = vmax.f32 %v3212, %v3213
        %v3215 = vmax.f32 %v2707, %v2715
        %v3216 = vmax.f32 %v3215, %v2723
        %v3217 = vmax.f32 %v3216, %v2731
        %v3218 = vmax.f32 %v3217, %v2739
        %v3219 = vmax.f32 %v3218, %v2747
        %v3220 = vmax.f32 %v3219, %v2755
        %v3221 = vmax.f32 %v3220, %v2763
        %v3222 = vmax.f32 %v3221, %v2771
        %v3223 = vmax.f32 %v3222, %v2779
        %v3224 = vmax.f32 %v3223, %v2787
        %v3225 = vmax.f32 %v3224, %v2795
        %v3226 = vmax.f32 %v3225, %v2803
        %v3227 = vmax.f32 %v3226, %v2811
        %v3228 = vmax.f32 %v3227, %v2819
        %v3229 = vmax.f32 %v3228, %v2827
        %v3230 = vmax.f32 %v3229, %v2835
        %v3231 = vmax.f32 %v3230, %v2843
        %v3232 = vmax.f32 %v3231, %v2851
        %v3233 = vmax.f32 %v3232, %v2859
        %v3234 = vmax.f32 %v3233, %v2867
        %v3235 = vmax.f32 %v3234, %v2875
        %v3236 = vmax.f32 %v3235, %v2883
        %v3237 = vmax.f32 %v3236, %v2891
        %v3238 = vmax.f32 %v3237, %v2899
        %v3239 = vmax.f32 %v3238, %v2907
        %v3240 = vmax.f32 %v3239, %v2915
        %v3241 = vmax.f32 %v3240, %v2923
        %v3242 = vmax.f32 %v3241, %v2931
        %v3243 = vmax.f32 %v3242, %v2939
        %v3244 = vmax.f32 %v3243, %v2947
        %v3245 = vmax.f32 %v3244, %v2955
        %v3246 = vrot.slane %v3245, 4
        %v3247 = vmax.f32 %v3245, %v3246
        %v3248 = vrot.slane %v3247, 2
        %v3249 = vmax.f32 %v3247, %v3248
        %v3250 = vrot.slane %v3249, 1
        %v3251 = vmax.f32 %v3249, %v3250
        %p3252 = scmp.eq.s32.totalorder %s34, 0
        // Predicated region
        $region81: #{tpu_custom_call.1} parent=71 // pred_check
          %p3253 = pneg %p3252
        $region82: #{tpu_custom_call.1} parent=71 // pred_check_branch
          %3255 = sbr.rel (%p3253) target = $region84
        $region83: #{tpu_custom_call.1} parent=71 // pred_region
          %3256 = vst [vmem:[#allocation2] sm:$0xff] 0.0
        $region84: #{tpu_custom_call.1} parent=71 // pred_fallthru
          _
        %v3257 = vld [vmem:[#allocation2] sm:$0xff]
        %v3266 = vcombine.low %v2992, %v3029
        %v3267 = vcombine.low %v3066, %v3103
        %v3268 = vcombine.low %v3140, %v3177
        %v3269 = vcombine.low %v3214, %v3251
        %v3271 = vunpack.c.l.s4 1966171168
        %v3272 = vunpack.c.0.s8 %v3271
        %v3273 = vlaneseq
        %v3274 = vshrl.u32 %v3273, 7
        %v3275 = vsub.s32 %v3272, %v3274
        %v3276 = vrot.slane %v3266, %v3275
        %v3278 = vunpack.c.l.s4 1966171168
        %v3279 = vunpack.c.0.s8 %v3278
        %v3280 = vlaneseq
        %v3281 = vshrl.u32 %v3280, 7
        %v3282 = vsub.s32 %v3279, %v3281
        %v3283 = vrot.slane %v3267, %v3282
        %v3285 = vunpack.c.l.s4 1966171168
        %v3286 = vunpack.c.0.s8 %v3285
        %v3287 = vlaneseq
        %v3288 = vshrl.u32 %v3287, 7
        %v3289 = vsub.s32 %v3286, %v3288
        %v3290 = vrot.slane %v3268, %v3289
        %v3292 = vunpack.c.l.s4 1966171168
        %v3293 = vunpack.c.0.s8 %v3292
        %v3294 = vlaneseq
        %v3295 = vshrl.u32 %v3294, 7
        %v3296 = vsub.s32 %v3293, %v3295
        %v3297 = vrot.slane %v3269, %v3296
        %v3298 = vcombine.low %v3276, %v3283
        %v3299 = vcombine.low %v3290, %v3297
        %v3301 = vunpack.c.l.s4 1966171168
        %v3302 = vunpack.c.0.s8 %v3301
        %v3303 = vlaneseq
        %v3304 = vshrl.u32 %v3303, 7
        %v3305 = vsub.s32 %v3302, %v3304
        %v3306 = vrot.slane %v3298, %v3305
        %v3308 = vunpack.c.l.s4 1966171168
        %v3309 = vunpack.c.0.s8 %v3308
        %v3310 = vlaneseq
        %v3311 = vshrl.u32 %v3310, 7
        %v3312 = vsub.s32 %v3309, %v3311
        %v3313 = vrot.slane %v3299, %v3312
        %v3314 = vcombine.low %v3306, %v3313
        %v3316 = vmax.f32 %v3257, %v3314
        %3317 = vst [vmem:[#allocation2] sm:$0xff] %v3316
        // Predicated region
        $region85: #{tpu_custom_call.1} parent=71 // pred_check
          %p3318 = pneg %p3252
        $region86: #{tpu_custom_call.1} parent=71 // pred_check_branch
          %3320 = sbr.rel (%p3318) target = $region88
        $region87: #{tpu_custom_call.1} parent=71 // pred_region
          %v3321 = vld [vmem:[#allocation2] sm:$0xff]
          %v3323 = vlaneseq
          %v3324 = vshrl.u32 %v3323, 7
          %v3325 = vsub.s32 0, %v3324
          %v3326 = vrot.slane %v3321, %v3325
          %v3327 = vlaneseq
          %v3328 = vshrl.u32 %v3327, 7
          %v3329 = vsub.s32 1, %v3328
          %v3330 = vrot.slane %v3321, %v3329
          %v3331 = vlaneseq
          %v3332 = vshrl.u32 %v3331, 7
          %v3333 = vsub.s32 2, %v3332
          %v3334 = vrot.slane %v3321, %v3333
          %v3335 = vlaneseq
          %v3336 = vshrl.u32 %v3335, 7
          %v3337 = vsub.s32 3, %v3336
          %v3338 = vrot.slane %v3321, %v3337
          %v3339 = vlaneseq
          %v3340 = vshrl.u32 %v3339, 7
          %v3341 = vsub.s32 4, %v3340
          %v3342 = vrot.slane %v3321, %v3341
          %v3343 = vlaneseq
          %v3344 = vshrl.u32 %v3343, 7
          %v3345 = vsub.s32 5, %v3344
          %v3346 = vrot.slane %v3321, %v3345
          %v3347 = vlaneseq
          %v3348 = vshrl.u32 %v3347, 7
          %v3349 = vsub.s32 6, %v3348
          %v3350 = vrot.slane %v3321, %v3349
          %v3351 = vlaneseq
          %v3352 = vshrl.u32 %v3351, 7
          %v3353 = vsub.s32 7, %v3352
          %v3354 = vrot.slane %v3321, %v3353
          %v3363 = vpack.c.bf16 %v3326, %v3326
          %v3364 = vpack.c.bf16 %v3330, %v3330
          %v3365 = vpack.c.bf16 %v3334, %v3334
          %v3366 = vpack.c.bf16 %v3338, %v3338
          %v3367 = vpack.c.bf16 %v3342, %v3342
          %v3368 = vpack.c.bf16 %v3346, %v3346
          %v3369 = vpack.c.bf16 %v3350, %v3350
          %v3370 = vpack.c.bf16 %v3354, %v3354
          %v3371 = vld [vmem:[#allocation3] sm:$0xff]
          %v3372 = vld [vmem:[#allocation3 + $0x8] sm:$0xff]
          %v3373 = vld [vmem:[#allocation3 + $0x10] sm:$0xff]
          %v3374 = vld [vmem:[#allocation3 + $0x18] sm:$0xff]
          %v3375 = vld [vmem:[#allocation3 + $0x20] sm:$0xff]
          %v3376 = vld [vmem:[#allocation3 + $0x28] sm:$0xff]
          %v3377 = vld [vmem:[#allocation3 + $0x30] sm:$0xff]
          %v3378 = vld [vmem:[#allocation3 + $0x38] sm:$0xff]
          %v3379 = vld [vmem:[#allocation3 + $0x40] sm:$0xff]
          %v3380 = vld [vmem:[#allocation3 + $0x48] sm:$0xff]
          %v3381 = vld [vmem:[#allocation3 + $0x50] sm:$0xff]
          %v3382 = vld [vmem:[#allocation3 + $0x58] sm:$0xff]
          %v3383 = vld [vmem:[#allocation3 + $0x60] sm:$0xff]
          %v3384 = vld [vmem:[#allocation3 + $0x68] sm:$0xff]
          %v3385 = vld [vmem:[#allocation3 + $0x70] sm:$0xff]
          %v3386 = vld [vmem:[#allocation3 + $0x78] sm:$0xff]
          %v3387 = vld [vmem:[#allocation3 + $0x80] sm:$0xff]
          %v3388 = vld [vmem:[#allocation3 + $0x88] sm:$0xff]
          %v3389 = vld [vmem:[#allocation3 + $0x90] sm:$0xff]
          %v3390 = vld [vmem:[#allocation3 + $0x98] sm:$0xff]
          %v3391 = vld [vmem:[#allocation3 + $0xa0] sm:$0xff]
          %v3392 = vld [vmem:[#allocation3 + $0xa8] sm:$0xff]
          %v3393 = vld [vmem:[#allocation3 + $0xb0] sm:$0xff]
          %v3394 = vld [vmem:[#allocation3 + $0xb8] sm:$0xff]
          %v3395 = vld [vmem:[#allocation3 + $0xc0] sm:$0xff]
          %v3396 = vld [vmem:[#allocation3 + $0xc8] sm:$0xff]
          %v3397 = vld [vmem:[#allocation3 + $0xd0] sm:$0xff]
          %v3398 = vld [vmem:[#allocation3 + $0xd8] sm:$0xff]
          %v3399 = vld [vmem:[#allocation3 + $0xe0] sm:$0xff]
          %v3400 = vld [vmem:[#allocation3 + $0xe8] sm:$0xff]
          %v3401 = vld [vmem:[#allocation3 + $0xf0] sm:$0xff]
          %v3402 = vld [vmem:[#allocation3 + $0xf8] sm:$0xff]
          %v3403 = vld [vmem:[#allocation3 + $0x100] sm:$0xff]
          %v3404 = vld [vmem:[#allocation3 + $0x108] sm:$0xff]
          %v3405 = vld [vmem:[#allocation3 + $0x110] sm:$0xff]
          %v3406 = vld [vmem:[#allocation3 + $0x118] sm:$0xff]
          %v3407 = vld [vmem:[#allocation3 + $0x120] sm:$0xff]
          %v3408 = vld [vmem:[#allocation3 + $0x128] sm:$0xff]
          %v3409 = vld [vmem:[#allocation3 + $0x130] sm:$0xff]
          %v3410 = vld [vmem:[#allocation3 + $0x138] sm:$0xff]
          %v3411 = vld [vmem:[#allocation3 + $0x140] sm:$0xff]
          %v3412 = vld [vmem:[#allocation3 + $0x148] sm:$0xff]
          %v3413 = vld [vmem:[#allocation3 + $0x150] sm:$0xff]
          %v3414 = vld [vmem:[#allocation3 + $0x158] sm:$0xff]
          %v3415 = vld [vmem:[#allocation3 + $0x160] sm:$0xff]
          %v3416 = vld [vmem:[#allocation3 + $0x168] sm:$0xff]
          %v3417 = vld [vmem:[#allocation3 + $0x170] sm:$0xff]
          %v3418 = vld [vmem:[#allocation3 + $0x178] sm:$0xff]
          %v3419 = vld [vmem:[#allocation3 + $0x180] sm:$0xff]
          %v3420 = vld [vmem:[#allocation3 + $0x188] sm:$0xff]
          %v3421 = vld [vmem:[#allocation3 + $0x190] sm:$0xff]
          %v3422 = vld [vmem:[#allocation3 + $0x198] sm:$0xff]
          %v3423 = vld [vmem:[#allocation3 + $0x1a0] sm:$0xff]
          %v3424 = vld [vmem:[#allocation3 + $0x1a8] sm:$0xff]
          %v3425 = vld [vmem:[#allocation3 + $0x1b0] sm:$0xff]
          %v3426 = vld [vmem:[#allocation3 + $0x1b8] sm:$0xff]
          %v3427 = vld [vmem:[#allocation3 + $0x1c0] sm:$0xff]
          %v3428 = vld [vmem:[#allocation3 + $0x1c8] sm:$0xff]
          %v3429 = vld [vmem:[#allocation3 + $0x1d0] sm:$0xff]
          %v3430 = vld [vmem:[#allocation3 + $0x1d8] sm:$0xff]
          %v3431 = vld [vmem:[#allocation3 + $0x1e0] sm:$0xff]
          %v3432 = vld [vmem:[#allocation3 + $0x1e8] sm:$0xff]
          %v3433 = vld [vmem:[#allocation3 + $0x1f0] sm:$0xff]
          %v3434 = vld [vmem:[#allocation3 + $0x1f8] sm:$0xff]
          %v3435 = vld [vmem:[#allocation3 + $0x200] sm:$0xff]
          %v3436 = vld [vmem:[#allocation3 + $0x208] sm:$0xff]
          %v3437 = vld [vmem:[#allocation3 + $0x210] sm:$0xff]
          %v3438 = vld [vmem:[#allocation3 + $0x218] sm:$0xff]
          %v3439 = vld [vmem:[#allocation3 + $0x220] sm:$0xff]
          %v3440 = vld [vmem:[#allocation3 + $0x228] sm:$0xff]
          %v3441 = vld [vmem:[#allocation3 + $0x230] sm:$0xff]
          %v3442 = vld [vmem:[#allocation3 + $0x238] sm:$0xff]
          %v3443 = vld [vmem:[#allocation3 + $0x240] sm:$0xff]
          %v3444 = vld [vmem:[#allocation3 + $0x248] sm:$0xff]
          %v3445 = vld [vmem:[#allocation3 + $0x250] sm:$0xff]
          %v3446 = vld [vmem:[#allocation3 + $0x258] sm:$0xff]
          %v3447 = vld [vmem:[#allocation3 + $0x260] sm:$0xff]
          %v3448 = vld [vmem:[#allocation3 + $0x268] sm:$0xff]
          %v3449 = vld [vmem:[#allocation3 + $0x270] sm:$0xff]
          %v3450 = vld [vmem:[#allocation3 + $0x278] sm:$0xff]
          %v3451 = vld [vmem:[#allocation3 + $0x280] sm:$0xff]
          %v3452 = vld [vmem:[#allocation3 + $0x288] sm:$0xff]
          %v3453 = vld [vmem:[#allocation3 + $0x290] sm:$0xff]
          %v3454 = vld [vmem:[#allocation3 + $0x298] sm:$0xff]
          %v3455 = vld [vmem:[#allocation3 + $0x2a0] sm:$0xff]
          %v3456 = vld [vmem:[#allocation3 + $0x2a8] sm:$0xff]
          %v3457 = vld [vmem:[#allocation3 + $0x2b0] sm:$0xff]
          %v3458 = vld [vmem:[#allocation3 + $0x2b8] sm:$0xff]
          %v3459 = vld [vmem:[#allocation3 + $0x2c0] sm:$0xff]
          %v3460 = vld [vmem:[#allocation3 + $0x2c8] sm:$0xff]
          %v3461 = vld [vmem:[#allocation3 + $0x2d0] sm:$0xff]
          %v3462 = vld [vmem:[#allocation3 + $0x2d8] sm:$0xff]
          %v3463 = vld [vmem:[#allocation3 + $0x2e0] sm:$0xff]
          %v3464 = vld [vmem:[#allocation3 + $0x2e8] sm:$0xff]
          %v3465 = vld [vmem:[#allocation3 + $0x2f0] sm:$0xff]
          %v3466 = vld [vmem:[#allocation3 + $0x2f8] sm:$0xff]
          %v3467 = vld [vmem:[#allocation3 + $0x300] sm:$0xff]
          %v3468 = vld [vmem:[#allocation3 + $0x308] sm:$0xff]
          %v3469 = vld [vmem:[#allocation3 + $0x310] sm:$0xff]
          %v3470 = vld [vmem:[#allocation3 + $0x318] sm:$0xff]
          %v3471 = vld [vmem:[#allocation3 + $0x320] sm:$0xff]
          %v3472 = vld [vmem:[#allocation3 + $0x328] sm:$0xff]
          %v3473 = vld [vmem:[#allocation3 + $0x330] sm:$0xff]
          %v3474 = vld [vmem:[#allocation3 + $0x338] sm:$0xff]
          %v3475 = vld [vmem:[#allocation3 + $0x340] sm:$0xff]
          %v3476 = vld [vmem:[#allocation3 + $0x348] sm:$0xff]
          %v3477 = vld [vmem:[#allocation3 + $0x350] sm:$0xff]
          %v3478 = vld [vmem:[#allocation3 + $0x358] sm:$0xff]
          %v3479 = vld [vmem:[#allocation3 + $0x360] sm:$0xff]
          %v3480 = vld [vmem:[#allocation3 + $0x368] sm:$0xff]
          %v3481 = vld [vmem:[#allocation3 + $0x370] sm:$0xff]
          %v3482 = vld [vmem:[#allocation3 + $0x378] sm:$0xff]
          %v3483 = vld [vmem:[#allocation3 + $0x380] sm:$0xff]
          %v3484 = vld [vmem:[#allocation3 + $0x388] sm:$0xff]
          %v3485 = vld [vmem:[#allocation3 + $0x390] sm:$0xff]
          %v3486 = vld [vmem:[#allocation3 + $0x398] sm:$0xff]
          %v3487 = vld [vmem:[#allocation3 + $0x3a0] sm:$0xff]
          %v3488 = vld [vmem:[#allocation3 + $0x3a8] sm:$0xff]
          %v3489 = vld [vmem:[#allocation3 + $0x3b0] sm:$0xff]
          %v3490 = vld [vmem:[#allocation3 + $0x3b8] sm:$0xff]
          %v3491 = vld [vmem:[#allocation3 + $0x3c0] sm:$0xff]
          %v3492 = vld [vmem:[#allocation3 + $0x3c8] sm:$0xff]
          %v3493 = vld [vmem:[#allocation3 + $0x3d0] sm:$0xff]
          %v3494 = vld [vmem:[#allocation3 + $0x3d8] sm:$0xff]
          %v3495 = vld [vmem:[#allocation3 + $0x3e0] sm:$0xff]
          %v3496 = vld [vmem:[#allocation3 + $0x3e8] sm:$0xff]
          %v3497 = vld [vmem:[#allocation3 + $0x3f0] sm:$0xff]
          %v3498 = vld [vmem:[#allocation3 + $0x3f8] sm:$0xff]
          %v3499 = vld [vmem:[#allocation3 + $0x400] sm:$0xff]
          %v3500 = vld [vmem:[#allocation3 + $0x408] sm:$0xff]
          %v3501 = vld [vmem:[#allocation3 + $0x410] sm:$0xff]
          %v3502 = vld [vmem:[#allocation3 + $0x418] sm:$0xff]
          %v3503 = vld [vmem:[#allocation3 + $0x420] sm:$0xff]
          %v3504 = vld [vmem:[#allocation3 + $0x428] sm:$0xff]
          %v3505 = vld [vmem:[#allocation3 + $0x430] sm:$0xff]
          %v3506 = vld [vmem:[#allocation3 + $0x438] sm:$0xff]
          %v3507 = vld [vmem:[#allocation3 + $0x440] sm:$0xff]
          %v3508 = vld [vmem:[#allocation3 + $0x448] sm:$0xff]
          %v3509 = vld [vmem:[#allocation3 + $0x450] sm:$0xff]
          %v3510 = vld [vmem:[#allocation3 + $0x458] sm:$0xff]
          %v3511 = vld [vmem:[#allocation3 + $0x460] sm:$0xff]
          %v3512 = vld [vmem:[#allocation3 + $0x468] sm:$0xff]
          %v3513 = vld [vmem:[#allocation3 + $0x470] sm:$0xff]
          %v3514 = vld [vmem:[#allocation3 + $0x478] sm:$0xff]
          %v3515 = vld [vmem:[#allocation3 + $0x480] sm:$0xff]
          %v3516 = vld [vmem:[#allocation3 + $0x488] sm:$0xff]
          %v3517 = vld [vmem:[#allocation3 + $0x490] sm:$0xff]
          %v3518 = vld [vmem:[#allocation3 + $0x498] sm:$0xff]
          %v3519 = vld [vmem:[#allocation3 + $0x4a0] sm:$0xff]
          %v3520 = vld [vmem:[#allocation3 + $0x4a8] sm:$0xff]
          %v3521 = vld [vmem:[#allocation3 + $0x4b0] sm:$0xff]
          %v3522 = vld [vmem:[#allocation3 + $0x4b8] sm:$0xff]
          %v3523 = vld [vmem:[#allocation3 + $0x4c0] sm:$0xff]
          %v3524 = vld [vmem:[#allocation3 + $0x4c8] sm:$0xff]
          %v3525 = vld [vmem:[#allocation3 + $0x4d0] sm:$0xff]
          %v3526 = vld [vmem:[#allocation3 + $0x4d8] sm:$0xff]
          %v3527 = vld [vmem:[#allocation3 + $0x4e0] sm:$0xff]
          %v3528 = vld [vmem:[#allocation3 + $0x4e8] sm:$0xff]
          %v3529 = vld [vmem:[#allocation3 + $0x4f0] sm:$0xff]
          %v3530 = vld [vmem:[#allocation3 + $0x4f8] sm:$0xff]
          %v3531 = vld [vmem:[#allocation3 + $0x500] sm:$0xff]
          %v3532 = vld [vmem:[#allocation3 + $0x508] sm:$0xff]
          %v3533 = vld [vmem:[#allocation3 + $0x510] sm:$0xff]
          %v3534 = vld [vmem:[#allocation3 + $0x518] sm:$0xff]
          %v3535 = vld [vmem:[#allocation3 + $0x520] sm:$0xff]
          %v3536 = vld [vmem:[#allocation3 + $0x528] sm:$0xff]
          %v3537 = vld [vmem:[#allocation3 + $0x530] sm:$0xff]
          %v3538 = vld [vmem:[#allocation3 + $0x538] sm:$0xff]
          %v3539 = vld [vmem:[#allocation3 + $0x540] sm:$0xff]
          %v3540 = vld [vmem:[#allocation3 + $0x548] sm:$0xff]
          %v3541 = vld [vmem:[#allocation3 + $0x550] sm:$0xff]
          %v3542 = vld [vmem:[#allocation3 + $0x558] sm:$0xff]
          %v3543 = vld [vmem:[#allocation3 + $0x560] sm:$0xff]
          %v3544 = vld [vmem:[#allocation3 + $0x568] sm:$0xff]
          %v3545 = vld [vmem:[#allocation3 + $0x570] sm:$0xff]
          %v3546 = vld [vmem:[#allocation3 + $0x578] sm:$0xff]
          %v3547 = vld [vmem:[#allocation3 + $0x580] sm:$0xff]
          %v3548 = vld [vmem:[#allocation3 + $0x588] sm:$0xff]
          %v3549 = vld [vmem:[#allocation3 + $0x590] sm:$0xff]
          %v3550 = vld [vmem:[#allocation3 + $0x598] sm:$0xff]
          %v3551 = vld [vmem:[#allocation3 + $0x5a0] sm:$0xff]
          %v3552 = vld [vmem:[#allocation3 + $0x5a8] sm:$0xff]
          %v3553 = vld [vmem:[#allocation3 + $0x5b0] sm:$0xff]
          %v3554 = vld [vmem:[#allocation3 + $0x5b8] sm:$0xff]
          %v3555 = vld [vmem:[#allocation3 + $0x5c0] sm:$0xff]
          %v3556 = vld [vmem:[#allocation3 + $0x5c8] sm:$0xff]
          %v3557 = vld [vmem:[#allocation3 + $0x5d0] sm:$0xff]
          %v3558 = vld [vmem:[#allocation3 + $0x5d8] sm:$0xff]
          %v3559 = vld [vmem:[#allocation3 + $0x5e0] sm:$0xff]
          %v3560 = vld [vmem:[#allocation3 + $0x5e8] sm:$0xff]
          %v3561 = vld [vmem:[#allocation3 + $0x5f0] sm:$0xff]
          %v3562 = vld [vmem:[#allocation3 + $0x5f8] sm:$0xff]
          %v3563 = vld [vmem:[#allocation3 + $0x600] sm:$0xff]
          %v3564 = vld [vmem:[#allocation3 + $0x608] sm:$0xff]
          %v3565 = vld [vmem:[#allocation3 + $0x610] sm:$0xff]
          %v3566 = vld [vmem:[#allocation3 + $0x618] sm:$0xff]
          %v3567 = vld [vmem:[#allocation3 + $0x620] sm:$0xff]
          %v3568 = vld [vmem:[#allocation3 + $0x628] sm:$0xff]
          %v3569 = vld [vmem:[#allocation3 + $0x630] sm:$0xff]
          %v3570 = vld [vmem:[#allocation3 + $0x638] sm:$0xff]
          %v3571 = vld [vmem:[#allocation3 + $0x640] sm:$0xff]
          %v3572 = vld [vmem:[#allocation3 + $0x648] sm:$0xff]
          %v3573 = vld [vmem:[#allocation3 + $0x650] sm:$0xff]
          %v3574 = vld [vmem:[#allocation3 + $0x658] sm:$0xff]
          %v3575 = vld [vmem:[#allocation3 + $0x660] sm:$0xff]
          %v3576 = vld [vmem:[#allocation3 + $0x668] sm:$0xff]
          %v3577 = vld [vmem:[#allocation3 + $0x670] sm:$0xff]
          %v3578 = vld [vmem:[#allocation3 + $0x678] sm:$0xff]
          %v3579 = vld [vmem:[#allocation3 + $0x680] sm:$0xff]
          %v3580 = vld [vmem:[#allocation3 + $0x688] sm:$0xff]
          %v3581 = vld [vmem:[#allocation3 + $0x690] sm:$0xff]
          %v3582 = vld [vmem:[#allocation3 + $0x698] sm:$0xff]
          %v3583 = vld [vmem:[#allocation3 + $0x6a0] sm:$0xff]
          %v3584 = vld [vmem:[#allocation3 + $0x6a8] sm:$0xff]
          %v3585 = vld [vmem:[#allocation3 + $0x6b0] sm:$0xff]
          %v3586 = vld [vmem:[#allocation3 + $0x6b8] sm:$0xff]
          %v3587 = vld [vmem:[#allocation3 + $0x6c0] sm:$0xff]
          %v3588 = vld [vmem:[#allocation3 + $0x6c8] sm:$0xff]
          %v3589 = vld [vmem:[#allocation3 + $0x6d0] sm:$0xff]
          %v3590 = vld [vmem:[#allocation3 + $0x6d8] sm:$0xff]
          %v3591 = vld [vmem:[#allocation3 + $0x6e0] sm:$0xff]
          %v3592 = vld [vmem:[#allocation3 + $0x6e8] sm:$0xff]
          %v3593 = vld [vmem:[#allocation3 + $0x6f0] sm:$0xff]
          %v3594 = vld [vmem:[#allocation3 + $0x6f8] sm:$0xff]
          %v3595 = vld [vmem:[#allocation3 + $0x700] sm:$0xff]
          %v3596 = vld [vmem:[#allocation3 + $0x708] sm:$0xff]
          %v3597 = vld [vmem:[#allocation3 + $0x710] sm:$0xff]
          %v3598 = vld [vmem:[#allocation3 + $0x718] sm:$0xff]
          %v3599 = vld [vmem:[#allocation3 + $0x720] sm:$0xff]
          %v3600 = vld [vmem:[#allocation3 + $0x728] sm:$0xff]
          %v3601 = vld [vmem:[#allocation3 + $0x730] sm:$0xff]
          %v3602 = vld [vmem:[#allocation3 + $0x738] sm:$0xff]
          %v3603 = vld [vmem:[#allocation3 + $0x740] sm:$0xff]
          %v3604 = vld [vmem:[#allocation3 + $0x748] sm:$0xff]
          %v3605 = vld [vmem:[#allocation3 + $0x750] sm:$0xff]
          %v3606 = vld [vmem:[#allocation3 + $0x758] sm:$0xff]
          %v3607 = vld [vmem:[#allocation3 + $0x760] sm:$0xff]
          %v3608 = vld [vmem:[#allocation3 + $0x768] sm:$0xff]
          %v3609 = vld [vmem:[#allocation3 + $0x770] sm:$0xff]
          %v3610 = vld [vmem:[#allocation3 + $0x778] sm:$0xff]
          %v3611 = vld [vmem:[#allocation3 + $0x780] sm:$0xff]
          %v3612 = vld [vmem:[#allocation3 + $0x788] sm:$0xff]
          %v3613 = vld [vmem:[#allocation3 + $0x790] sm:$0xff]
          %v3614 = vld [vmem:[#allocation3 + $0x798] sm:$0xff]
          %v3615 = vld [vmem:[#allocation3 + $0x7a0] sm:$0xff]
          %v3616 = vld [vmem:[#allocation3 + $0x7a8] sm:$0xff]
          %v3617 = vld [vmem:[#allocation3 + $0x7b0] sm:$0xff]
          %v3618 = vld [vmem:[#allocation3 + $0x7b8] sm:$0xff]
          %v3619 = vld [vmem:[#allocation3 + $0x7c0] sm:$0xff]
          %v3620 = vld [vmem:[#allocation3 + $0x7c8] sm:$0xff]
          %v3621 = vld [vmem:[#allocation3 + $0x7d0] sm:$0xff]
          %v3622 = vld [vmem:[#allocation3 + $0x7d8] sm:$0xff]
          %v3623 = vld [vmem:[#allocation3 + $0x7e0] sm:$0xff]
          %v3624 = vld [vmem:[#allocation3 + $0x7e8] sm:$0xff]
          %v3625 = vld [vmem:[#allocation3 + $0x7f0] sm:$0xff]
          %v3626 = vld [vmem:[#allocation3 + $0x7f8] sm:$0xff]
          %v3627 = vld [vmem:[%s8] sm:$0xf]
          %v3884 = vunpack.c.l.b16 %v3371
          %v3885 = vunpack.c.h.b16 %v3371
          %v3886 = vunpack.c.l.b16 %v3372
          %v3887 = vunpack.c.h.b16 %v3372
          %v3888 = vunpack.c.l.b16 %v3373
          %v3889 = vunpack.c.h.b16 %v3373
          %v3890 = vunpack.c.l.b16 %v3374
          %v3891 = vunpack.c.h.b16 %v3374
          %v3892 = vunpack.c.l.b16 %v3375
          %v3893 = vunpack.c.h.b16 %v3375
          %v3894 = vunpack.c.l.b16 %v3376
          %v3895 = vunpack.c.h.b16 %v3376
          %v3896 = vunpack.c.l.b16 %v3377
          %v3897 = vunpack.c.h.b16 %v3377
          %v3898 = vunpack.c.l.b16 %v3378
          %v3899 = vunpack.c.h.b16 %v3378
          %v3900 = vunpack.c.l.b16 %v3379
          %v3901 = vunpack.c.h.b16 %v3379
          %v3902 = vunpack.c.l.b16 %v3380
          %v3903 = vunpack.c.h.b16 %v3380
          %v3904 = vunpack.c.l.b16 %v3381
          %v3905 = vunpack.c.h.b16 %v3381
          %v3906 = vunpack.c.l.b16 %v3382
          %v3907 = vunpack.c.h.b16 %v3382
          %v3908 = vunpack.c.l.b16 %v3383
          %v3909 = vunpack.c.h.b16 %v3383
          %v3910 = vunpack.c.l.b16 %v3384
          %v3911 = vunpack.c.h.b16 %v3384
          %v3912 = vunpack.c.l.b16 %v3385
          %v3913 = vunpack.c.h.b16 %v3385
          %v3914 = vunpack.c.l.b16 %v3386
          %v3915 = vunpack.c.h.b16 %v3386
          %v3916 = vunpack.c.l.b16 %v3387
          %v3917 = vunpack.c.h.b16 %v3387
          %v3918 = vunpack.c.l.b16 %v3388
          %v3919 = vunpack.c.h.b16 %v3388
          %v3920 = vunpack.c.l.b16 %v3389
          %v3921 = vunpack.c.h.b16 %v3389
          %v3922 = vunpack.c.l.b16 %v3390
          %v3923 = vunpack.c.h.b16 %v3390
          %v3924 = vunpack.c.l.b16 %v3391
          %v3925 = vunpack.c.h.b16 %v3391
          %v3926 = vunpack.c.l.b16 %v3392
          %v3927 = vunpack.c.h.b16 %v3392
          %v3928 = vunpack.c.l.b16 %v3393
          %v3929 = vunpack.c.h.b16 %v3393
          %v3930 = vunpack.c.l.b16 %v3394
          %v3931 = vunpack.c.h.b16 %v3394
          %v3932 = vunpack.c.l.b16 %v3395
          %v3933 = vunpack.c.h.b16 %v3395
          %v3934 = vunpack.c.l.b16 %v3396
          %v3935 = vunpack.c.h.b16 %v3396
          %v3936 = vunpack.c.l.b16 %v3397
          %v3937 = vunpack.c.h.b16 %v3397
          %v3938 = vunpack.c.l.b16 %v3398
          %v3939 = vunpack.c.h.b16 %v3398
          %v3940 = vunpack.c.l.b16 %v3399
          %v3941 = vunpack.c.h.b16 %v3399
          %v3942 = vunpack.c.l.b16 %v3400
          %v3943 = vunpack.c.h.b16 %v3400
          %v3944 = vunpack.c.l.b16 %v3401
          %v3945 = vunpack.c.h.b16 %v3401
          %v3946 = vunpack.c.l.b16 %v3402
          %v3947 = vunpack.c.h.b16 %v3402
          %v3948 = vunpack.c.l.b16 %v3403
          %v3949 = vunpack.c.h.b16 %v3403
          %v3950 = vunpack.c.l.b16 %v3404
          %v3951 = vunpack.c.h.b16 %v3404
          %v3952 = vunpack.c.l.b16 %v3405
          %v3953 = vunpack.c.h.b16 %v3405
          %v3954 = vunpack.c.l.b16 %v3406
          %v3955 = vunpack.c.h.b16 %v3406
          %v3956 = vunpack.c.l.b16 %v3407
          %v3957 = vunpack.c.h.b16 %v3407
          %v3958 = vunpack.c.l.b16 %v3408
          %v3959 = vunpack.c.h.b16 %v3408
          %v3960 = vunpack.c.l.b16 %v3409
          %v3961 = vunpack.c.h.b16 %v3409
          %v3962 = vunpack.c.l.b16 %v3410
          %v3963 = vunpack.c.h.b16 %v3410
          %v3964 = vunpack.c.l.b16 %v3411
          %v3965 = vunpack.c.h.b16 %v3411
          %v3966 = vunpack.c.l.b16 %v3412
          %v3967 = vunpack.c.h.b16 %v3412
          %v3968 = vunpack.c.l.b16 %v3413
          %v3969 = vunpack.c.h.b16 %v3413
          %v3970 = vunpack.c.l.b16 %v3414
          %v3971 = vunpack.c.h.b16 %v3414
          %v3972 = vunpack.c.l.b16 %v3415
          %v3973 = vunpack.c.h.b16 %v3415
          %v3974 = vunpack.c.l.b16 %v3416
          %v3975 = vunpack.c.h.b16 %v3416
          %v3976 = vunpack.c.l.b16 %v3417
          %v3977 = vunpack.c.h.b16 %v3417
          %v3978 = vunpack.c.l.b16 %v3418
          %v3979 = vunpack.c.h.b16 %v3418
          %v3980 = vunpack.c.l.b16 %v3419
          %v3981 = vunpack.c.h.b16 %v3419
          %v3982 = vunpack.c.l.b16 %v3420
          %v3983 = vunpack.c.h.b16 %v3420
          %v3984 = vunpack.c.l.b16 %v3421
          %v3985 = vunpack.c.h.b16 %v3421
          %v3986 = vunpack.c.l.b16 %v3422
          %v3987 = vunpack.c.h.b16 %v3422
          %v3988 = vunpack.c.l.b16 %v3423
          %v3989 = vunpack.c.h.b16 %v3423
          %v3990 = vunpack.c.l.b16 %v3424
          %v3991 = vunpack.c.h.b16 %v3424
          %v3992 = vunpack.c.l.b16 %v3425
          %v3993 = vunpack.c.h.b16 %v3425
          %v3994 = vunpack.c.l.b16 %v3426
          %v3995 = vunpack.c.h.b16 %v3426
          %v3996 = vunpack.c.l.b16 %v3427
          %v3997 = vunpack.c.h.b16 %v3427
          %v3998 = vunpack.c.l.b16 %v3428
          %v3999 = vunpack.c.h.b16 %v3428
          %v4000 = vunpack.c.l.b16 %v3429
          %v4001 = vunpack.c.h.b16 %v3429
          %v4002 = vunpack.c.l.b16 %v3430
          %v4003 = vunpack.c.h.b16 %v3430
          %v4004 = vunpack.c.l.b16 %v3431
          %v4005 = vunpack.c.h.b16 %v3431
          %v4006 = vunpack.c.l.b16 %v3432
          %v4007 = vunpack.c.h.b16 %v3432
          %v4008 = vunpack.c.l.b16 %v3433
          %v4009 = vunpack.c.h.b16 %v3433
          %v4010 = vunpack.c.l.b16 %v3434
          %v4011 = vunpack.c.h.b16 %v3434
          %v4012 = vunpack.c.l.b16 %v3435
          %v4013 = vunpack.c.h.b16 %v3435
          %v4014 = vunpack.c.l.b16 %v3436
          %v4015 = vunpack.c.h.b16 %v3436
          %v4016 = vunpack.c.l.b16 %v3437
          %v4017 = vunpack.c.h.b16 %v3437
          %v4018 = vunpack.c.l.b16 %v3438
          %v4019 = vunpack.c.h.b16 %v3438
          %v4020 = vunpack.c.l.b16 %v3439
          %v4021 = vunpack.c.h.b16 %v3439
          %v4022 = vunpack.c.l.b16 %v3440
          %v4023 = vunpack.c.h.b16 %v3440
          %v4024 = vunpack.c.l.b16 %v3441
          %v4025 = vunpack.c.h.b16 %v3441
          %v4026 = vunpack.c.l.b16 %v3442
          %v4027 = vunpack.c.h.b16 %v3442
          %v4028 = vunpack.c.l.b16 %v3443
          %v4029 = vunpack.c.h.b16 %v3443
          %v4030 = vunpack.c.l.b16 %v3444
          %v4031 = vunpack.c.h.b16 %v3444
          %v4032 = vunpack.c.l.b16 %v3445
          %v4033 = vunpack.c.h.b16 %v3445
          %v4034 = vunpack.c.l.b16 %v3446
          %v4035 = vunpack.c.h.b16 %v3446
          %v4036 = vunpack.c.l.b16 %v3447
          %v4037 = vunpack.c.h.b16 %v3447
          %v4038 = vunpack.c.l.b16 %v3448
          %v4039 = vunpack.c.h.b16 %v3448
          %v4040 = vunpack.c.l.b16 %v3449
          %v4041 = vunpack.c.h.b16 %v3449
          %v4042 = vunpack.c.l.b16 %v3450
          %v4043 = vunpack.c.h.b16 %v3450
          %v4044 = vunpack.c.l.b16 %v3451
          %v4045 = vunpack.c.h.b16 %v3451
          %v4046 = vunpack.c.l.b16 %v3452
          %v4047 = vunpack.c.h.b16 %v3452
          %v4048 = vunpack.c.l.b16 %v3453
          %v4049 = vunpack.c.h.b16 %v3453
          %v4050 = vunpack.c.l.b16 %v3454
          %v4051 = vunpack.c.h.b16 %v3454
          %v4052 = vunpack.c.l.b16 %v3455
          %v4053 = vunpack.c.h.b16 %v3455
          %v4054 = vunpack.c.l.b16 %v3456
          %v4055 = vunpack.c.h.b16 %v3456
          %v4056 = vunpack.c.l.b16 %v3457
          %v4057 = vunpack.c.h.b16 %v3457
          %v4058 = vunpack.c.l.b16 %v3458
          %v4059 = vunpack.c.h.b16 %v3458
          %v4060 = vunpack.c.l.b16 %v3459
          %v4061 = vunpack.c.h.b16 %v3459
          %v4062 = vunpack.c.l.b16 %v3460
          %v4063 = vunpack.c.h.b16 %v3460
          %v4064 = vunpack.c.l.b16 %v3461
          %v4065 = vunpack.c.h.b16 %v3461
          %v4066 = vunpack.c.l.b16 %v3462
          %v4067 = vunpack.c.h.b16 %v3462
          %v4068 = vunpack.c.l.b16 %v3463
          %v4069 = vunpack.c.h.b16 %v3463
          %v4070 = vunpack.c.l.b16 %v3464
          %v4071 = vunpack.c.h.b16 %v3464
          %v4072 = vunpack.c.l.b16 %v3465
          %v4073 = vunpack.c.h.b16 %v3465
          %v4074 = vunpack.c.l.b16 %v3466
          %v4075 = vunpack.c.h.b16 %v3466
          %v4076 = vunpack.c.l.b16 %v3467
          %v4077 = vunpack.c.h.b16 %v3467
          %v4078 = vunpack.c.l.b16 %v3468
          %v4079 = vunpack.c.h.b16 %v3468
          %v4080 = vunpack.c.l.b16 %v3469
          %v4081 = vunpack.c.h.b16 %v3469
          %v4082 = vunpack.c.l.b16 %v3470
          %v4083 = vunpack.c.h.b16 %v3470
          %v4084 = vunpack.c.l.b16 %v3471
          %v4085 = vunpack.c.h.b16 %v3471
          %v4086 = vunpack.c.l.b16 %v3472
          %v4087 = vunpack.c.h.b16 %v3472
          %v4088 = vunpack.c.l.b16 %v3473
          %v4089 = vunpack.c.h.b16 %v3473
          %v4090 = vunpack.c.l.b16 %v3474
          %v4091 = vunpack.c.h.b16 %v3474
          %v4092 = vunpack.c.l.b16 %v3475
          %v4093 = vunpack.c.h.b16 %v3475
          %v4094 = vunpack.c.l.b16 %v3476
          %v4095 = vunpack.c.h.b16 %v3476
          %v4096 = vunpack.c.l.b16 %v3477
          %v4097 = vunpack.c.h.b16 %v3477
          %v4098 = vunpack.c.l.b16 %v3478
          %v4099 = vunpack.c.h.b16 %v3478
          %v4100 = vunpack.c.l.b16 %v3479
          %v4101 = vunpack.c.h.b16 %v3479
          %v4102 = vunpack.c.l.b16 %v3480
          %v4103 = vunpack.c.h.b16 %v3480
          %v4104 = vunpack.c.l.b16 %v3481
          %v4105 = vunpack.c.h.b16 %v3481
          %v4106 = vunpack.c.l.b16 %v3482
          %v4107 = vunpack.c.h.b16 %v3482
          %v4108 = vunpack.c.l.b16 %v3483
          %v4109 = vunpack.c.h.b16 %v3483
          %v4110 = vunpack.c.l.b16 %v3484
          %v4111 = vunpack.c.h.b16 %v3484
          %v4112 = vunpack.c.l.b16 %v3485
          %v4113 = vunpack.c.h.b16 %v3485
          %v4114 = vunpack.c.l.b16 %v3486
          %v4115 = vunpack.c.h.b16 %v3486
          %v4116 = vunpack.c.l.b16 %v3487
          %v4117 = vunpack.c.h.b16 %v3487
          %v4118 = vunpack.c.l.b16 %v3488
          %v4119 = vunpack.c.h.b16 %v3488
          %v4120 = vunpack.c.l.b16 %v3489
          %v4121 = vunpack.c.h.b16 %v3489
          %v4122 = vunpack.c.l.b16 %v3490
          %v4123 = vunpack.c.h.b16 %v3490
          %v4124 = vunpack.c.l.b16 %v3491
          %v4125 = vunpack.c.h.b16 %v3491
          %v4126 = vunpack.c.l.b16 %v3492
          %v4127 = vunpack.c.h.b16 %v3492
          %v4128 = vunpack.c.l.b16 %v3493
          %v4129 = vunpack.c.h.b16 %v3493
          %v4130 = vunpack.c.l.b16 %v3494
          %v4131 = vunpack.c.h.b16 %v3494
          %v4132 = vunpack.c.l.b16 %v3495
          %v4133 = vunpack.c.h.b16 %v3495
          %v4134 = vunpack.c.l.b16 %v3496
          %v4135 = vunpack.c.h.b16 %v3496
          %v4136 = vunpack.c.l.b16 %v3497
          %v4137 = vunpack.c.h.b16 %v3497
          %v4138 = vunpack.c.l.b16 %v3498
          %v4139 = vunpack.c.h.b16 %v3498
          %v4140 = vunpack.c.l.b16 %v3499
          %v4141 = vunpack.c.h.b16 %v3499
          %v4142 = vunpack.c.l.b16 %v3500
          %v4143 = vunpack.c.h.b16 %v3500
          %v4144 = vunpack.c.l.b16 %v3501
          %v4145 = vunpack.c.h.b16 %v3501
          %v4146 = vunpack.c.l.b16 %v3502
          %v4147 = vunpack.c.h.b16 %v3502
          %v4148 = vunpack.c.l.b16 %v3503
          %v4149 = vunpack.c.h.b16 %v3503
          %v4150 = vunpack.c.l.b16 %v3504
          %v4151 = vunpack.c.h.b16 %v3504
          %v4152 = vunpack.c.l.b16 %v3505
          %v4153 = vunpack.c.h.b16 %v3505
          %v4154 = vunpack.c.l.b16 %v3506
          %v4155 = vunpack.c.h.b16 %v3506
          %v4156 = vunpack.c.l.b16 %v3507
          %v4157 = vunpack.c.h.b16 %v3507
          %v4158 = vunpack.c.l.b16 %v3508
          %v4159 = vunpack.c.h.b16 %v3508
          %v4160 = vunpack.c.l.b16 %v3509
          %v4161 = vunpack.c.h.b16 %v3509
          %v4162 = vunpack.c.l.b16 %v3510
          %v4163 = vunpack.c.h.b16 %v3510
          %v4164 = vunpack.c.l.b16 %v3511
          %v4165 = vunpack.c.h.b16 %v3511
          %v4166 = vunpack.c.l.b16 %v3512
          %v4167 = vunpack.c.h.b16 %v3512
          %v4168 = vunpack.c.l.b16 %v3513
          %v4169 = vunpack.c.h.b16 %v3513
          %v4170 = vunpack.c.l.b16 %v3514
          %v4171 = vunpack.c.h.b16 %v3514
          %v4172 = vunpack.c.l.b16 %v3515
          %v4173 = vunpack.c.h.b16 %v3515
          %v4174 = vunpack.c.l.b16 %v3516
          %v4175 = vunpack.c.h.b16 %v3516
          %v4176 = vunpack.c.l.b16 %v3517
          %v4177 = vunpack.c.h.b16 %v3517
          %v4178 = vunpack.c.l.b16 %v3518
          %v4179 = vunpack.c.h.b16 %v3518
          %v4180 = vunpack.c.l.b16 %v3519
          %v4181 = vunpack.c.h.b16 %v3519
          %v4182 = vunpack.c.l.b16 %v3520
          %v4183 = vunpack.c.h.b16 %v3520
          %v4184 = vunpack.c.l.b16 %v3521
          %v4185 = vunpack.c.h.b16 %v3521
          %v4186 = vunpack.c.l.b16 %v3522
          %v4187 = vunpack.c.h.b16 %v3522
          %v4188 = vunpack.c.l.b16 %v3523
          %v4189 = vunpack.c.h.b16 %v3523
          %v4190 = vunpack.c.l.b16 %v3524
          %v4191 = vunpack.c.h.b16 %v3524
          %v4192 = vunpack.c.l.b16 %v3525
          %v4193 = vunpack.c.h.b16 %v3525
          %v4194 = vunpack.c.l.b16 %v3526
          %v4195 = vunpack.c.h.b16 %v3526
          %v4196 = vunpack.c.l.b16 %v3527
          %v4197 = vunpack.c.h.b16 %v3527
          %v4198 = vunpack.c.l.b16 %v3528
          %v4199 = vunpack.c.h.b16 %v3528
          %v4200 = vunpack.c.l.b16 %v3529
          %v4201 = vunpack.c.h.b16 %v3529
          %v4202 = vunpack.c.l.b16 %v3530
          %v4203 = vunpack.c.h.b16 %v3530
          %v4204 = vunpack.c.l.b16 %v3531
          %v4205 = vunpack.c.h.b16 %v3531
          %v4206 = vunpack.c.l.b16 %v3532
          %v4207 = vunpack.c.h.b16 %v3532
          %v4208 = vunpack.c.l.b16 %v3533
          %v4209 = vunpack.c.h.b16 %v3533
          %v4210 = vunpack.c.l.b16 %v3534
          %v4211 = vunpack.c.h.b16 %v3534
          %v4212 = vunpack.c.l.b16 %v3535
          %v4213 = vunpack.c.h.b16 %v3535
          %v4214 = vunpack.c.l.b16 %v3536
          %v4215 = vunpack.c.h.b16 %v3536
          %v4216 = vunpack.c.l.b16 %v3537
          %v4217 = vunpack.c.h.b16 %v3537
          %v4218 = vunpack.c.l.b16 %v3538
          %v4219 = vunpack.c.h.b16 %v3538
          %v4220 = vunpack.c.l.b16 %v3539
          %v4221 = vunpack.c.h.b16 %v3539
          %v4222 = vunpack.c.l.b16 %v3540
          %v4223 = vunpack.c.h.b16 %v3540
          %v4224 = vunpack.c.l.b16 %v3541
          %v4225 = vunpack.c.h.b16 %v3541
          %v4226 = vunpack.c.l.b16 %v3542
          %v4227 = vunpack.c.h.b16 %v3542
          %v4228 = vunpack.c.l.b16 %v3543
          %v4229 = vunpack.c.h.b16 %v3543
          %v4230 = vunpack.c.l.b16 %v3544
          %v4231 = vunpack.c.h.b16 %v3544
          %v4232 = vunpack.c.l.b16 %v3545
          %v4233 = vunpack.c.h.b16 %v3545
          %v4234 = vunpack.c.l.b16 %v3546
          %v4235 = vunpack.c.h.b16 %v3546
          %v4236 = vunpack.c.l.b16 %v3547
          %v4237 = vunpack.c.h.b16 %v3547
          %v4238 = vunpack.c.l.b16 %v3548
          %v4239 = vunpack.c.h.b16 %v3548
          %v4240 = vunpack.c.l.b16 %v3549
          %v4241 = vunpack.c.h.b16 %v3549
          %v4242 = vunpack.c.l.b16 %v3550
          %v4243 = vunpack.c.h.b16 %v3550
          %v4244 = vunpack.c.l.b16 %v3551
          %v4245 = vunpack.c.h.b16 %v3551
          %v4246 = vunpack.c.l.b16 %v3552
          %v4247 = vunpack.c.h.b16 %v3552
          %v4248 = vunpack.c.l.b16 %v3553
          %v4249 = vunpack.c.h.b16 %v3553
          %v4250 = vunpack.c.l.b16 %v3554
          %v4251 = vunpack.c.h.b16 %v3554
          %v4252 = vunpack.c.l.b16 %v3555
          %v4253 = vunpack.c.h.b16 %v3555
          %v4254 = vunpack.c.l.b16 %v3556
          %v4255 = vunpack.c.h.b16 %v3556
          %v4256 = vunpack.c.l.b16 %v3557
          %v4257 = vunpack.c.h.b16 %v3557
          %v4258 = vunpack.c.l.b16 %v3558
          %v4259 = vunpack.c.h.b16 %v3558
          %v4260 = vunpack.c.l.b16 %v3559
          %v4261 = vunpack.c.h.b16 %v3559
          %v4262 = vunpack.c.l.b16 %v3560
          %v4263 = vunpack.c.h.b16 %v3560
          %v4264 = vunpack.c.l.b16 %v3561
          %v4265 = vunpack.c.h.b16 %v3561
          %v4266 = vunpack.c.l.b16 %v3562
          %v4267 = vunpack.c.h.b16 %v3562
          %v4268 = vunpack.c.l.b16 %v3563
          %v4269 = vunpack.c.h.b16 %v3563
          %v4270 = vunpack.c.l.b16 %v3564
          %v4271 = vunpack.c.h.b16 %v3564
          %v4272 = vunpack.c.l.b16 %v3565
          %v4273 = vunpack.c.h.b16 %v3565
          %v4274 = vunpack.c.l.b16 %v3566
          %v4275 = vunpack.c.h.b16 %v3566
          %v4276 = vunpack.c.l.b16 %v3567
          %v4277 = vunpack.c.h.b16 %v3567
          %v4278 = vunpack.c.l.b16 %v3568
          %v4279 = vunpack.c.h.b16 %v3568
          %v4280 = vunpack.c.l.b16 %v3569
          %v4281 = vunpack.c.h.b16 %v3569
          %v4282 = vunpack.c.l.b16 %v3570
          %v4283 = vunpack.c.h.b16 %v3570
          %v4284 = vunpack.c.l.b16 %v3571
          %v4285 = vunpack.c.h.b16 %v3571
          %v4286 = vunpack.c.l.b16 %v3572
          %v4287 = vunpack.c.h.b16 %v3572
          %v4288 = vunpack.c.l.b16 %v3573
          %v4289 = vunpack.c.h.b16 %v3573
          %v4290 = vunpack.c.l.b16 %v3574
          %v4291 = vunpack.c.h.b16 %v3574
          %v4292 = vunpack.c.l.b16 %v3575
          %v4293 = vunpack.c.h.b16 %v3575
          %v4294 = vunpack.c.l.b16 %v3576
          %v4295 = vunpack.c.h.b16 %v3576
          %v4296 = vunpack.c.l.b16 %v3577
          %v4297 = vunpack.c.h.b16 %v3577
          %v4298 = vunpack.c.l.b16 %v3578
          %v4299 = vunpack.c.h.b16 %v3578
          %v4300 = vunpack.c.l.b16 %v3579
          %v4301 = vunpack.c.h.b16 %v3579
          %v4302 = vunpack.c.l.b16 %v3580
          %v4303 = vunpack.c.h.b16 %v3580
          %v4304 = vunpack.c.l.b16 %v3581
          %v4305 = vunpack.c.h.b16 %v3581
          %v4306 = vunpack.c.l.b16 %v3582
          %v4307 = vunpack.c.h.b16 %v3582
          %v4308 = vunpack.c.l.b16 %v3583
          %v4309 = vunpack.c.h.b16 %v3583
          %v4310 = vunpack.c.l.b16 %v3584
          %v4311 = vunpack.c.h.b16 %v3584
          %v4312 = vunpack.c.l.b16 %v3585
          %v4313 = vunpack.c.h.b16 %v3585
          %v4314 = vunpack.c.l.b16 %v3586
          %v4315 = vunpack.c.h.b16 %v3586
          %v4316 = vunpack.c.l.b16 %v3587
          %v4317 = vunpack.c.h.b16 %v3587
          %v4318 = vunpack.c.l.b16 %v3588
          %v4319 = vunpack.c.h.b16 %v3588
          %v4320 = vunpack.c.l.b16 %v3589
          %v4321 = vunpack.c.h.b16 %v3589
          %v4322 = vunpack.c.l.b16 %v3590
          %v4323 = vunpack.c.h.b16 %v3590
          %v4324 = vunpack.c.l.b16 %v3591
          %v4325 = vunpack.c.h.b16 %v3591
          %v4326 = vunpack.c.l.b16 %v3592
          %v4327 = vunpack.c.h.b16 %v3592
          %v4328 = vunpack.c.l.b16 %v3593
          %v4329 = vunpack.c.h.b16 %v3593
          %v4330 = vunpack.c.l.b16 %v3594
          %v4331 = vunpack.c.h.b16 %v3594
          %v4332 = vunpack.c.l.b16 %v3595
          %v4333 = vunpack.c.h.b16 %v3595
          %v4334 = vunpack.c.l.b16 %v3596
          %v4335 = vunpack.c.h.b16 %v3596
          %v4336 = vunpack.c.l.b16 %v3597
          %v4337 = vunpack.c.h.b16 %v3597
          %v4338 = vunpack.c.l.b16 %v3598
          %v4339 = vunpack.c.h.b16 %v3598
          %v4340 = vunpack.c.l.b16 %v3599
          %v4341 = vunpack.c.h.b16 %v3599
          %v4342 = vunpack.c.l.b16 %v3600
          %v4343 = vunpack.c.h.b16 %v3600
          %v4344 = vunpack.c.l.b16 %v3601
          %v4345 = vunpack.c.h.b16 %v3601
          %v4346 = vunpack.c.l.b16 %v3602
          %v4347 = vunpack.c.h.b16 %v3602
          %v4348 = vunpack.c.l.b16 %v3603
          %v4349 = vunpack.c.h.b16 %v3603
          %v4350 = vunpack.c.l.b16 %v3604
          %v4351 = vunpack.c.h.b16 %v3604
          %v4352 = vunpack.c.l.b16 %v3605
          %v4353 = vunpack.c.h.b16 %v3605
          %v4354 = vunpack.c.l.b16 %v3606
          %v4355 = vunpack.c.h.b16 %v3606
          %v4356 = vunpack.c.l.b16 %v3607
          %v4357 = vunpack.c.h.b16 %v3607
          %v4358 = vunpack.c.l.b16 %v3608
          %v4359 = vunpack.c.h.b16 %v3608
          %v4360 = vunpack.c.l.b16 %v3609
          %v4361 = vunpack.c.h.b16 %v3609
          %v4362 = vunpack.c.l.b16 %v3610
          %v4363 = vunpack.c.h.b16 %v3610
          %v4364 = vunpack.c.l.b16 %v3611
          %v4365 = vunpack.c.h.b16 %v3611
          %v4366 = vunpack.c.l.b16 %v3612
          %v4367 = vunpack.c.h.b16 %v3612
          %v4368 = vunpack.c.l.b16 %v3613
          %v4369 = vunpack.c.h.b16 %v3613
          %v4370 = vunpack.c.l.b16 %v3614
          %v4371 = vunpack.c.h.b16 %v3614
          %v4372 = vunpack.c.l.b16 %v3615
          %v4373 = vunpack.c.h.b16 %v3615
          %v4374 = vunpack.c.l.b16 %v3616
          %v4375 = vunpack.c.h.b16 %v3616
          %v4376 = vunpack.c.l.b16 %v3617
          %v4377 = vunpack.c.h.b16 %v3617
          %v4378 = vunpack.c.l.b16 %v3618
          %v4379 = vunpack.c.h.b16 %v3618
          %v4380 = vunpack.c.l.b16 %v3619
          %v4381 = vunpack.c.h.b16 %v3619
          %v4382 = vunpack.c.l.b16 %v3620
          %v4383 = vunpack.c.h.b16 %v3620
          %v4384 = vunpack.c.l.b16 %v3621
          %v4385 = vunpack.c.h.b16 %v3621
          %v4386 = vunpack.c.l.b16 %v3622
          %v4387 = vunpack.c.h.b16 %v3622
          %v4388 = vunpack.c.l.b16 %v3623
          %v4389 = vunpack.c.h.b16 %v3623
          %v4390 = vunpack.c.l.b16 %v3624
          %v4391 = vunpack.c.h.b16 %v3624
          %v4392 = vunpack.c.l.b16 %v3625
          %v4393 = vunpack.c.h.b16 %v3625
          %v4394 = vunpack.c.l.b16 %v3626
          %v4395 = vunpack.c.h.b16 %v3626
          %v4396 = vpack.c.b16 %v3888, %v3884
          %v4397 = vpack.c.b16 %v3889, %v3885
          %v4398 = vpack.c.b16 %v3890, %v3886
          %v4399 = vpack.c.b16 %v3891, %v3887
          %v4400 = vpack.c.b16 %v3896, %v3892
          %v4401 = vpack.c.b16 %v3897, %v3893
          %v4402 = vpack.c.b16 %v3898, %v3894
          %v4403 = vpack.c.b16 %v3899, %v3895
          %v4404 = vpack.c.b16 %v3904, %v3900
          %v4405 = vpack.c.b16 %v3905, %v3901
          %v4406 = vpack.c.b16 %v3906, %v3902
          %v4407 = vpack.c.b16 %v3907, %v3903
          %v4408 = vpack.c.b16 %v3912, %v3908
          %v4409 = vpack.c.b16 %v3913, %v3909
          %v4410 = vpack.c.b16 %v3914, %v3910
          %v4411 = vpack.c.b16 %v3915, %v3911
          %v4412 = vpack.c.b16 %v3920, %v3916
          %v4413 = vpack.c.b16 %v3921, %v3917
          %v4414 = vpack.c.b16 %v3922, %v3918
          %v4415 = vpack.c.b16 %v3923, %v3919
          %v4416 = vpack.c.b16 %v3928, %v3924
          %v4417 = vpack.c.b16 %v3929, %v3925
          %v4418 = vpack.c.b16 %v3930, %v3926
          %v4419 = vpack.c.b16 %v3931, %v3927
          %v4420 = vpack.c.b16 %v3936, %v3932
          %v4421 = vpack.c.b16 %v3937, %v3933
          %v4422 = vpack.c.b16 %v3938, %v3934
          %v4423 = vpack.c.b16 %v3939, %v3935
          %v4424 = vpack.c.b16 %v3944, %v3940
          %v4425 = vpack.c.b16 %v3945, %v3941
          %v4426 = vpack.c.b16 %v3946, %v3942
          %v4427 = vpack.c.b16 %v3947, %v3943
          %v4428 = vpack.c.b16 %v3952, %v3948
          %v4429 = vpack.c.b16 %v3953, %v3949
          %v4430 = vpack.c.b16 %v3954, %v3950
          %v4431 = vpack.c.b16 %v3955, %v3951
          %v4432 = vpack.c.b16 %v3960, %v3956
          %v4433 = vpack.c.b16 %v3961, %v3957
          %v4434 = vpack.c.b16 %v3962, %v3958
          %v4435 = vpack.c.b16 %v3963, %v3959
          %v4436 = vpack.c.b16 %v3968, %v3964
          %v4437 = vpack.c.b16 %v3969, %v3965
          %v4438 = vpack.c.b16 %v3970, %v3966
          %v4439 = vpack.c.b16 %v3971, %v3967
          %v4440 = vpack.c.b16 %v3976, %v3972
          %v4441 = vpack.c.b16 %v3977, %v3973
          %v4442 = vpack.c.b16 %v3978, %v3974
          %v4443 = vpack.c.b16 %v3979, %v3975
          %v4444 = vpack.c.b16 %v3984, %v3980
          %v4445 = vpack.c.b16 %v3985, %v3981
          %v4446 = vpack.c.b16 %v3986, %v3982
          %v4447 = vpack.c.b16 %v3987, %v3983
          %v4448 = vpack.c.b16 %v3992, %v3988
          %v4449 = vpack.c.b16 %v3993, %v3989
          %v4450 = vpack.c.b16 %v3994, %v3990
          %v4451 = vpack.c.b16 %v3995, %v3991
          %v4452 = vpack.c.b16 %v4000, %v3996
          %v4453 = vpack.c.b16 %v4001, %v3997
          %v4454 = vpack.c.b16 %v4002, %v3998
          %v4455 = vpack.c.b16 %v4003, %v3999
          %v4456 = vpack.c.b16 %v4008, %v4004
          %v4457 = vpack.c.b16 %v4009, %v4005
          %v4458 = vpack.c.b16 %v4010, %v4006
          %v4459 = vpack.c.b16 %v4011, %v4007
          %v4460 = vpack.c.b16 %v4016, %v4012
          %v4461 = vpack.c.b16 %v4017, %v4013
          %v4462 = vpack.c.b16 %v4018, %v4014
          %v4463 = vpack.c.b16 %v4019, %v4015
          %v4464 = vpack.c.b16 %v4024, %v4020
          %v4465 = vpack.c.b16 %v4025, %v4021
          %v4466 = vpack.c.b16 %v4026, %v4022
          %v4467 = vpack.c.b16 %v4027, %v4023
          %v4468 = vpack.c.b16 %v4032, %v4028
          %v4469 = vpack.c.b16 %v4033, %v4029
          %v4470 = vpack.c.b16 %v4034, %v4030
          %v4471 = vpack.c.b16 %v4035, %v4031
          %v4472 = vpack.c.b16 %v4040, %v4036
          %v4473 = vpack.c.b16 %v4041, %v4037
          %v4474 = vpack.c.b16 %v4042, %v4038
          %v4475 = vpack.c.b16 %v4043, %v4039
          %v4476 = vpack.c.b16 %v4048, %v4044
          %v4477 = vpack.c.b16 %v4049, %v4045
          %v4478 = vpack.c.b16 %v4050, %v4046
          %v4479 = vpack.c.b16 %v4051, %v4047
          %v4480 = vpack.c.b16 %v4056, %v4052
          %v4481 = vpack.c.b16 %v4057, %v4053
          %v4482 = vpack.c.b16 %v4058, %v4054
          %v4483 = vpack.c.b16 %v4059, %v4055
          %v4484 = vpack.c.b16 %v4064, %v4060
          %v4485 = vpack.c.b16 %v4065, %v4061
          %v4486 = vpack.c.b16 %v4066, %v4062
          %v4487 = vpack.c.b16 %v4067, %v4063
          %v4488 = vpack.c.b16 %v4072, %v4068
          %v4489 = vpack.c.b16 %v4073, %v4069
          %v4490 = vpack.c.b16 %v4074, %v4070
          %v4491 = vpack.c.b16 %v4075, %v4071
          %v4492 = vpack.c.b16 %v4080, %v4076
          %v4493 = vpack.c.b16 %v4081, %v4077
          %v4494 = vpack.c.b16 %v4082, %v4078
          %v4495 = vpack.c.b16 %v4083, %v4079
          %v4496 = vpack.c.b16 %v4088, %v4084
          %v4497 = vpack.c.b16 %v4089, %v4085
          %v4498 = vpack.c.b16 %v4090, %v4086
          %v4499 = vpack.c.b16 %v4091, %v4087
          %v4500 = vpack.c.b16 %v4096, %v4092
          %v4501 = vpack.c.b16 %v4097, %v4093
          %v4502 = vpack.c.b16 %v4098, %v4094
          %v4503 = vpack.c.b16 %v4099, %v4095
          %v4504 = vpack.c.b16 %v4104, %v4100
          %v4505 = vpack.c.b16 %v4105, %v4101
          %v4506 = vpack.c.b16 %v4106, %v4102
          %v4507 = vpack.c.b16 %v4107, %v4103
          %v4508 = vpack.c.b16 %v4112, %v4108
          %v4509 = vpack.c.b16 %v4113, %v4109
          %v4510 = vpack.c.b16 %v4114, %v4110
          %v4511 = vpack.c.b16 %v4115, %v4111
          %v4512 = vpack.c.b16 %v4120, %v4116
          %v4513 = vpack.c.b16 %v4121, %v4117
          %v4514 = vpack.c.b16 %v4122, %v4118
          %v4515 = vpack.c.b16 %v4123, %v4119
          %v4516 = vpack.c.b16 %v4128, %v4124
          %v4517 = vpack.c.b16 %v4129, %v4125
          %v4518 = vpack.c.b16 %v4130, %v4126
          %v4519 = vpack.c.b16 %v4131, %v4127
          %v4520 = vpack.c.b16 %v4136, %v4132
          %v4521 = vpack.c.b16 %v4137, %v4133
          %v4522 = vpack.c.b16 %v4138, %v4134
          %v4523 = vpack.c.b16 %v4139, %v4135
          %v4524 = vpack.c.b16 %v4144, %v4140
          %v4525 = vpack.c.b16 %v4145, %v4141
          %v4526 = vpack.c.b16 %v4146, %v4142
          %v4527 = vpack.c.b16 %v4147, %v4143
          %v4528 = vpack.c.b16 %v4152, %v4148
          %v4529 = vpack.c.b16 %v4153, %v4149
          %v4530 = vpack.c.b16 %v4154, %v4150
          %v4531 = vpack.c.b16 %v4155, %v4151
          %v4532 = vpack.c.b16 %v4160, %v4156
          %v4533 = vpack.c.b16 %v4161, %v4157
          %v4534 = vpack.c.b16 %v4162, %v4158
          %v4535 = vpack.c.b16 %v4163, %v4159
          %v4536 = vpack.c.b16 %v4168, %v4164
          %v4537 = vpack.c.b16 %v4169, %v4165
          %v4538 = vpack.c.b16 %v4170, %v4166
          %v4539 = vpack.c.b16 %v4171, %v4167
          %v4540 = vpack.c.b16 %v4176, %v4172
          %v4541 = vpack.c.b16 %v4177, %v4173
          %v4542 = vpack.c.b16 %v4178, %v4174
          %v4543 = vpack.c.b16 %v4179, %v4175
          %v4544 = vpack.c.b16 %v4184, %v4180
          %v4545 = vpack.c.b16 %v4185, %v4181
          %v4546 = vpack.c.b16 %v4186, %v4182
          %v4547 = vpack.c.b16 %v4187, %v4183
          %v4548 = vpack.c.b16 %v4192, %v4188
          %v4549 = vpack.c.b16 %v4193, %v4189
          %v4550 = vpack.c.b16 %v4194, %v4190
          %v4551 = vpack.c.b16 %v4195, %v4191
          %v4552 = vpack.c.b16 %v4200, %v4196
          %v4553 = vpack.c.b16 %v4201, %v4197
          %v4554 = vpack.c.b16 %v4202, %v4198
          %v4555 = vpack.c.b16 %v4203, %v4199
          %v4556 = vpack.c.b16 %v4208, %v4204
          %v4557 = vpack.c.b16 %v4209, %v4205
          %v4558 = vpack.c.b16 %v4210, %v4206
          %v4559 = vpack.c.b16 %v4211, %v4207
          %v4560 = vpack.c.b16 %v4216, %v4212
          %v4561 = vpack.c.b16 %v4217, %v4213
          %v4562 = vpack.c.b16 %v4218, %v4214
          %v4563 = vpack.c.b16 %v4219, %v4215
          %v4564 = vpack.c.b16 %v4224, %v4220
          %v4565 = vpack.c.b16 %v4225, %v4221
          %v4566 = vpack.c.b16 %v4226, %v4222
          %v4567 = vpack.c.b16 %v4227, %v4223
          %v4568 = vpack.c.b16 %v4232, %v4228
          %v4569 = vpack.c.b16 %v4233, %v4229
          %v4570 = vpack.c.b16 %v4234, %v4230
          %v4571 = vpack.c.b16 %v4235, %v4231
          %v4572 = vpack.c.b16 %v4240, %v4236
          %v4573 = vpack.c.b16 %v4241, %v4237
          %v4574 = vpack.c.b16 %v4242, %v4238
          %v4575 = vpack.c.b16 %v4243, %v4239
          %v4576 = vpack.c.b16 %v4248, %v4244
          %v4577 = vpack.c.b16 %v4249, %v4245
          %v4578 = vpack.c.b16 %v4250, %v4246
          %v4579 = vpack.c.b16 %v4251, %v4247
          %v4580 = vpack.c.b16 %v4256, %v4252
          %v4581 = vpack.c.b16 %v4257, %v4253
          %v4582 = vpack.c.b16 %v4258, %v4254
          %v4583 = vpack.c.b16 %v4259, %v4255
          %v4584 = vpack.c.b16 %v4264, %v4260
          %v4585 = vpack.c.b16 %v4265, %v4261
          %v4586 = vpack.c.b16 %v4266, %v4262
          %v4587 = vpack.c.b16 %v4267, %v4263
          %v4588 = vpack.c.b16 %v4272, %v4268
          %v4589 = vpack.c.b16 %v4273, %v4269
          %v4590 = vpack.c.b16 %v4274, %v4270
          %v4591 = vpack.c.b16 %v4275, %v4271
          %v4592 = vpack.c.b16 %v4280, %v4276
          %v4593 = vpack.c.b16 %v4281, %v4277
          %v4594 = vpack.c.b16 %v4282, %v4278
          %v4595 = vpack.c.b16 %v4283, %v4279
          %v4596 = vpack.c.b16 %v4288, %v4284
          %v4597 = vpack.c.b16 %v4289, %v4285
          %v4598 = vpack.c.b16 %v4290, %v4286
          %v4599 = vpack.c.b16 %v4291, %v4287
          %v4600 = vpack.c.b16 %v4296, %v4292
          %v4601 = vpack.c.b16 %v4297, %v4293
          %v4602 = vpack.c.b16 %v4298, %v4294
          %v4603 = vpack.c.b16 %v4299, %v4295
          %v4604 = vpack.c.b16 %v4304, %v4300
          %v4605 = vpack.c.b16 %v4305, %v4301
          %v4606 = vpack.c.b16 %v4306, %v4302
          %v4607 = vpack.c.b16 %v4307, %v4303
          %v4608 = vpack.c.b16 %v4312, %v4308
          %v4609 = vpack.c.b16 %v4313, %v4309
          %v4610 = vpack.c.b16 %v4314, %v4310
          %v4611 = vpack.c.b16 %v4315, %v4311
          %v4612 = vpack.c.b16 %v4320, %v4316
          %v4613 = vpack.c.b16 %v4321, %v4317
          %v4614 = vpack.c.b16 %v4322, %v4318
          %v4615 = vpack.c.b16 %v4323, %v4319
          %v4616 = vpack.c.b16 %v4328, %v4324
          %v4617 = vpack.c.b16 %v4329, %v4325
          %v4618 = vpack.c.b16 %v4330, %v4326
          %v4619 = vpack.c.b16 %v4331, %v4327
          %v4620 = vpack.c.b16 %v4336, %v4332
          %v4621 = vpack.c.b16 %v4337, %v4333
          %v4622 = vpack.c.b16 %v4338, %v4334
          %v4623 = vpack.c.b16 %v4339, %v4335
          %v4624 = vpack.c.b16 %v4344, %v4340
          %v4625 = vpack.c.b16 %v4345, %v4341
          %v4626 = vpack.c.b16 %v4346, %v4342
          %v4627 = vpack.c.b16 %v4347, %v4343
          %v4628 = vpack.c.b16 %v4352, %v4348
          %v4629 = vpack.c.b16 %v4353, %v4349
          %v4630 = vpack.c.b16 %v4354, %v4350
          %v4631 = vpack.c.b16 %v4355, %v4351
          %v4632 = vpack.c.b16 %v4360, %v4356
          %v4633 = vpack.c.b16 %v4361, %v4357
          %v4634 = vpack.c.b16 %v4362, %v4358
          %v4635 = vpack.c.b16 %v4363, %v4359
          %v4636 = vpack.c.b16 %v4368, %v4364
          %v4637 = vpack.c.b16 %v4369, %v4365
          %v4638 = vpack.c.b16 %v4370, %v4366
          %v4639 = vpack.c.b16 %v4371, %v4367
          %v4640 = vpack.c.b16 %v4376, %v4372
          %v4641 = vpack.c.b16 %v4377, %v4373
          %v4642 = vpack.c.b16 %v4378, %v4374
          %v4643 = vpack.c.b16 %v4379, %v4375
          %v4644 = vpack.c.b16 %v4384, %v4380
          %v4645 = vpack.c.b16 %v4385, %v4381
          %v4646 = vpack.c.b16 %v4386, %v4382
          %v4647 = vpack.c.b16 %v4387, %v4383
          %v4648 = vpack.c.b16 %v4392, %v4388
          %v4649 = vpack.c.b16 %v4393, %v4389
          %v4650 = vpack.c.b16 %v4394, %v4390
          %v4651 = vpack.c.b16 %v4395, %v4391
          %v4909 = vlaneseq
          %v4910 = vshrl.u32 %v4909, 7
          %v4911 = vsub.s32 0, %v4910
          %v4912 = vrot.slane %v3627, %v4911
          %v4913 = vlaneseq
          %v4914 = vshrl.u32 %v4913, 7
          %v4915 = vsub.s32 1, %v4914
          %v4916 = vrot.slane %v3627, %v4915
          %v4917 = vlaneseq
          %v4918 = vshrl.u32 %v4917, 7
          %v4919 = vsub.s32 2, %v4918
          %v4920 = vrot.slane %v3627, %v4919
          %v4921 = vlaneseq
          %v4922 = vshrl.u32 %v4921, 7
          %v4923 = vsub.s32 3, %v4922
          %v4924 = vrot.slane %v3627, %v4923
          %4929 = vmatprep.subr.bf16.mxu0 %v4397
          %4930 = vmatpush1.bf16.msra.mxu0 %v4396
          %4931 = vmatprep.subr.bf16.mxu0 %v4401
          %4932 = vmatpush1.bf16.msra.mxu0 %v4400
          %4933 = vmatprep.subr.bf16.mxu0 %v4405
          %4934 = vmatpush1.bf16.msra.mxu0 %v4404
          %4935 = vmatprep.subr.bf16.mxu0 %v4409
          %4936 = vmatpush1.bf16.msra.mxu0 %v4408
          %4937 = vmatprep.subr.bf16.mxu0 %v4413
          %4938 = vmatpush1.bf16.msra.mxu0 %v4412
          %4939 = vmatprep.subr.bf16.mxu0 %v4417
          %4940 = vmatpush1.bf16.msra.mxu0 %v4416
          %4941 = vmatprep.subr.bf16.mxu0 %v4421
          %4942 = vmatpush1.bf16.msra.mxu0 %v4420
          %4943 = vmatprep.subr.bf16.mxu0 %v4425
          %4944 = vmatpush1.bf16.msra.mxu0 %v4424
          %4945 = vmatprep.subr.bf16.mxu0 %v4429
          %4946 = vmatpush1.bf16.msra.mxu0 %v4428
          %4947 = vmatprep.subr.bf16.mxu0 %v4433
          %4948 = vmatpush1.bf16.msra.mxu0 %v4432
          %4949 = vmatprep.subr.bf16.mxu0 %v4437
          %4950 = vmatpush1.bf16.msra.mxu0 %v4436
          %4951 = vmatprep.subr.bf16.mxu0 %v4441
          %4952 = vmatpush1.bf16.msra.mxu0 %v4440
          %4953 = vmatprep.subr.bf16.mxu0 %v4445
          %4954 = vmatpush1.bf16.msra.mxu0 %v4444
          %4955 = vmatprep.subr.bf16.mxu0 %v4449
          %4956 = vmatpush1.bf16.msra.mxu0 %v4448
          %4957 = vmatprep.subr.bf16.mxu0 %v4453
          %4958 = vmatpush1.bf16.msra.mxu0 %v4452
          %4959 = vmatprep.subr.bf16.mxu0 %v4457
          %4960 = vmatpush1.bf16.msra.mxu0 %v4456
          %4961 = vmatprep.mubr.bf16.mxu0 %v3364
          %4962 = vmatmul.mubr.bf16.gmra.mrb[0].mxu0 %v3363
          %v4963 = vpop.f32.mrb[0].mxu0
          %v4964 = vadd.f32 %v4912, %v4963
          %v4965 = vpop.f32.mrb[0].mxu0
          %v4966 = vadd.f32 %v4916, %v4965
          %v4967 = vpop.f32.mrb[0].mxu0
          %v4968 = vpop.f32.mrb[0].mxu0
          %4969 = vdwg.mxu0
          %4970 = vmatprep.subr.bf16.mxu0 %v4461
          %4971 = vmatpush1.bf16.msra.mxu0 %v4460
          %4972 = vmatprep.subr.bf16.mxu0 %v4465
          %4973 = vmatpush1.bf16.msra.mxu0 %v4464
          %4974 = vmatprep.subr.bf16.mxu0 %v4469
          %4975 = vmatpush1.bf16.msra.mxu0 %v4468
          %4976 = vmatprep.subr.bf16.mxu0 %v4473
          %4977 = vmatpush1.bf16.msra.mxu0 %v4472
          %4978 = vmatprep.subr.bf16.mxu0 %v4477
          %4979 = vmatpush1.bf16.msra.mxu0 %v4476
          %4980 = vmatprep.subr.bf16.mxu0 %v4481
          %4981 = vmatpush1.bf16.msra.mxu0 %v4480
          %4982 = vmatprep.subr.bf16.mxu0 %v4485
          %4983 = vmatpush1.bf16.msra.mxu0 %v4484
          %4984 = vmatprep.subr.bf16.mxu0 %v4489
          %4985 = vmatpush1.bf16.msra.mxu0 %v4488
          %4986 = vmatprep.subr.bf16.mxu0 %v4493
          %4987 = vmatpush1.bf16.msra.mxu0 %v4492
          %4988 = vmatprep.subr.bf16.mxu0 %v4497
          %4989 = vmatpush1.bf16.msra.mxu0 %v4496
          %4990 = vmatprep.subr.bf16.mxu0 %v4501
          %4991 = vmatpush1.bf16.msra.mxu0 %v4500
          %4992 = vmatprep.subr.bf16.mxu0 %v4505
          %4993 = vmatpush1.bf16.msra.mxu0 %v4504
          %4994 = vmatprep.subr.bf16.mxu0 %v4509
          %4995 = vmatpush1.bf16.msra.mxu0 %v4508
          %4996 = vmatprep.subr.bf16.mxu0 %v4513
          %4997 = vmatpush1.bf16.msra.mxu0 %v4512
          %4998 = vmatprep.subr.bf16.mxu0 %v4517
          %4999 = vmatpush1.bf16.msra.mxu0 %v4516
          %5000 = vmatprep.subr.bf16.mxu0 %v4521
          %5001 = vmatpush1.bf16.msra.mxu0 %v4520
          %5002 = vmatprep.mubr.bf16.mxu0 %v3366
          %5003 = vmatmul.mubr.bf16.gmra.mrb[0].mxu0 %v3365
          %v5004 = vpop.f32.mrb[0].mxu0
          %v5005 = vadd.f32 %v4964, %v5004
          %v5006 = vpop.f32.mrb[0].mxu0
          %v5007 = vadd.f32 %v4966, %v5006
          %v5008 = vpop.f32.mrb[0].mxu0
          %v5009 = vpop.f32.mrb[0].mxu0
          %5010 = vdwg.mxu0
          %5011 = vmatprep.subr.bf16.mxu0 %v4525
          %5012 = vmatpush1.bf16.msra.mxu0 %v4524
          %5013 = vmatprep.subr.bf16.mxu0 %v4529
          %5014 = vmatpush1.bf16.msra.mxu0 %v4528
          %5015 = vmatprep.subr.bf16.mxu0 %v4533
          %5016 = vmatpush1.bf16.msra.mxu0 %v4532
          %5017 = vmatprep.subr.bf16.mxu0 %v4537
          %5018 = vmatpush1.bf16.msra.mxu0 %v4536
          %5019 = vmatprep.subr.bf16.mxu0 %v4541
          %5020 = vmatpush1.bf16.msra.mxu0 %v4540
          %5021 = vmatprep.subr.bf16.mxu0 %v4545
          %5022 = vmatpush1.bf16.msra.mxu0 %v4544
          %5023 = vmatprep.subr.bf16.mxu0 %v4549
          %5024 = vmatpush1.bf16.msra.mxu0 %v4548
          %5025 = vmatprep.subr.bf16.mxu0 %v4553
          %5026 = vmatpush1.bf16.msra.mxu0 %v4552
          %5027 = vmatprep.subr.bf16.mxu0 %v4557
          %5028 = vmatpush1.bf16.msra.mxu0 %v4556
          %5029 = vmatprep.subr.bf16.mxu0 %v4561
          %5030 = vmatpush1.bf16.msra.mxu0 %v4560
          %5031 = vmatprep.subr.bf16.mxu0 %v4565
          %5032 = vmatpush1.bf16.msra.mxu0 %v4564
          %5033 = vmatprep.subr.bf16.mxu0 %v4569
          %5034 = vmatpush1.bf16.msra.mxu0 %v4568
          %5035 = vmatprep.subr.bf16.mxu0 %v4573
          %5036 = vmatpush1.bf16.msra.mxu0 %v4572
          %5037 = vmatprep.subr.bf16.mxu0 %v4577
          %5038 = vmatpush1.bf16.msra.mxu0 %v4576
          %5039 = vmatprep.subr.bf16.mxu0 %v4581
          %5040 = vmatpush1.bf16.msra.mxu0 %v4580
          %5041 = vmatprep.subr.bf16.mxu0 %v4585
          %5042 = vmatpush1.bf16.msra.mxu0 %v4584
          %5043 = vmatprep.mubr.bf16.mxu0 %v3368
          %5044 = vmatmul.mubr.bf16.gmra.mrb[0].mxu0 %v3367
          %v5045 = vpop.f32.mrb[0].mxu0
          %v5046 = vadd.f32 %v5005, %v5045
          %v5047 = vpop.f32.mrb[0].mxu0
          %v5048 = vadd.f32 %v5007, %v5047
          %v5049 = vpop.f32.mrb[0].mxu0
          %v5050 = vpop.f32.mrb[0].mxu0
          %5051 = vdwg.mxu0
          %5052 = vmatprep.subr.bf16.mxu0 %v4589
          %5053 = vmatpush1.bf16.msra.mxu0 %v4588
          %5054 = vmatprep.subr.bf16.mxu0 %v4593
          %5055 = vmatpush1.bf16.msra.mxu0 %v4592
          %5056 = vmatprep.subr.bf16.mxu0 %v4597
          %5057 = vmatpush1.bf16.msra.mxu0 %v4596
          %5058 = vmatprep.subr.bf16.mxu0 %v4601
          %5059 = vmatpush1.bf16.msra.mxu0 %v4600
          %5060 = vmatprep.subr.bf16.mxu0 %v4605
          %5061 = vmatpush1.bf16.msra.mxu0 %v4604
          %5062 = vmatprep.subr.bf16.mxu0 %v4609
          %5063 = vmatpush1.bf16.msra.mxu0 %v4608
          %5064 = vmatprep.subr.bf16.mxu0 %v4613
          %5065 = vmatpush1.bf16.msra.mxu0 %v4612
          %5066 = vmatprep.subr.bf16.mxu0 %v4617
          %5067 = vmatpush1.bf16.msra.mxu0 %v4616
          %5068 = vmatprep.subr.bf16.mxu0 %v4621
          %5069 = vmatpush1.bf16.msra.mxu0 %v4620
          %5070 = vmatprep.subr.bf16.mxu0 %v4625
          %5071 = vmatpush1.bf16.msra.mxu0 %v4624
          %5072 = vmatprep.subr.bf16.mxu0 %v4629
          %5073 = vmatpush1.bf16.msra.mxu0 %v4628
          %5074 = vmatprep.subr.bf16.mxu0 %v4633
          %5075 = vmatpush1.bf16.msra.mxu0 %v4632
          %5076 = vmatprep.subr.bf16.mxu0 %v4637
          %5077 = vmatpush1.bf16.msra.mxu0 %v4636
          %5078 = vmatprep.subr.bf16.mxu0 %v4641
          %5079 = vmatpush1.bf16.msra.mxu0 %v4640
          %5080 = vmatprep.subr.bf16.mxu0 %v4645
          %5081 = vmatpush1.bf16.msra.mxu0 %v4644
          %5082 = vmatprep.subr.bf16.mxu0 %v4649
          %5083 = vmatpush1.bf16.msra.mxu0 %v4648
          %5084 = vmatprep.mubr.bf16.mxu0 %v3370
          %5085 = vmatmul.mubr.bf16.gmra.mrb[0].mxu0 %v3369
          %v5086 = vpop.f32.mrb[0].mxu0
          %v5087 = vadd.f32 %v5046, %v5086
          %v5088 = vpop.f32.mrb[0].mxu0
          %v5089 = vadd.f32 %v5048, %v5088
          %v5090 = vpop.f32.mrb[0].mxu0
          %v5091 = vpop.f32.mrb[0].mxu0
          %5092 = vdwg.mxu0
          %5093 = vmatprep.subr.bf16.mxu0 %v4399
          %5094 = vmatpush1.bf16.msra.mxu0 %v4398
          %5095 = vmatprep.subr.bf16.mxu0 %v4403
          %5096 = vmatpush1.bf16.msra.mxu0 %v4402
          %5097 = vmatprep.subr.bf16.mxu0 %v4407
          %5098 = vmatpush1.bf16.msra.mxu0 %v4406
          %5099 = vmatprep.subr.bf16.mxu0 %v4411
          %5100 = vmatpush1.bf16.msra.mxu0 %v4410
          %5101 = vmatprep.subr.bf16.mxu0 %v4415
          %5102 = vmatpush1.bf16.msra.mxu0 %v4414
          %5103 = vmatprep.subr.bf16.mxu0 %v4419
          %5104 = vmatpush1.bf16.msra.mxu0 %v4418
          %5105 = vmatprep.subr.bf16.mxu0 %v4423
          %5106 = vmatpush1.bf16.msra.mxu0 %v4422
          %5107 = vmatprep.subr.bf16.mxu0 %v4427
          %5108 = vmatpush1.bf16.msra.mxu0 %v4426
          %5109 = vmatprep.subr.bf16.mxu0 %v4431
          %5110 = vmatpush1.bf16.msra.mxu0 %v4430
          %5111 = vmatprep.subr.bf16.mxu0 %v4435
          %5112 = vmatpush1.bf16.msra.mxu0 %v4434
          %5113 = vmatprep.subr.bf16.mxu0 %v4439
          %5114 = vmatpush1.bf16.msra.mxu0 %v4438
          %5115 = vmatprep.subr.bf16.mxu0 %v4443
          %5116 = vmatpush1.bf16.msra.mxu0 %v4442
          %5117 = vmatprep.subr.bf16.mxu0 %v4447
          %5118 = vmatpush1.bf16.msra.mxu0 %v4446
          %5119 = vmatprep.subr.bf16.mxu0 %v4451
          %5120 = vmatpush1.bf16.msra.mxu0 %v4450
          %5121 = vmatprep.subr.bf16.mxu0 %v4455
          %5122 = vmatpush1.bf16.msra.mxu0 %v4454
          %5123 = vmatprep.subr.bf16.mxu0 %v4459
          %5124 = vmatpush1.bf16.msra.mxu0 %v4458
          %5125 = vmatprep.mubr.bf16.mxu0 %v3364
          %5126 = vmatmul.mubr.bf16.gmra.mrb[0].mxu0 %v3363
          %v5127 = vpop.f32.mrb[0].mxu0
          %v5128 = vadd.f32 %v4920, %v5127
          %v5129 = vpop.f32.mrb[0].mxu0
          %v5130 = vadd.f32 %v4924, %v5129
          %v5131 = vpop.f32.mrb[0].mxu0
          %v5132 = vpop.f32.mrb[0].mxu0
          %5133 = vdwg.mxu0
          %5134 = vmatprep.subr.bf16.mxu0 %v4463
          %5135 = vmatpush1.bf16.msra.mxu0 %v4462
          %5136 = vmatprep.subr.bf16.mxu0 %v4467
          %5137 = vmatpush1.bf16.msra.mxu0 %v4466
          %5138 = vmatprep.subr.bf16.mxu0 %v4471
          %5139 = vmatpush1.bf16.msra.mxu0 %v4470
          %5140 = vmatprep.subr.bf16.mxu0 %v4475
          %5141 = vmatpush1.bf16.msra.mxu0 %v4474
          %5142 = vmatprep.subr.bf16.mxu0 %v4479
          %5143 = vmatpush1.bf16.msra.mxu0 %v4478
          %5144 = vmatprep.subr.bf16.mxu0 %v4483
          %5145 = vmatpush1.bf16.msra.mxu0 %v4482
          %5146 = vmatprep.subr.bf16.mxu0 %v4487
          %5147 = vmatpush1.bf16.msra.mxu0 %v4486
          %5148 = vmatprep.subr.bf16.mxu0 %v4491
          %5149 = vmatpush1.bf16.msra.mxu0 %v4490
          %5150 = vmatprep.subr.bf16.mxu0 %v4495
          %5151 = vmatpush1.bf16.msra.mxu0 %v4494
          %5152 = vmatprep.subr.bf16.mxu0 %v4499
          %5153 = vmatpush1.bf16.msra.mxu0 %v4498
          %5154 = vmatprep.subr.bf16.mxu0 %v4503
          %5155 = vmatpush1.bf16.msra.mxu0 %v4502
          %5156 = vmatprep.subr.bf16.mxu0 %v4507
          %5157 = vmatpush1.bf16.msra.mxu0 %v4506
          %5158 = vmatprep.subr.bf16.mxu0 %v4511
          %5159 = vmatpush1.bf16.msra.mxu0 %v4510
          %5160 = vmatprep.subr.bf16.mxu0 %v4515
          %5161 = vmatpush1.bf16.msra.mxu0 %v4514
          %5162 = vmatprep.subr.bf16.mxu0 %v4519
          %5163 = vmatpush1.bf16.msra.mxu0 %v4518
          %5164 = vmatprep.subr.bf16.mxu0 %v4523
          %5165 = vmatpush1.bf16.msra.mxu0 %v4522
          %5166 = vmatprep.mubr.bf16.mxu0 %v3366
          %5167 = vmatmul.mubr.bf16.gmra.mrb[0].mxu0 %v3365
          %v5168 = vpop.f32.mrb[0].mxu0
          %v5169 = vadd.f32 %v5128, %v5168
          %v5170 = vpop.f32.mrb[0].mxu0
          %v5171 = vadd.f32 %v5130, %v5170
          %v5172 = vpop.f32.mrb[0].mxu0
          %v5173 = vpop.f32.mrb[0].mxu0
          %5174 = vdwg.mxu0
          %5175 = vmatprep.subr.bf16.mxu0 %v4527
          %5176 = vmatpush1.bf16.msra.mxu0 %v4526
          %5177 = vmatprep.subr.bf16.mxu0 %v4531
          %5178 = vmatpush1.bf16.msra.mxu0 %v4530
          %5179 = vmatprep.subr.bf16.mxu0 %v4535
          %5180 = vmatpush1.bf16.msra.mxu0 %v4534
          %5181 = vmatprep.subr.bf16.mxu0 %v4539
          %5182 = vmatpush1.bf16.msra.mxu0 %v4538
          %5183 = vmatprep.subr.bf16.mxu0 %v4543
          %5184 = vmatpush1.bf16.msra.mxu0 %v4542
          %5185 = vmatprep.subr.bf16.mxu0 %v4547
          %5186 = vmatpush1.bf16.msra.mxu0 %v4546
          %5187 = vmatprep.subr.bf16.mxu0 %v4551
          %5188 = vmatpush1.bf16.msra.mxu0 %v4550
          %5189 = vmatprep.subr.bf16.mxu0 %v4555
          %5190 = vmatpush1.bf16.msra.mxu0 %v4554
          %5191 = vmatprep.subr.bf16.mxu0 %v4559
          %5192 = vmatpush1.bf16.msra.mxu0 %v4558
          %5193 = vmatprep.subr.bf16.mxu0 %v4563
          %5194 = vmatpush1.bf16.msra.mxu0 %v4562
          %5195 = vmatprep.subr.bf16.mxu0 %v4567
          %5196 = vmatpush1.bf16.msra.mxu0 %v4566
          %5197 = vmatprep.subr.bf16.mxu0 %v4571
          %5198 = vmatpush1.bf16.msra.mxu0 %v4570
          %5199 = vmatprep.subr.bf16.mxu0 %v4575
          %5200 = vmatpush1.bf16.msra.mxu0 %v4574
          %5201 = vmatprep.subr.bf16.mxu0 %v4579
          %5202 = vmatpush1.bf16.msra.mxu0 %v4578
          %5203 = vmatprep.subr.bf16.mxu0 %v4583
          %5204 = vmatpush1.bf16.msra.mxu0 %v4582
          %5205 = vmatprep.subr.bf16.mxu0 %v4587
          %5206 = vmatpush1.bf16.msra.mxu0 %v4586
          %5207 = vmatprep.mubr.bf16.mxu0 %v3368
          %5208 = vmatmul.mubr.bf16.gmra.mrb[0].mxu0 %v3367
          %v5209 = vpop.f32.mrb[0].mxu0
          %v5210 = vadd.f32 %v5169, %v5209
          %v5211 = vpop.f32.mrb[0].mxu0
          %v5212 = vadd.f32 %v5171, %v5211
          %v5213 = vpop.f32.mrb[0].mxu0
          %v5214 = vpop.f32.mrb[0].mxu0
          %5215 = vdwg.mxu0
          %5216 = vmatprep.subr.bf16.mxu0 %v4591
          %5217 = vmatpush1.bf16.msra.mxu0 %v4590
          %5218 = vmatprep.subr.bf16.mxu0 %v4595
          %5219 = vmatpush1.bf16.msra.mxu0 %v4594
          %5220 = vmatprep.subr.bf16.mxu0 %v4599
          %5221 = vmatpush1.bf16.msra.mxu0 %v4598
          %5222 = vmatprep.subr.bf16.mxu0 %v4603
          %5223 = vmatpush1.bf16.msra.mxu0 %v4602
          %5224 = vmatprep.subr.bf16.mxu0 %v4607
          %5225 = vmatpush1.bf16.msra.mxu0 %v4606
          %5226 = vmatprep.subr.bf16.mxu0 %v4611
          %5227 = vmatpush1.bf16.msra.mxu0 %v4610
          %5228 = vmatprep.subr.bf16.mxu0 %v4615
          %5229 = vmatpush1.bf16.msra.mxu0 %v4614
          %5230 = vmatprep.subr.bf16.mxu0 %v4619
          %5231 = vmatpush1.bf16.msra.mxu0 %v4618
          %5232 = vmatprep.subr.bf16.mxu0 %v4623
          %5233 = vmatpush1.bf16.msra.mxu0 %v4622
          %5234 = vmatprep.subr.bf16.mxu0 %v4627
          %5235 = vmatpush1.bf16.msra.mxu0 %v4626
          %5236 = vmatprep.subr.bf16.mxu0 %v4631
          %5237 = vmatpush1.bf16.msra.mxu0 %v4630
          %5238 = vmatprep.subr.bf16.mxu0 %v4635
          %5239 = vmatpush1.bf16.msra.mxu0 %v4634
          %5240 = vmatprep.subr.bf16.mxu0 %v4639
          %5241 = vmatpush1.bf16.msra.mxu0 %v4638
          %5242 = vmatprep.subr.bf16.mxu0 %v4643
          %5243 = vmatpush1.bf16.msra.mxu0 %v4642
          %5244 = vmatprep.subr.bf16.mxu0 %v4647
          %5245 = vmatpush1.bf16.msra.mxu0 %v4646
          %5246 = vmatprep.subr.bf16.mxu0 %v4651
          %5247 = vmatpush1.bf16.msra.mxu0 %v4650
          %5248 = vmatprep.mubr.bf16.mxu0 %v3370
          %5249 = vmatmul.mubr.bf16.gmra.mrb[0].mxu0 %v3369
          %v5250 = vpop.f32.mrb[0].mxu0
          %v5251 = vadd.f32 %v5210, %v5250
          %v5252 = vpop.f32.mrb[0].mxu0
          %v5253 = vadd.f32 %v5212, %v5252
          %v5254 = vpop.f32.mrb[0].mxu0
          %v5255 = vpop.f32.mrb[0].mxu0
          %5256 = vdwg.mxu0
          %v5257 = vmax.f32 %v5087, 0.0
          %v5258 = vmax.f32 %v5089, 0.0
          %v5259 = vmax.f32 %v5251, 0.0
          %v5260 = vmax.f32 %v5253, 0.0
          %v5261 = vpack.c.bf16 %v5257, %v5257
          %v5262 = vpack.c.bf16 %v5258, %v5258
          %v5263 = vpack.c.bf16 %v5259, %v5259
          %v5264 = vpack.c.bf16 %v5260, %v5260
          %v5265 = vld [vmem:[#allocation6] sm:$0xff]
          %v5266 = vld [vmem:[#allocation6 + $0x8] sm:$0xff]
          %v5267 = vld [vmem:[#allocation6 + $0x10] sm:$0xff]
          %v5268 = vld [vmem:[#allocation6 + $0x18] sm:$0xff]
          %v5269 = vld [vmem:[#allocation6 + $0x20] sm:$0xff]
          %v5270 = vld [vmem:[#allocation6 + $0x28] sm:$0xff]
          %v5271 = vld [vmem:[#allocation6 + $0x30] sm:$0xff]
          %v5272 = vld [vmem:[#allocation6 + $0x38] sm:$0xff]
          %v5273 = vld [vmem:[#allocation6 + $0x40] sm:$0xff]
          %v5274 = vld [vmem:[#allocation6 + $0x48] sm:$0xff]
          %v5275 = vld [vmem:[#allocation6 + $0x50] sm:$0xff]
          %v5276 = vld [vmem:[#allocation6 + $0x58] sm:$0xff]
          %v5277 = vld [vmem:[#allocation6 + $0x60] sm:$0xff]
          %v5278 = vld [vmem:[#allocation6 + $0x68] sm:$0xff]
          %v5279 = vld [vmem:[#allocation6 + $0x70] sm:$0xff]
          %v5280 = vld [vmem:[#allocation6 + $0x78] sm:$0xff]
          %v5281 = vld [vmem:[#allocation6 + $0x80] sm:$0xff]
          %v5282 = vld [vmem:[#allocation6 + $0x88] sm:$0xff]
          %v5283 = vld [vmem:[#allocation6 + $0x90] sm:$0xff]
          %v5284 = vld [vmem:[#allocation6 + $0x98] sm:$0xff]
          %v5285 = vld [vmem:[#allocation6 + $0xa0] sm:$0xff]
          %v5286 = vld [vmem:[#allocation6 + $0xa8] sm:$0xff]
          %v5287 = vld [vmem:[#allocation6 + $0xb0] sm:$0xff]
          %v5288 = vld [vmem:[#allocation6 + $0xb8] sm:$0xff]
          %v5289 = vld [vmem:[#allocation6 + $0xc0] sm:$0xff]
          %v5290 = vld [vmem:[#allocation6 + $0xc8] sm:$0xff]
          %v5291 = vld [vmem:[#allocation6 + $0xd0] sm:$0xff]
          %v5292 = vld [vmem:[#allocation6 + $0xd8] sm:$0xff]
          %v5293 = vld [vmem:[#allocation6 + $0xe0] sm:$0xff]
          %v5294 = vld [vmem:[#allocation6 + $0xe8] sm:$0xff]
          %v5295 = vld [vmem:[#allocation6 + $0xf0] sm:$0xff]
          %v5296 = vld [vmem:[#allocation6 + $0xf8] sm:$0xff]
          %v5297 = vld [vmem:[#allocation6 + $0x100] sm:$0xff]
          %v5298 = vld [vmem:[#allocation6 + $0x108] sm:$0xff]
          %v5299 = vld [vmem:[#allocation6 + $0x110] sm:$0xff]
          %v5300 = vld [vmem:[#allocation6 + $0x118] sm:$0xff]
          %v5301 = vld [vmem:[#allocation6 + $0x120] sm:$0xff]
          %v5302 = vld [vmem:[#allocation6 + $0x128] sm:$0xff]
          %v5303 = vld [vmem:[#allocation6 + $0x130] sm:$0xff]
          %v5304 = vld [vmem:[#allocation6 + $0x138] sm:$0xff]
          %v5305 = vld [vmem:[#allocation6 + $0x140] sm:$0xff]
          %v5306 = vld [vmem:[#allocation6 + $0x148] sm:$0xff]
          %v5307 = vld [vmem:[#allocation6 + $0x150] sm:$0xff]
          %v5308 = vld [vmem:[#allocation6 + $0x158] sm:$0xff]
          %v5309 = vld [vmem:[#allocation6 + $0x160] sm:$0xff]
          %v5310 = vld [vmem:[#allocation6 + $0x168] sm:$0xff]
          %v5311 = vld [vmem:[#allocation6 + $0x170] sm:$0xff]
          %v5312 = vld [vmem:[#allocation6 + $0x178] sm:$0xff]
          %v5313 = vld [vmem:[#allocation6 + $0x180] sm:$0xff]
          %v5314 = vld [vmem:[#allocation6 + $0x188] sm:$0xff]
          %v5315 = vld [vmem:[#allocation6 + $0x190] sm:$0xff]
          %v5316 = vld [vmem:[#allocation6 + $0x198] sm:$0xff]
          %v5317 = vld [vmem:[#allocation6 + $0x1a0] sm:$0xff]
          %v5318 = vld [vmem:[#allocation6 + $0x1a8] sm:$0xff]
          %v5319 = vld [vmem:[#allocation6 + $0x1b0] sm:$0xff]
          %v5320 = vld [vmem:[#allocation6 + $0x1b8] sm:$0xff]
          %v5321 = vld [vmem:[#allocation6 + $0x1c0] sm:$0xff]
          %v5322 = vld [vmem:[#allocation6 + $0x1c8] sm:$0xff]
          %v5323 = vld [vmem:[#allocation6 + $0x1d0] sm:$0xff]
          %v5324 = vld [vmem:[#allocation6 + $0x1d8] sm:$0xff]
          %v5325 = vld [vmem:[#allocation6 + $0x1e0] sm:$0xff]
          %v5326 = vld [vmem:[#allocation6 + $0x1e8] sm:$0xff]
          %v5327 = vld [vmem:[#allocation6 + $0x1f0] sm:$0xff]
          %v5328 = vld [vmem:[#allocation6 + $0x1f8] sm:$0xff]
          %v5329 = vld [vmem:[%s10] sm:$0x3]
          %v5394 = vunpack.c.l.b16 %v5265
          %v5395 = vunpack.c.h.b16 %v5265
          %v5396 = vunpack.c.l.b16 %v5266
          %v5397 = vunpack.c.h.b16 %v5266
          %v5398 = vunpack.c.l.b16 %v5267
          %v5399 = vunpack.c.h.b16 %v5267
          %v5400 = vunpack.c.l.b16 %v5268
          %v5401 = vunpack.c.h.b16 %v5268
          %v5402 = vunpack.c.l.b16 %v5269
          %v5403 = vunpack.c.h.b16 %v5269
          %v5404 = vunpack.c.l.b16 %v5270
          %v5405 = vunpack.c.h.b16 %v5270
          %v5406 = vunpack.c.l.b16 %v5271
          %v5407 = vunpack.c.h.b16 %v5271
          %v5408 = vunpack.c.l.b16 %v5272
          %v5409 = vunpack.c.h.b16 %v5272
          %v5410 = vunpack.c.l.b16 %v5273
          %v5411 = vunpack.c.h.b16 %v5273
          %v5412 = vunpack.c.l.b16 %v5274
          %v5413 = vunpack.c.h.b16 %v5274
          %v5414 = vunpack.c.l.b16 %v5275
          %v5415 = vunpack.c.h.b16 %v5275
          %v5416 = vunpack.c.l.b16 %v5276
          %v5417 = vunpack.c.h.b16 %v5276
          %v5418 = vunpack.c.l.b16 %v5277
          %v5419 = vunpack.c.h.b16 %v5277
          %v5420 = vunpack.c.l.b16 %v5278
          %v5421 = vunpack.c.h.b16 %v5278
          %v5422 = vunpack.c.l.b16 %v5279
          %v5423 = vunpack.c.h.b16 %v5279
          %v5424 = vunpack.c.l.b16 %v5280
          %v5425 = vunpack.c.h.b16 %v5280
          %v5426 = vunpack.c.l.b16 %v5281
          %v5427 = vunpack.c.h.b16 %v5281
          %v5428 = vunpack.c.l.b16 %v5282
          %v5429 = vunpack.c.h.b16 %v5282
          %v5430 = vunpack.c.l.b16 %v5283
          %v5431 = vunpack.c.h.b16 %v5283
          %v5432 = vunpack.c.l.b16 %v5284
          %v5433 = vunpack.c.h.b16 %v5284
          %v5434 = vunpack.c.l.b16 %v5285
          %v5435 = vunpack.c.h.b16 %v5285
          %v5436 = vunpack.c.l.b16 %v5286
          %v5437 = vunpack.c.h.b16 %v5286
          %v5438 = vunpack.c.l.b16 %v5287
          %v5439 = vunpack.c.h.b16 %v5287
          %v5440 = vunpack.c.l.b16 %v5288
          %v5441 = vunpack.c.h.b16 %v5288
          %v5442 = vunpack.c.l.b16 %v5289
          %v5443 = vunpack.c.h.b16 %v5289
          %v5444 = vunpack.c.l.b16 %v5290
          %v5445 = vunpack.c.h.b16 %v5290
          %v5446 = vunpack.c.l.b16 %v5291
          %v5447 = vunpack.c.h.b16 %v5291
          %v5448 = vunpack.c.l.b16 %v5292
          %v5449 = vunpack.c.h.b16 %v5292
          %v5450 = vunpack.c.l.b16 %v5293
          %v5451 = vunpack.c.h.b16 %v5293
          %v5452 = vunpack.c.l.b16 %v5294
          %v5453 = vunpack.c.h.b16 %v5294
          %v5454 = vunpack.c.l.b16 %v5295
          %v5455 = vunpack.c.h.b16 %v5295
          %v5456 = vunpack.c.l.b16 %v5296
          %v5457 = vunpack.c.h.b16 %v5296
          %v5458 = vunpack.c.l.b16 %v5297
          %v5459 = vunpack.c.h.b16 %v5297
          %v5460 = vunpack.c.l.b16 %v5298
          %v5461 = vunpack.c.h.b16 %v5298
          %v5462 = vunpack.c.l.b16 %v5299
          %v5463 = vunpack.c.h.b16 %v5299
          %v5464 = vunpack.c.l.b16 %v5300
          %v5465 = vunpack.c.h.b16 %v5300
          %v5466 = vunpack.c.l.b16 %v5301
          %v5467 = vunpack.c.h.b16 %v5301
          %v5468 = vunpack.c.l.b16 %v5302
          %v5469 = vunpack.c.h.b16 %v5302
          %v5470 = vunpack.c.l.b16 %v5303
          %v5471 = vunpack.c.h.b16 %v5303
          %v5472 = vunpack.c.l.b16 %v5304
          %v5473 = vunpack.c.h.b16 %v5304
          %v5474 = vunpack.c.l.b16 %v5305
          %v5475 = vunpack.c.h.b16 %v5305
          %v5476 = vunpack.c.l.b16 %v5306
          %v5477 = vunpack.c.h.b16 %v5306
          %v5478 = vunpack.c.l.b16 %v5307
          %v5479 = vunpack.c.h.b16 %v5307
          %v5480 = vunpack.c.l.b16 %v5308
          %v5481 = vunpack.c.h.b16 %v5308
          %v5482 = vunpack.c.l.b16 %v5309
          %v5483 = vunpack.c.h.b16 %v5309
          %v5484 = vunpack.c.l.b16 %v5310
          %v5485 = vunpack.c.h.b16 %v5310
          %v5486 = vunpack.c.l.b16 %v5311
          %v5487 = vunpack.c.h.b16 %v5311
          %v5488 = vunpack.c.l.b16 %v5312
          %v5489 = vunpack.c.h.b16 %v5312
          %v5490 = vunpack.c.l.b16 %v5313
          %v5491 = vunpack.c.h.b16 %v5313
          %v5492 = vunpack.c.l.b16 %v5314
          %v5493 = vunpack.c.h.b16 %v5314
          %v5494 = vunpack.c.l.b16 %v5315
          %v5495 = vunpack.c.h.b16 %v5315
          %v5496 = vunpack.c.l.b16 %v5316
          %v5497 = vunpack.c.h.b16 %v5316
          %v5498 = vunpack.c.l.b16 %v5317
          %v5499 = vunpack.c.h.b16 %v5317
          %v5500 = vunpack.c.l.b16 %v5318
          %v5501 = vunpack.c.h.b16 %v5318
          %v5502 = vunpack.c.l.b16 %v5319
          %v5503 = vunpack.c.h.b16 %v5319
          %v5504 = vunpack.c.l.b16 %v5320
          %v5505 = vunpack.c.h.b16 %v5320
          %v5506 = vunpack.c.l.b16 %v5321
          %v5507 = vunpack.c.h.b16 %v5321
          %v5508 = vunpack.c.l.b16 %v5322
          %v5509 = vunpack.c.h.b16 %v5322
          %v5510 = vunpack.c.l.b16 %v5323
          %v5511 = vunpack.c.h.b16 %v5323
          %v5512 = vunpack.c.l.b16 %v5324
          %v5513 = vunpack.c.h.b16 %v5324
          %v5514 = vunpack.c.l.b16 %v5325
          %v5515 = vunpack.c.h.b16 %v5325
          %v5516 = vunpack.c.l.b16 %v5326
          %v5517 = vunpack.c.h.b16 %v5326
          %v5518 = vunpack.c.l.b16 %v5327
          %v5519 = vunpack.c.h.b16 %v5327
          %v5520 = vunpack.c.l.b16 %v5328
          %v5521 = vunpack.c.h.b16 %v5328
          %v5522 = vpack.c.b16 %v5396, %v5394
          %v5523 = vpack.c.b16 %v5397, %v5395
          %v5524 = vpack.c.b16 %v5400, %v5398
          %v5525 = vpack.c.b16 %v5401, %v5399
          %v5526 = vpack.c.b16 %v5404, %v5402
          %v5527 = vpack.c.b16 %v5405, %v5403
          %v5528 = vpack.c.b16 %v5408, %v5406
          %v5529 = vpack.c.b16 %v5409, %v5407
          %v5530 = vpack.c.b16 %v5412, %v5410
          %v5531 = vpack.c.b16 %v5413, %v5411
          %v5532 = vpack.c.b16 %v5416, %v5414
          %v5533 = vpack.c.b16 %v5417, %v5415
          %v5534 = vpack.c.b16 %v5420, %v5418
          %v5535 = vpack.c.b16 %v5421, %v5419
          %v5536 = vpack.c.b16 %v5424, %v5422
          %v5537 = vpack.c.b16 %v5425, %v5423
          %v5538 = vpack.c.b16 %v5428, %v5426
          %v5539 = vpack.c.b16 %v5429, %v5427
          %v5540 = vpack.c.b16 %v5432, %v5430
          %v5541 = vpack.c.b16 %v5433, %v5431
          %v5542 = vpack.c.b16 %v5436, %v5434
          %v5543 = vpack.c.b16 %v5437, %v5435
          %v5544 = vpack.c.b16 %v5440, %v5438
          %v5545 = vpack.c.b16 %v5441, %v5439
          %v5546 = vpack.c.b16 %v5444, %v5442
          %v5547 = vpack.c.b16 %v5445, %v5443
          %v5548 = vpack.c.b16 %v5448, %v5446
          %v5549 = vpack.c.b16 %v5449, %v5447
          %v5550 = vpack.c.b16 %v5452, %v5450
          %v5551 = vpack.c.b16 %v5453, %v5451
          %v5552 = vpack.c.b16 %v5456, %v5454
          %v5553 = vpack.c.b16 %v5457, %v5455
          %v5554 = vpack.c.b16 %v5460, %v5458
          %v5555 = vpack.c.b16 %v5461, %v5459
          %v5556 = vpack.c.b16 %v5464, %v5462
          %v5557 = vpack.c.b16 %v5465, %v5463
          %v5558 = vpack.c.b16 %v5468, %v5466
          %v5559 = vpack.c.b16 %v5469, %v5467
          %v5560 = vpack.c.b16 %v5472, %v5470
          %v5561 = vpack.c.b16 %v5473, %v5471
          %v5562 = vpack.c.b16 %v5476, %v5474
          %v5563 = vpack.c.b16 %v5477, %v5475
          %v5564 = vpack.c.b16 %v5480, %v5478
          %v5565 = vpack.c.b16 %v5481, %v5479
          %v5566 = vpack.c.b16 %v5484, %v5482
          %v5567 = vpack.c.b16 %v5485, %v5483
          %v5568 = vpack.c.b16 %v5488, %v5486
          %v5569 = vpack.c.b16 %v5489, %v5487
          %v5570 = vpack.c.b16 %v5492, %v5490
          %v5571 = vpack.c.b16 %v5493, %v5491
          %v5572 = vpack.c.b16 %v5496, %v5494
          %v5573 = vpack.c.b16 %v5497, %v5495
          %v5574 = vpack.c.b16 %v5500, %v5498
          %v5575 = vpack.c.b16 %v5501, %v5499
          %v5576 = vpack.c.b16 %v5504, %v5502
          %v5577 = vpack.c.b16 %v5505, %v5503
          %v5578 = vpack.c.b16 %v5508, %v5506
          %v5579 = vpack.c.b16 %v5509, %v5507
          %v5580 = vpack.c.b16 %v5512, %v5510
          %v5581 = vpack.c.b16 %v5513, %v5511
          %v5582 = vpack.c.b16 %v5516, %v5514
          %v5583 = vpack.c.b16 %v5517, %v5515
          %v5584 = vpack.c.b16 %v5520, %v5518
          %v5585 = vpack.c.b16 %v5521, %v5519
          %v5651 = vlaneseq
          %v5652 = vshrl.u32 %v5651, 7
          %v5653 = vsub.s32 0, %v5652
          %v5654 = vrot.slane %v5329, %v5653
          %v5655 = vlaneseq
          %v5656 = vshrl.u32 %v5655, 7
          %v5657 = vsub.s32 1, %v5656
          %v5658 = vrot.slane %v5329, %v5657
          %5661 = vmatprep.subr.bf16.mxu0 %v5523
          %5662 = vmatpush1.bf16.msra.mxu0 %v5522
          %5663 = vmatprep.subr.bf16.mxu0 %v5525
          %5664 = vmatpush1.bf16.msra.mxu0 %v5524
          %5665 = vmatprep.subr.bf16.mxu0 %v5527
          %5666 = vmatpush1.bf16.msra.mxu0 %v5526
          %5667 = vmatprep.subr.bf16.mxu0 %v5529
          %5668 = vmatpush1.bf16.msra.mxu0 %v5528
          %5669 = vmatprep.subr.bf16.mxu0 %v5531
          %5670 = vmatpush1.bf16.msra.mxu0 %v5530
          %5671 = vmatprep.subr.bf16.mxu0 %v5533
          %5672 = vmatpush1.bf16.msra.mxu0 %v5532
          %5673 = vmatprep.subr.bf16.mxu0 %v5535
          %5674 = vmatpush1.bf16.msra.mxu0 %v5534
          %5675 = vmatprep.subr.bf16.mxu0 %v5537
          %5676 = vmatpush1.bf16.msra.mxu0 %v5536
          %5677 = vmatprep.subr.bf16.mxu0 %v5539
          %5678 = vmatpush1.bf16.msra.mxu0 %v5538
          %5679 = vmatprep.subr.bf16.mxu0 %v5541
          %5680 = vmatpush1.bf16.msra.mxu0 %v5540
          %5681 = vmatprep.subr.bf16.mxu0 %v5543
          %5682 = vmatpush1.bf16.msra.mxu0 %v5542
          %5683 = vmatprep.subr.bf16.mxu0 %v5545
          %5684 = vmatpush1.bf16.msra.mxu0 %v5544
          %5685 = vmatprep.subr.bf16.mxu0 %v5547
          %5686 = vmatpush1.bf16.msra.mxu0 %v5546
          %5687 = vmatprep.subr.bf16.mxu0 %v5549
          %5688 = vmatpush1.bf16.msra.mxu0 %v5548
          %5689 = vmatprep.subr.bf16.mxu0 %v5551
          %5690 = vmatpush1.bf16.msra.mxu0 %v5550
          %5691 = vmatprep.subr.bf16.mxu0 %v5553
          %5692 = vmatpush1.bf16.msra.mxu0 %v5552
          %5693 = vmatprep.mubr.bf16.mxu0 %v5262
          %5694 = vmatmul.mubr.bf16.gmra.mrb[0].mxu0 %v5261
          %v5695 = vpop.f32.mrb[0].mxu0
          %v5696 = vadd.f32 %v5654, %v5695
          %v5697 = vpop.f32.mrb[0].mxu0
          %v5698 = vadd.f32 %v5658, %v5697
          %v5699 = vpop.f32.mrb[0].mxu0
          %v5700 = vpop.f32.mrb[0].mxu0
          %5701 = vdwg.mxu0
          %5702 = vmatprep.subr.bf16.mxu0 %v5555
          %5703 = vmatpush1.bf16.msra.mxu0 %v5554
          %5704 = vmatprep.subr.bf16.mxu0 %v5557
          %5705 = vmatpush1.bf16.msra.mxu0 %v5556
          %5706 = vmatprep.subr.bf16.mxu0 %v5559
          %5707 = vmatpush1.bf16.msra.mxu0 %v5558
          %5708 = vmatprep.subr.bf16.mxu0 %v5561
          %5709 = vmatpush1.bf16.msra.mxu0 %v5560
          %5710 = vmatprep.subr.bf16.mxu0 %v5563
          %5711 = vmatpush1.bf16.msra.mxu0 %v5562
          %5712 = vmatprep.subr.bf16.mxu0 %v5565
          %5713 = vmatpush1.bf16.msra.mxu0 %v5564
          %5714 = vmatprep.subr.bf16.mxu0 %v5567
          %5715 = vmatpush1.bf16.msra.mxu0 %v5566
          %5716 = vmatprep.subr.bf16.mxu0 %v5569
          %5717 = vmatpush1.bf16.msra.mxu0 %v5568
          %5718 = vmatprep.subr.bf16.mxu0 %v5571
          %5719 = vmatpush1.bf16.msra.mxu0 %v5570
          %5720 = vmatprep.subr.bf16.mxu0 %v5573
          %5721 = vmatpush1.bf16.msra.mxu0 %v5572
          %5722 = vmatprep.subr.bf16.mxu0 %v5575
          %5723 = vmatpush1.bf16.msra.mxu0 %v5574
          %5724 = vmatprep.subr.bf16.mxu0 %v5577
          %5725 = vmatpush1.bf16.msra.mxu0 %v5576
          %5726 = vmatprep.subr.bf16.mxu0 %v5579
          %5727 = vmatpush1.bf16.msra.mxu0 %v5578
          %5728 = vmatprep.subr.bf16.mxu0 %v5581
          %5729 = vmatpush1.bf16.msra.mxu0 %v5580
          %5730 = vmatprep.subr.bf16.mxu0 %v5583
          %5731 = vmatpush1.bf16.msra.mxu0 %v5582
          %5732 = vmatprep.subr.bf16.mxu0 %v5585
          %5733 = vmatpush1.bf16.msra.mxu0 %v5584
          %5734 = vmatprep.mubr.bf16.mxu0 %v5264
          %5735 = vmatmul.mubr.bf16.gmra.mrb[0].mxu0 %v5263
          %v5736 = vpop.f32.mrb[0].mxu0
          %v5737 = vadd.f32 %v5696, %v5736
          %v5738 = vpop.f32.mrb[0].mxu0
          %v5739 = vadd.f32 %v5698, %v5738
          %v5740 = vpop.f32.mrb[0].mxu0
          %v5741 = vpop.f32.mrb[0].mxu0
          %5742 = vdwg.mxu0
          %v5743 = vmax.f32 %v5737, 0.0
          %v5744 = vmax.f32 %v5739, 0.0
          %v5745 = vpack.c.bf16 %v5743, %v5743
          %v5746 = vpack.c.bf16 %v5744, %v5744
          %v5747 = vld [vmem:[%s11] sm:$0xf]
          %v5748 = vld [vmem:[%s11 + $0x4] sm:$0xf]
          %v5749 = vld [vmem:[%s11 + $0x8] sm:$0xf]
          %v5750 = vld [vmem:[%s11 + $0xc] sm:$0xf]
          %v5751 = vld [vmem:[%s11 + $0x10] sm:$0xf]
          %v5752 = vld [vmem:[%s11 + $0x14] sm:$0xf]
          %v5753 = vld [vmem:[%s11 + $0x18] sm:$0xf]
          %v5754 = vld [vmem:[%s11 + $0x1c] sm:$0xf]
          %v5755 = vld [vmem:[%s11 + $0x20] sm:$0xf]
          %v5756 = vld [vmem:[%s11 + $0x24] sm:$0xf]
          %v5757 = vld [vmem:[%s11 + $0x28] sm:$0xf]
          %v5758 = vld [vmem:[%s11 + $0x2c] sm:$0xf]
          %v5759 = vld [vmem:[%s11 + $0x30] sm:$0xf]
          %v5760 = vld [vmem:[%s11 + $0x34] sm:$0xf]
          %v5761 = vld [vmem:[%s11 + $0x38] sm:$0xf]
          %v5762 = vld [vmem:[%s11 + $0x3c] sm:$0xf]
          %v5763 = vld [vmem:[%s11 + $0x40] sm:$0xf]
          %v5764 = vld [vmem:[%s11 + $0x44] sm:$0xf]
          %v5765 = vld [vmem:[%s11 + $0x48] sm:$0xf]
          %v5766 = vld [vmem:[%s11 + $0x4c] sm:$0xf]
          %v5767 = vld [vmem:[%s11 + $0x50] sm:$0xf]
          %v5768 = vld [vmem:[%s11 + $0x54] sm:$0xf]
          %v5769 = vld [vmem:[%s11 + $0x58] sm:$0xf]
          %v5770 = vld [vmem:[%s11 + $0x5c] sm:$0xf]
          %v5771 = vld [vmem:[%s11 + $0x60] sm:$0xf]
          %v5772 = vld [vmem:[%s11 + $0x64] sm:$0xf]
          %v5773 = vld [vmem:[%s11 + $0x68] sm:$0xf]
          %v5774 = vld [vmem:[%s11 + $0x6c] sm:$0xf]
          %v5775 = vld [vmem:[%s11 + $0x70] sm:$0xf]
          %v5776 = vld [vmem:[%s11 + $0x74] sm:$0xf]
          %v5777 = vld [vmem:[%s11 + $0x78] sm:$0xf]
          %v5778 = vld [vmem:[%s11 + $0x7c] sm:$0xf]
          %v5779 = vld [vmem:[%s12] sm:$0x1]
          %v5812 = vunpack.c.l.b16 %v5747
          %v5813 = vunpack.c.l.b16 %v5748
          %v5814 = vunpack.c.l.b16 %v5749
          %v5815 = vunpack.c.l.b16 %v5750
          %v5816 = vunpack.c.l.b16 %v5751
          %v5817 = vunpack.c.l.b16 %v5752
          %v5818 = vunpack.c.l.b16 %v5753
          %v5819 = vunpack.c.l.b16 %v5754
          %v5820 = vunpack.c.l.b16 %v5755
          %v5821 = vunpack.c.l.b16 %v5756
          %v5822 = vunpack.c.l.b16 %v5757
          %v5823 = vunpack.c.l.b16 %v5758
          %v5824 = vunpack.c.l.b16 %v5759
          %v5825 = vunpack.c.l.b16 %v5760
          %v5826 = vunpack.c.l.b16 %v5761
          %v5827 = vunpack.c.l.b16 %v5762
          %v5828 = vunpack.c.l.b16 %v5763
          %v5829 = vunpack.c.l.b16 %v5764
          %v5830 = vunpack.c.l.b16 %v5765
          %v5831 = vunpack.c.l.b16 %v5766
          %v5832 = vunpack.c.l.b16 %v5767
          %v5833 = vunpack.c.l.b16 %v5768
          %v5834 = vunpack.c.l.b16 %v5769
          %v5835 = vunpack.c.l.b16 %v5770
          %v5836 = vunpack.c.l.b16 %v5771
          %v5837 = vunpack.c.l.b16 %v5772
          %v5838 = vunpack.c.l.b16 %v5773
          %v5839 = vunpack.c.l.b16 %v5774
          %v5840 = vunpack.c.l.b16 %v5775
          %v5841 = vunpack.c.l.b16 %v5776
          %v5842 = vunpack.c.l.b16 %v5777
          %v5843 = vunpack.c.l.b16 %v5778
          %v5844 = vpack.c.b16 %v5813, %v5812
          %v5845 = vpack.c.b16 %v5815, %v5814
          %v5846 = vpack.c.b16 %v5817, %v5816
          %v5847 = vpack.c.b16 %v5819, %v5818
          %v5848 = vpack.c.b16 %v5821, %v5820
          %v5849 = vpack.c.b16 %v5823, %v5822
          %v5850 = vpack.c.b16 %v5825, %v5824
          %v5851 = vpack.c.b16 %v5827, %v5826
          %v5852 = vpack.c.b16 %v5829, %v5828
          %v5853 = vpack.c.b16 %v5831, %v5830
          %v5854 = vpack.c.b16 %v5833, %v5832
          %v5855 = vpack.c.b16 %v5835, %v5834
          %v5856 = vpack.c.b16 %v5837, %v5836
          %v5857 = vpack.c.b16 %v5839, %v5838
          %v5858 = vpack.c.b16 %v5841, %v5840
          %v5859 = vpack.c.b16 %v5843, %v5842
          %5876 = vmatprep.subr.bf16.mxu0 0
          %5877 = vmatpush1.bf16.msra.mxu0 %v5844
          %5878 = vmatprep.subr.bf16.mxu0 0
          %5879 = vmatpush1.bf16.msra.mxu0 %v5845
          %5880 = vmatprep.subr.bf16.mxu0 0
          %5881 = vmatpush1.bf16.msra.mxu0 %v5846
          %5882 = vmatprep.subr.bf16.mxu0 0
          %5883 = vmatpush1.bf16.msra.mxu0 %v5847
          %5884 = vmatprep.subr.bf16.mxu0 0
          %5885 = vmatpush1.bf16.msra.mxu0 %v5848
          %5886 = vmatprep.subr.bf16.mxu0 0
          %5887 = vmatpush1.bf16.msra.mxu0 %v5849
          %5888 = vmatprep.subr.bf16.mxu0 0
          %5889 = vmatpush1.bf16.msra.mxu0 %v5850
          %5890 = vmatprep.subr.bf16.mxu0 0
          %5891 = vmatpush1.bf16.msra.mxu0 %v5851
          %5892 = vmatprep.subr.bf16.mxu0 0
          %5893 = vmatpush1.bf16.msra.mxu0 %v5852
          %5894 = vmatprep.subr.bf16.mxu0 0
          %5895 = vmatpush1.bf16.msra.mxu0 %v5853
          %5896 = vmatprep.subr.bf16.mxu0 0
          %5897 = vmatpush1.bf16.msra.mxu0 %v5854
          %5898 = vmatprep.subr.bf16.mxu0 0
          %5899 = vmatpush1.bf16.msra.mxu0 %v5855
          %5900 = vmatprep.subr.bf16.mxu0 0
          %5901 = vmatpush1.bf16.msra.mxu0 %v5856
          %5902 = vmatprep.subr.bf16.mxu0 0
          %5903 = vmatpush1.bf16.msra.mxu0 %v5857
          %5904 = vmatprep.subr.bf16.mxu0 0
          %5905 = vmatpush1.bf16.msra.mxu0 %v5858
          %5906 = vmatprep.subr.bf16.mxu0 0
          %5907 = vmatpush1.bf16.msra.mxu0 %v5859
          %5908 = vmatprep.mubr.bf16.mxu0 %v5746
          %5909 = vmatmul.mubr.bf16.gmra.mrb[0].mxu0 %v5745
          %v5910 = vpop.f32.mrb[0].mxu0
          %v5911 = vadd.f32 %v5779, %v5910
          %v5912 = vpop.f32.mrb[0].mxu0
          %v5913 = vpop.f32.mrb[0].mxu0
          %v5914 = vpop.f32.mrb[0].mxu0
          %5915 = vdwg.mxu0
          %vm5916 = vcmask 65536
          %5917 = vst.msk [vmem:[%s485] sm:$0x1] %vm5916, %v5911
        $region88: #{tpu_custom_call.1} parent=71 // pred_fallthru
          _
        %s5918 = sand.u32 %s329, 1
        %s5919 = scalar_lea.sflag [#allocation5], %s5918
        %s5920 = sand.u32 %s329, 1
        %s5921 = scalar_lea.vmem [#allocation8], %s5920
        // Predicated region
        $region89: #{tpu_custom_call.1} parent=71 // pred_check
          %p5922 = pneg %p339
        $region90: #{tpu_custom_call.1} parent=71 // pred_check_branch
          %5924 = sbr.rel (%p5922) target = $region92
        $region91: #{tpu_custom_call.1} parent=71 // pred_region
          %s5926 = ssub.s32 16, 16
          %5927 = vsyncadd %s5919, %s5926
          %s5928 = smul.addr %s33, 16
          %s5929 = scalar_lea.hbm %s13, %s5928
          %s5931 = sshll.u32 %s5921, 4
          %s5932 = int_to_ptr.vmem [resolvable:$true] %s5931
          %5934 = dma.vmem_to_hbm [thread:$0]  %s5932, 16, %s5929, %s5919
        $region92: #{tpu_custom_call.1} parent=71 // pred_fallthru
          _
      $region72: #{tpu_custom_call.1} parent=5 // pred_fallthru
        _
      %p5935 = scmp.le.s32.totalorder 2, %s24
      // Predicated region
      $region93: #{tpu_custom_call.1} parent=5 // pred_check
        %p5936 = pneg %p5935
      $region94: #{tpu_custom_call.1} parent=5 // pred_check_branch
        %5938 = sbr.rel (%p5936) target = $region96
      $region95: #{tpu_custom_call.1} parent=5 // pred_region
        %s5939 = ssub.s32 %s24, 2
        // Predicated region
        $region97: #{tpu_custom_call.1} parent=95 // pred_check
          %p5940 = pneg %p345
        $region98: #{tpu_custom_call.1} parent=95 // pred_check_branch
          %5942 = sbr.rel (%p5940) target = $region100
        $region99: #{tpu_custom_call.1} parent=95 // pred_region
          %s5943 = sand.u32 %s330, 1
          %s5944 = scalar_lea.sflag [#allocation5], %s5943
          %s5945 = sand.u32 %s330, 1
          %s5946 = scalar_lea.vmem [#allocation8], %s5945
          %5947 = dma.done %s5944, 16
        $region100: #{tpu_custom_call.1} parent=95 // pred_fallthru
          _
      $region96: #{tpu_custom_call.1} parent=5 // pred_fallthru
        _
    $region6: #{tpu_custom_call.1} parent=1 // loop_footer
      %s28 = sadd.s32 1, %s24
    $region7: #{tpu_custom_call.1} parent=1 // loop_footer_branch
      %23 = sbr.rel target = $region3
    $region8: #{tpu_custom_call.1} parent=1 // loop_exit
      _
    %5948 = vsyncpa [#allocation4], 1
    %s5949 = scalar_lea.sflag [#allocation4], 1
    %5950 = vsyncpa %s5949, 1
    %5951 = vsyncpa [#allocation7], 1
    %5952 = vsyncpa [#allocation5], 1
    %s5953 = scalar_lea.sflag [#allocation5], 1
    %5954 = vsyncpa %s5953, 1

</llo_original>
